<compile_context>
chip_gen: v5e
topology: v5e:2x2
jax: 0.10.0
libtpu: 0.0.40
codegen_flags: <defaults>
</compile_context>

<pallas_src>
import functools

import jax
import jax.numpy as jnp
from jax.experimental import pallas as pl
from jax.experimental.pallas import tpu as pltpu

# zero-padded FCL hidden widths (original 200 / 100 / 80)
H1, H2, H3 = 256, 128, 128


def _round_up(x, m):
    return ((x + m - 1) // m) * m


# ----------------------------------------------------------------------------
# kernel-side math helpers
# ----------------------------------------------------------------------------
def _mm(x, w_ref, b_ref):
    """MXU matmul; activations cast to the weight dtype (bf16 path), f32 accumulate."""
    w = w_ref[...]
    return jnp.dot(x.astype(w.dtype), w, preferred_element_type=jnp.float32) + b_ref[...]


def _finish_softmax(acc, l):
    """Normalize an online-softmax accumulator: EUP reciprocal + one Newton step."""
    r = pl.reciprocal(l, approx=True)
    r = r * (2.0 - l * r)
    return acc * r


# ----------------------------------------------------------------------------
# Pallas kernel: one batch tile per grid step
# ----------------------------------------------------------------------------
def deeponet_f_kernel(
        y_ref, f_ref, dom0_ref, dom1_ref, mask_ref,
        # SMEM scalar params
        a1_wq_ref, a1_bq_ref, a1_wk_ref, a1_bk_ref,
        a2_wq_ref, a2_bq_ref, a2_wk_ref, a2_bk_ref, b2b4_ref,
        # VMEM weights (resident, single-buffered)
        b1w1_ref, b1b1_ref, b1w2_ref, b1b2_ref, b1w3_ref, b1b3_ref, b1w4_ref, b1b4_ref,
        b2w1_ref, b2b1_ref, b2w2_ref, b2b2_ref, b2w3_ref, b2b3_ref, b2w4t_ref,
        tw1_ref, tb1_ref, tw2_ref, tb2_ref, tw3_ref, tb3_ref, tw4_ref, tb4_ref,
        out_ref, *, key_chunk):
    f = f_ref[...]
    dom0 = dom0_ref[...]
    dom1 = dom1_ref[...]
    mask = mask_ref[...]
    tb, s = f.shape

    # attention scalars from SMEM
    a1_wq = a1_wq_ref[0, 0]; a1_bq = a1_bq_ref[0, 0]
    a1_wk = a1_wk_ref[0, 0]; a1_bk = a1_bk_ref[0, 0]
    a2_wq0 = a2_wq_ref[0, 0]; a2_wq1 = a2_wq_ref[0, 1]; a2_bq = a2_bq_ref[0, 0]
    a2_wk0 = a2_wk_ref[0, 0]; a2_wk1 = a2_wk_ref[0, 1]; a2_bk = a2_bk_ref[0, 0]

    # queries (hidden_dim = 1 -> per-sensor scalars)
    q1 = f * a1_wq + a1_bq                                   # (TB, S)
    q2 = dom0 * a2_wq0 + dom1 * a2_wq1 + a2_bq               # (TB, S)

    # ---- flash-style online softmax over key chunks for both attentions ------
    neg = jnp.float32(-1e9)
    m1 = jnp.full((tb, s), -jnp.inf, jnp.float32)
    l1 = jnp.zeros((tb, s), jnp.float32)
    acc1 = jnp.zeros((tb, s), jnp.float32)
    m2 = jnp.full((tb, s), -jnp.inf, jnp.float32)
    l2 = jnp.zeros((tb, s), jnp.float32)
    acc2_0 = jnp.zeros((tb, s), jnp.float32)
    acc2_1 = jnp.zeros((tb, s), jnp.float32)

    n_chunks = (s + key_chunk - 1) // key_chunk
    for c in range(n_chunks):                                # static unrolled loop
        start = c * key_chunk
        size = min(key_chunk, s - start)
        f_c = f[:, start:start + size]
        d0_c = dom0[:, start:start + size]
        d1_c = dom1[:, start:start + size]
        mk_c = mask[:, start:start + size] > 0.5             # key mask (TB, C)

        # attention1 (over f)
        k1_c = f_c * a1_wk + a1_bk
        s1 = jnp.where(mk_c[:, None, :], q1[:, :, None] * k1_c[:, None, :], neg)
        nm1 = jnp.maximum(m1, jnp.max(s1, axis=-1))
        al1 = jnp.exp(m1 - nm1)
        p1 = jnp.exp(s1 - nm1[:, :, None])
        l1 = al1 * l1 + jnp.sum(p1, axis=-1)
        acc1 = al1 * acc1 + jnp.sum(p1 * f_c[:, None, :], axis=-1)
        m1 = nm1

        # attention2 (over dom); both weighted reductions in one pass over p2
        k2_c = d0_c * a2_wk0 + d1_c * a2_wk1 + a2_bk
        s2 = jnp.where(mk_c[:, None, :], q2[:, :, None] * k2_c[:, None, :], neg)
        nm2 = jnp.maximum(m2, jnp.max(s2, axis=-1))
        al2 = jnp.exp(m2 - nm2)
        p2 = jnp.exp(s2 - nm2[:, :, None])
        l2 = al2 * l2 + jnp.sum(p2, axis=-1)
        acc2_0 = al2 * acc2_0 + jnp.sum(p2 * d0_c[:, None, :], axis=-1)
        acc2_1 = al2 * acc2_1 + jnp.sum(p2 * d1_c[:, None, :], axis=-1)
        m2 = nm2

    att1 = _finish_softmax(acc1, l1)                         # (TB, S)
    att2_0 = _finish_softmax(acc2_0, l2)                     # (TB, S)
    att2_1 = _finish_softmax(acc2_1, l2)                     # (TB, S)

    # ---- branch1: FCL(S -> S) on att1 (2-D MXU matmuls) ----------------------
    h = _mm(att1, b1w1_ref, b1b1_ref)
    h = jnp.tanh(_mm(h, b1w2_ref, b1b2_ref))
    h = jnp.tanh(_mm(h, b1w3_ref, b1b3_ref))
    branch1 = _mm(h, b1w4_ref, b1b4_ref)                     # (TB, S)

    # ---- branch2: FCL(2 -> 1) applied per sensor -----------------------------
    # first layer (in=2): VPU outer products; then flatten (TB,S,H1)->(TB*S,H1)
    # so the middle layers are single large 2-D MXU matmuls.
    b2w1 = b2w1_ref[...]                                     # (2, H1) f32
    h = (att2_0[:, :, None] * b2w1[0:1] + att2_1[:, :, None] * b2w1[1:2]
         + b2b1_ref[...])                                    # (TB, S, H1)
    h = h.reshape(tb * s, H1)
    h = jnp.tanh(_mm(h, b2w2_ref, b2b2_ref))
    h = jnp.tanh(_mm(h, b2w3_ref, b2b3_ref))
    h = h.reshape(tb, s, H3)
    # last layer (out=1): lane-axis multiply-reduce against the transposed weight row.
    branch2 = jnp.sum(h * b2w4t_ref[...], axis=-1) + b2b4_ref[0, 0]   # (TB, S)

    # ---- trunk: FCL(2 -> S) on y ---------------------------------------------
    y = y_ref[...]
    tw1 = tw1_ref[...]                                       # (2, H1) f32
    h = y[:, 0:1] * tw1[0:1] + y[:, 1:2] * tw1[1:2] + tb1_ref[...]    # (TB, H1)
    h = jnp.tanh(_mm(h, tw2_ref, tb2_ref))
    h = jnp.tanh(_mm(h, tw3_ref, tb3_ref))
    trunk = _mm(h, tw4_ref, tb4_ref)                         # (TB, S)

    # lane-dense output block: (1, 1, TB)
    out_ref[0, 0, :] = jnp.sum(branch1 * branch2 * trunk, axis=-1)


# ----------------------------------------------------------------------------
# wrapper helpers: VMEM budgeting / tiling
# ----------------------------------------------------------------------------
def _const_idx(i):
    return (0, 0)


def _weight_spec(shape):
    # Resident weights: constant index map; single-buffered (fetched once).
    try:
        return pl.BlockSpec(shape, _const_idx, pipeline_mode=pl.Buffered(1))
    except TypeError:  # pipeline_mode unavailable -> fall back to default buffering
        return pl.BlockSpec(shape, _const_idx)


def _tpu_vmem_capacity():
    try:
        cap = getattr(pltpu.get_tpu_info(), "vmem_capacity_bytes", None)
        if cap:
            return int(cap)
    except Exception:
        pass
    return 64 * 1024 * 1024          # conservative (v7x-sized) fallback


def _pick_key_chunk(s_pad):
    return min(s_pad, 256)


def _pick_batch_tile(batch, s_pad, key_chunk, weight_bytes, vmem_limit):
    """Largest multiple-of-8 batch tile whose activations fit the VMEM budget."""
    budget = max(int((vmem_limit - weight_bytes) * 0.55), 2 << 20)
    per_row = 4 * (2 * (4 * s_pad + 4)                 # double-buffered data blocks
                   + 2 * s_pad * key_chunk             # per-chunk score tensors (a1+a2)
                   + s_pad * (H1 + H2 + H3)            # branch2 activations
                   + 12 * s_pad + 2 * H1)              # misc (TB,S)/(TB,H1) temporaries
    tile = budget // per_row
    tile = (tile // 8) * 8
    b_pad8 = _round_up(batch, 8)
    tile = min(max(tile, 8), 1024, b_pad8)
    # keep >= 2 grid steps when the batch allows it (v7x megacore; cheap elsewhere)
    if tile >= b_pad8 and b_pad8 >= 16:
        tile = max(8, (b_pad8 // 2 // 8) * 8)
    # TODO(synk): for extreme f_shape where even tb=8 overflows, shrink key_chunk.
    return tile


def _cost_estimate(batch, s):
    mid = H1 * H2 + H2 * H3
    flops = 2 * batch * (s * H1 + mid + H3 * s)            # branch1
    flops += 2 * batch * (2 * H1 + mid + H3 * s)           # trunk
    flops += 2 * batch * s * (2 * H1 + mid + H3)           # branch2 (per sensor)
    flops += 24 * batch * s * s                            # attention scores / online softmax
    transcendentals = 2 * batch * s * s + batch * (H2 + H3) * (s + 2) + 2 * batch * s
    weight_bytes = 4 * (3 * mid + (s + 6) * H1 + 3 * (H1 + H2 + H3)
                        + 2 * H3 * s + H3 + 2 * s + 16)
    io_bytes = 4 * batch * (4 * s + 3)
    return pl.CostEstimate(flops=int(flops), transcendentals=int(transcendentals),
                           bytes_accessed=int(weight_bytes + io_bytes))


# ----------------------------------------------------------------------------
# forward wrapper: batch-tiled grid, weights resident, scalars in SMEM
# ----------------------------------------------------------------------------
def deeponet_f_forward(y, f, dom, mask, smem_params, vmem_params, *,
                       batch_tile=None, key_chunk=None, vmem_limit_bytes=None):
    B, S = f.shape
    s_pad = _round_up(S, 8)
    assert vmem_params[0].shape[0] == s_pad, "params were prepared for a different f_shape"
    if s_pad != S:
        # zero-padded sensors carry mask=0 and zero-padded weight rows/cols, so they
        # are a mathematical no-op (except for fully-masked rows, see reference note).
        ps = s_pad - S
        f = jnp.pad(f, ((0, 0), (0, ps)))
        dom = jnp.pad(dom, ((0, 0), (0, ps), (0, 0)))
        mask = jnp.pad(mask, ((0, 0), (0, ps)))

    kc = key_chunk if key_chunk is not None else _pick_key_chunk(s_pad)
    cap = _tpu_vmem_capacity()
    # generation-aware: ~48 MiB on v7x (64 MiB physical), ~96-100 MiB on v5e/v6e (128 MiB)
    limit = vmem_limit_bytes if vmem_limit_bytes is not None else min(
        (cap // 4) * 3, 100 * 1024 * 1024)
    wbytes = sum(int(p.size) * p.dtype.itemsize for p in vmem_params)
    tb = batch_tile if batch_tile is not None else _pick_batch_tile(B, s_pad, kc, wbytes, limit)

    b_pad = _round_up(B, tb)
    if b_pad != B:
        pb = b_pad - B
        y = jnp.pad(y, ((0, pb), (0, 0)))
        f = jnp.pad(f, ((0, pb), (0, 0)))
        dom = jnp.pad(dom, ((0, pb), (0, 0), (0, 0)))
        mask = jnp.pad(mask, ((0, pb), (0, 0)))
    dom0 = dom[..., 0]           # coordinate-major: lane axis carries S, not 2
    dom1 = dom[..., 1]
    n_tiles = b_pad // tb

    data_specs = [
        pl.BlockSpec((tb, 2), lambda i: (i, 0)),
        pl.BlockSpec((tb, s_pad), lambda i: (i, 0)),
        pl.BlockSpec((tb, s_pad), lambda i: (i, 0)),
        pl.BlockSpec((tb, s_pad), lambda i: (i, 0)),
        pl.BlockSpec((tb, s_pad), lambda i: (i, 0)),
    ]
    smem_specs = [pl.BlockSpec(memory_space=pltpu.MemorySpace.SMEM)] * len(smem_params)
    weight_specs = [_weight_spec(w.shape) for w in vmem_params]

    out = pl.pallas_call(
        functools.partial(deeponet_f_kernel, key_chunk=kc),
        out_shape=jax.ShapeDtypeStruct((n_tiles, 1, tb), jnp.float32),
        grid=(n_tiles,),
        in_specs=data_specs + smem_specs + weight_specs,
        out_specs=pl.BlockSpec((1, 1, tb), lambda i: (i, 0, 0)),
        compiler_params=pltpu.CompilerParams(
            dimension_semantics=("parallel",),
            vmem_limit_bytes=int(limit)),
        cost_estimate=_cost_estimate(b_pad, s_pad),
    )(y, f, dom0, dom1, mask, *smem_params, *vmem_params)
    return out.reshape(b_pad)[:B]       # (B,), matching torch.sum(..., dim=-1)


# ----------------------------------------------------------------------------
# parameter init (PyTorch-Linear-style uniform bounds) + kernel-layout prep
# ----------------------------------------------------------------------------
def _init_linear(key, in_f, out_f):
    kw, kb = jax.random.split(key)
    bound = 1.0 / float(in_f) ** 0.5
    w = jax.random.uniform(kw, (in_f, out_f), jnp.float32, -bound, bound)
    b = jax.random.uniform(kb, (1, out_f), jnp.float32, -bound, bound)
    return w, b


def _init_fcl(key, in_f, out_f):
    k1, k2, k3, k4 = jax.random.split(key, 4)
    return (*_init_linear(k1, in_f, 200), *_init_linear(k2, 200, 100),
            *_init_linear(k3, 100, 80), *_init_linear(k4, 80, out_f))


def _init_attention(key, in_dim):
    kq, kk = jax.random.split(key)
    wq, bq = _init_linear(kq, in_dim, 1)
    wk, bk = _init_linear(kk, in_dim, 1)
    return wq.T, bq, wk.T, bk            # q/k weights stored as (1, in_dim) rows


def init_deeponet_params(key, f_shape):
    ka1, ka2, kb1, kb2, kt = jax.random.split(key, 5)
    return {
        "att1": _init_attention(ka1, 1),
        "att2": _init_attention(ka2, 2),
        "branch1": _init_fcl(kb1, f_shape, f_shape),
        "branch2": _init_fcl(kb2, 2, 1),
        "trunk": _init_fcl(kt, 2, f_shape),
    }


def _pad2(a, rows, cols):
    return jnp.pad(a, ((0, rows - a.shape[0]), (0, cols - a.shape[1])))


def _pad_fcl(p, in_f, out_f, mm_dtype, mm_first, mm_last):
    w1, b1, w2, b2, w3, b3, w4, b4 = p
    f32 = jnp.float32
    return (_pad2(w1, in_f, H1).astype(mm_dtype if mm_first else f32), _pad2(b1, 1, H1),
            _pad2(w2, H1, H2).astype(mm_dtype), _pad2(b2, 1, H2),
            _pad2(w3, H2, H3).astype(mm_dtype), _pad2(b3, 1, H3),
            _pad2(w4, H3, out_f).astype(mm_dtype if mm_last else f32), _pad2(b4, 1, out_f))


def prepare_params(params, f_shape, *, use_bf16=False):
    """Zero-pad FCL hidden widths to 256/128/128, pad f_shape dims to a multiple of 8,
    split scalar attention params (SMEM) from matrix weights (VMEM), and optionally
    cast the MXU-path weights to bf16 (f32 accumulation stays in the kernel)."""
    s_pad = _round_up(f_shape, 8)
    mm = jnp.bfloat16 if use_bf16 else jnp.float32
    smem = tuple(params["att1"]) + tuple(params["att2"]) + (params["branch2"][7],)
    b1 = _pad_fcl(params["branch1"], s_pad, s_pad, mm, True, True)
    b2 = _pad_fcl(params["branch2"], 2, 1, mm, False, False)
    b2 = b2[:6] + (b2[6].T,)             # final weight -> (1, H3) row; its bias is in SMEM
    tr = _pad_fcl(params["trunk"], 2, s_pad, mm, False, True)
    return smem, b1 + b2 + tr


# ----------------------------------------------------------------------------
# pure-JAX reference (identical math, unpadded weights, no Pallas)
# ----------------------------------------------------------------------------
def _fcl_ref(x, w1, b1, w2, b2, w3, b3, w4, b4):
    h = x @ w1 + b1
    h = jnp.tanh(h @ w2 + b2)
    h = jnp.tanh(h @ w3 + b3)
    return h @ w4 + b4


def _masked_softmax_ref(scores, mask):
    s = jnp.where(mask[:, None, :] > 0.5, scores, jnp.float32(-1e9))
    e = jnp.exp(s - jnp.max(s, axis=-1, keepdims=True))
    return e / jnp.sum(e, axis=-1, keepdims=True)


def deeponet_f_reference(y, f, dom, mask, params):
    a1_wq, a1_bq, a1_wk, a1_bk = params["att1"]
    a2_wq, a2_bq, a2_wk, a2_bk = params["att2"]
    B, S = f.shape

    q1 = f * a1_wq[0, 0] + a1_bq[0, 0]
    k1 = f * a1_wk[0, 0] + a1_bk[0, 0]
    a1 = _masked_softmax_ref(q1[:, :, None] * k1[:, None, :], mask)
    att1 = jnp.sum(a1 * f[:, None, :], axis=-1)

    q2 = dom[..., 0] * a2_wq[0, 0] + dom[..., 1] * a2_wq[0, 1] + a2_bq[0, 0]
    k2 = dom[..., 0] * a2_wk[0, 0] + dom[..., 1] * a2_wk[0, 1] + a2_bk[0, 0]
    a2 = _masked_softmax_ref(q2[:, :, None] * k2[:, None, :], mask)
    att2 = jnp.einsum('bij,bjc->bic', a2, dom)

    branch1 = _fcl_ref(att1, *params["branch1"])
    branch2 = _fcl_ref(att2.reshape(B * S, 2), *params["branch2"]).reshape(B, S)
    trunk = _fcl_ref(y, *params["trunk"])
    # bias1(cat(...)) in the PyTorch forward is dead code -> omitted.
    return jnp.sum(branch1 * branch2 * trunk, axis=-1)


# ----------------------------------------------------------------------------
if __name__ == "__main__":
    B, S = 4, 16                                 # batch, f_shape

    key = jax.random.PRNGKey(0)
    ky, kf, kd, km = jax.random.split(key, 4)
    y = jax.random.normal(ky, (B, 2), jnp.float32)
    f = jax.random.normal(kf, (B, S), jnp.float32)
    dom = jax.random.normal(kd, (B, S, 2), jnp.float32)
    mask = (jax.random.uniform(km, (B, S)) > 0.2).astype(jnp.float32)
    mask = mask.at[:, 0].set(1.0)                # keep at least one valid sensor

    params = init_deeponet_params(jax.random.PRNGKey(42), S)
    ref = deeponet_f_reference(y, f, dom, mask, params)

    # f32 MXU path: strict check against the pure-JAX reference
    smem_p, vmem_p = prepare_params(params, S, use_bf16=False)
    out = jax.block_until_ready(deeponet_f_forward(y, f, dom, mask, smem_p, vmem_p))
    assert out.shape == (B,)
    assert bool(jnp.all(jnp.isfinite(out)))
    assert bool(jnp.allclose(out, ref, rtol=1e-3, atol=1e-3)), (out, ref)

    # optional bf16 MXU path (f32 accumulation), validated at a looser tolerance
    smem_b, vmem_b = prepare_params(params, S, use_bf16=True)
    out16 = jax.block_until_ready(deeponet_f_forward(y, f, dom, mask, smem_b, vmem_b))
    assert out16.shape == (B,)
    assert bool(jnp.all(jnp.isfinite(out16)))
    assert bool(jnp.allclose(out16, ref, rtol=1e-1, atol=5e-2)), (out16, ref)

    print("KERNEL_OK")
</pallas_src>

<mosaic_0001>
module attributes {stable_mosaic.version = 11 : i64} {
  func.func @deeponet_f_kernel(%arg0: i32, %arg1: memref<8x2xf32, #tpu.memory_space<vmem>>, %arg2: memref<8x16xf32, #tpu.memory_space<vmem>>, %arg3: memref<8x16xf32, #tpu.memory_space<vmem>>, %arg4: memref<8x16xf32, #tpu.memory_space<vmem>>, %arg5: memref<8x16xf32, #tpu.memory_space<vmem>>, %arg6: memref<1x1xf32, #tpu.memory_space<smem>>, %arg7: memref<1x1xf32, #tpu.memory_space<smem>>, %arg8: memref<1x1xf32, #tpu.memory_space<smem>>, %arg9: memref<1x1xf32, #tpu.memory_space<smem>>, %arg10: memref<1x2xf32, #tpu.memory_space<smem>>, %arg11: memref<1x1xf32, #tpu.memory_space<smem>>, %arg12: memref<1x2xf32, #tpu.memory_space<smem>>, %arg13: memref<1x1xf32, #tpu.memory_space<smem>>, %arg14: memref<1x1xf32, #tpu.memory_space<smem>>, %arg15: memref<16x256xf32, #tpu.memory_space<vmem>>, %arg16: memref<1x256xf32, #tpu.memory_space<vmem>>, %arg17: memref<256x128xf32, #tpu.memory_space<vmem>>, %arg18: memref<1x128xf32, #tpu.memory_space<vmem>>, %arg19: memref<128x128xf32, #tpu.memory_space<vmem>>, %arg20: memref<1x128xf32, #tpu.memory_space<vmem>>, %arg21: memref<128x16xf32, #tpu.memory_space<vmem>>, %arg22: memref<1x16xf32, #tpu.memory_space<vmem>>, %arg23: memref<2x256xf32, #tpu.memory_space<vmem>>, %arg24: memref<1x256xf32, #tpu.memory_space<vmem>>, %arg25: memref<256x128xf32, #tpu.memory_space<vmem>>, %arg26: memref<1x128xf32, #tpu.memory_space<vmem>>, %arg27: memref<128x128xf32, #tpu.memory_space<vmem>>, %arg28: memref<1x128xf32, #tpu.memory_space<vmem>>, %arg29: memref<1x128xf32, #tpu.memory_space<vmem>>, %arg30: memref<2x256xf32, #tpu.memory_space<vmem>>, %arg31: memref<1x256xf32, #tpu.memory_space<vmem>>, %arg32: memref<256x128xf32, #tpu.memory_space<vmem>>, %arg33: memref<1x128xf32, #tpu.memory_space<vmem>>, %arg34: memref<128x128xf32, #tpu.memory_space<vmem>>, %arg35: memref<1x128xf32, #tpu.memory_space<vmem>>, %arg36: memref<128x16xf32, #tpu.memory_space<vmem>>, %arg37: memref<1x16xf32, #tpu.memory_space<vmem>>, %arg38: memref<1x1x8xf32, #tpu.memory_space<vmem>>) attributes {dimension_semantics = [#tpu.dimension_semantics<parallel>], iteration_bounds = array<i64: 1>, scalar_prefetch = 0 : i64, scratch_operands = 0 : i64, tpu.core_type = #tpu.core_type<tc>, window_params = [{transform_indices = @transform_0, window_bounds = array<i64: 8, 2>}, {transform_indices = @transform_1, window_bounds = array<i64: 8, 16>}, {transform_indices = @transform_2, window_bounds = array<i64: 8, 16>}, {transform_indices = @transform_3, window_bounds = array<i64: 8, 16>}, {transform_indices = @transform_4, window_bounds = array<i64: 8, 16>}, {transform_indices = @transform_5, window_bounds = array<i64: 1, 1>}, {transform_indices = @transform_6, window_bounds = array<i64: 1, 1>}, {transform_indices = @transform_7, window_bounds = array<i64: 1, 1>}, {transform_indices = @transform_8, window_bounds = array<i64: 1, 1>}, {transform_indices = @transform_9, window_bounds = array<i64: 1, 2>}, {transform_indices = @transform_10, window_bounds = array<i64: 1, 1>}, {transform_indices = @transform_11, window_bounds = array<i64: 1, 2>}, {transform_indices = @transform_12, window_bounds = array<i64: 1, 1>}, {transform_indices = @transform_13, window_bounds = array<i64: 1, 1>}, {pipeline_mode = #tpu.pipeline_mode<synchronous>, transform_indices = @transform_14, window_bounds = array<i64: 16, 256>}, {pipeline_mode = #tpu.pipeline_mode<synchronous>, transform_indices = @transform_15, window_bounds = array<i64: 1, 256>}, {pipeline_mode = #tpu.pipeline_mode<synchronous>, transform_indices = @transform_16, window_bounds = array<i64: 256, 128>}, {pipeline_mode = #tpu.pipeline_mode<synchronous>, transform_indices = @transform_17, window_bounds = array<i64: 1, 128>}, {pipeline_mode = #tpu.pipeline_mode<synchronous>, transform_indices = @transform_18, window_bounds = array<i64: 128, 128>}, {pipeline_mode = #tpu.pipeline_mode<synchronous>, transform_indices = @transform_19, window_bounds = array<i64: 1, 128>}, {pipeline_mode = #tpu.pipeline_mode<synchronous>, transform_indices = @transform_20, window_bounds = array<i64: 128, 16>}, {pipeline_mode = #tpu.pipeline_mode<synchronous>, transform_indices = @transform_21, window_bounds = array<i64: 1, 16>}, {pipeline_mode = #tpu.pipeline_mode<synchronous>, transform_indices = @transform_22, window_bounds = array<i64: 2, 256>}, {pipeline_mode = #tpu.pipeline_mode<synchronous>, transform_indices = @transform_23, window_bounds = array<i64: 1, 256>}, {pipeline_mode = #tpu.pipeline_mode<synchronous>, transform_indices = @transform_24, window_bounds = array<i64: 256, 128>}, {pipeline_mode = #tpu.pipeline_mode<synchronous>, transform_indices = @transform_25, window_bounds = array<i64: 1, 128>}, {pipeline_mode = #tpu.pipeline_mode<synchronous>, transform_indices = @transform_26, window_bounds = array<i64: 128, 128>}, {pipeline_mode = #tpu.pipeline_mode<synchronous>, transform_indices = @transform_27, window_bounds = array<i64: 1, 128>}, {pipeline_mode = #tpu.pipeline_mode<synchronous>, transform_indices = @transform_28, window_bounds = array<i64: 1, 128>}, {pipeline_mode = #tpu.pipeline_mode<synchronous>, transform_indices = @transform_29, window_bounds = array<i64: 2, 256>}, {pipeline_mode = #tpu.pipeline_mode<synchronous>, transform_indices = @transform_30, window_bounds = array<i64: 1, 256>}, {pipeline_mode = #tpu.pipeline_mode<synchronous>, transform_indices = @transform_31, window_bounds = array<i64: 256, 128>}, {pipeline_mode = #tpu.pipeline_mode<synchronous>, transform_indices = @transform_32, window_bounds = array<i64: 1, 128>}, {pipeline_mode = #tpu.pipeline_mode<synchronous>, transform_indices = @transform_33, window_bounds = array<i64: 128, 128>}, {pipeline_mode = #tpu.pipeline_mode<synchronous>, transform_indices = @transform_34, window_bounds = array<i64: 1, 128>}, {pipeline_mode = #tpu.pipeline_mode<synchronous>, transform_indices = @transform_35, window_bounds = array<i64: 128, 16>}, {pipeline_mode = #tpu.pipeline_mode<synchronous>, transform_indices = @transform_36, window_bounds = array<i64: 1, 16>}, {transform_indices = @transform_37, window_bounds = array<i64: 1, 1, 8>}]} {
    %c0 = arith.constant 0 : index
    %c0_0 = arith.constant 0 : index
    %0 = vector.load %arg2[%c0, %c0_0] : memref<8x16xf32, #tpu.memory_space<vmem>>, vector<8x16xf32>
    %c0_1 = arith.constant 0 : index
    %c0_2 = arith.constant 0 : index
    %1 = vector.load %arg3[%c0_1, %c0_2] : memref<8x16xf32, #tpu.memory_space<vmem>>, vector<8x16xf32>
    %c0_3 = arith.constant 0 : index
    %c0_4 = arith.constant 0 : index
    %2 = vector.load %arg4[%c0_3, %c0_4] : memref<8x16xf32, #tpu.memory_space<vmem>>, vector<8x16xf32>
    %c0_5 = arith.constant 0 : index
    %c0_6 = arith.constant 0 : index
    %3 = vector.load %arg5[%c0_5, %c0_6] : memref<8x16xf32, #tpu.memory_space<vmem>>, vector<8x16xf32>
    %c0_7 = arith.constant 0 : index
    %c0_8 = arith.constant 0 : index
    %4 = memref.load %arg6[%c0_7, %c0_8] : memref<1x1xf32, #tpu.memory_space<smem>>
    %c0_9 = arith.constant 0 : index
    %c0_10 = arith.constant 0 : index
    %5 = memref.load %arg7[%c0_9, %c0_10] : memref<1x1xf32, #tpu.memory_space<smem>>
    %c0_11 = arith.constant 0 : index
    %c0_12 = arith.constant 0 : index
    %6 = memref.load %arg8[%c0_11, %c0_12] : memref<1x1xf32, #tpu.memory_space<smem>>
    %c0_13 = arith.constant 0 : index
    %c0_14 = arith.constant 0 : index
    %7 = memref.load %arg9[%c0_13, %c0_14] : memref<1x1xf32, #tpu.memory_space<smem>>
    %c0_15 = arith.constant 0 : index
    %c0_16 = arith.constant 0 : index
    %8 = memref.load %arg10[%c0_15, %c0_16] : memref<1x2xf32, #tpu.memory_space<smem>>
    %c0_17 = arith.constant 0 : index
    %c1 = arith.constant 1 : index
    %9 = memref.load %arg10[%c0_17, %c1] : memref<1x2xf32, #tpu.memory_space<smem>>
    %c0_18 = arith.constant 0 : index
    %c0_19 = arith.constant 0 : index
    %10 = memref.load %arg11[%c0_18, %c0_19] : memref<1x1xf32, #tpu.memory_space<smem>>
    %c0_20 = arith.constant 0 : index
    %c0_21 = arith.constant 0 : index
    %11 = memref.load %arg12[%c0_20, %c0_21] : memref<1x2xf32, #tpu.memory_space<smem>>
    %c0_22 = arith.constant 0 : index
    %c1_23 = arith.constant 1 : index
    %12 = memref.load %arg12[%c0_22, %c1_23] : memref<1x2xf32, #tpu.memory_space<smem>>
    %c0_24 = arith.constant 0 : index
    %c0_25 = arith.constant 0 : index
    %13 = memref.load %arg13[%c0_24, %c0_25] : memref<1x1xf32, #tpu.memory_space<smem>>
    %14 = vector.broadcast %4 : f32 to vector<8x16xf32>
    %15 = arith.mulf %0, %14 : vector<8x16xf32>
    %16 = vector.broadcast %5 : f32 to vector<8x16xf32>
    %17 = arith.addf %15, %16 : vector<8x16xf32>
    %18 = vector.broadcast %8 : f32 to vector<8x16xf32>
    %19 = arith.mulf %1, %18 : vector<8x16xf32>
    %20 = vector.broadcast %9 : f32 to vector<8x16xf32>
    %21 = arith.mulf %2, %20 : vector<8x16xf32>
    %22 = arith.addf %19, %21 : vector<8x16xf32>
    %23 = vector.broadcast %10 : f32 to vector<8x16xf32>
    %24 = arith.addf %22, %23 : vector<8x16xf32>
    %cst = arith.constant 0xFF800000 : f32
    %25 = vector.broadcast %cst : f32 to vector<8x16xf32>
    %cst_26 = arith.constant 0.000000e+00 : f32
    %26 = vector.broadcast %cst_26 : f32 to vector<8x16xf32>
    %cst_27 = arith.constant 0.000000e+00 : f32
    %27 = vector.broadcast %cst_27 : f32 to vector<8x16xf32>
    %cst_28 = arith.constant 0xFF800000 : f32
    %28 = vector.broadcast %cst_28 : f32 to vector<8x16xf32>
    %cst_29 = arith.constant 0.000000e+00 : f32
    %29 = vector.broadcast %cst_29 : f32 to vector<8x16xf32>
    %cst_30 = arith.constant 0.000000e+00 : f32
    %30 = vector.broadcast %cst_30 : f32 to vector<8x16xf32>
    %cst_31 = arith.constant 0.000000e+00 : f32
    %31 = vector.broadcast %cst_31 : f32 to vector<8x16xf32>
    %cst_32 = arith.constant 5.000000e-01 : f32
    %32 = vector.broadcast %cst_32 : f32 to vector<8x16xf32>
    %33 = arith.cmpf ogt, %3, %32 : vector<8x16xf32>
    %34 = vector.broadcast %6 : f32 to vector<8x16xf32>
    %35 = arith.mulf %0, %34 : vector<8x16xf32>
    %36 = vector.broadcast %7 : f32 to vector<8x16xf32>
    %37 = arith.addf %35, %36 : vector<8x16xf32>
    %38 = vector.shape_cast %33 : vector<8x16xi1> to vector<8x1x16xi1>
    %39 = vector.shape_cast %17 : vector<8x16xf32> to vector<8x16x1xf32>
    %40 = vector.shape_cast %37 : vector<8x16xf32> to vector<8x1x16xf32>
    %41 = vector.broadcast %39 : vector<8x16x1xf32> to vector<8x16x16xf32>
    %42 = vector.broadcast %40 : vector<8x1x16xf32> to vector<8x16x16xf32>
    %43 = arith.mulf %41, %42 : vector<8x16x16xf32>
    %cst_33 = arith.constant -1.000000e+09 : f32
    %44 = vector.shape_cast %38 : vector<8x1x16xi1> to vector<8x1x16xi1>
    %45 = vector.broadcast %44 : vector<8x1x16xi1> to vector<8x16x16xi1>
    %46 = vector.broadcast %cst_33 : f32 to vector<8x16x16xf32>
    %47 = arith.select %45, %43, %46 : vector<8x16x16xi1>, vector<8x16x16xf32>
    %cst_34 = arith.constant dense<0xFF800000> : vector<8x16xf32>
    %48 = vector.multi_reduction <maximumf>, %47, %cst_34 [2] : vector<8x16x16xf32> to vector<8x16xf32>
    %49 = arith.maximumf %25, %48 : vector<8x16xf32>
    %50 = arith.subf %25, %49 : vector<8x16xf32>
    %51 = math.exp %50 : vector<8x16xf32>
    %52 = vector.shape_cast %49 : vector<8x16xf32> to vector<8x16x1xf32>
    %53 = vector.broadcast %52 : vector<8x16x1xf32> to vector<8x16x16xf32>
    %54 = arith.subf %47, %53 : vector<8x16x16xf32>
    %55 = math.exp %54 : vector<8x16x16xf32>
    %56 = arith.mulf %51, %26 : vector<8x16xf32>
    %cst_35 = arith.constant dense<0.000000e+00> : vector<8x16xf32>
    %57 = vector.multi_reduction <add>, %55, %cst_35 [2] : vector<8x16x16xf32> to vector<8x16xf32>
    %58 = arith.addf %56, %57 : vector<8x16xf32>
    %59 = arith.mulf %51, %27 : vector<8x16xf32>
    %60 = vector.shape_cast %0 : vector<8x16xf32> to vector<8x1x16xf32>
    %61 = vector.broadcast %60 : vector<8x1x16xf32> to vector<8x16x16xf32>
    %62 = arith.mulf %55, %61 : vector<8x16x16xf32>
    %cst_36 = arith.constant dense<0.000000e+00> : vector<8x16xf32>
    %63 = vector.multi_reduction <add>, %62, %cst_36 [2] : vector<8x16x16xf32> to vector<8x16xf32>
    %64 = arith.addf %59, %63 : vector<8x16xf32>
    %65 = vector.broadcast %11 : f32 to vector<8x16xf32>
    %66 = arith.mulf %1, %65 : vector<8x16xf32>
    %67 = vector.broadcast %12 : f32 to vector<8x16xf32>
    %68 = arith.mulf %2, %67 : vector<8x16xf32>
    %69 = arith.addf %66, %68 : vector<8x16xf32>
    %70 = vector.broadcast %13 : f32 to vector<8x16xf32>
    %71 = arith.addf %69, %70 : vector<8x16xf32>
    %72 = vector.shape_cast %33 : vector<8x16xi1> to vector<8x1x16xi1>
    %73 = vector.shape_cast %24 : vector<8x16xf32> to vector<8x16x1xf32>
    %74 = vector.shape_cast %71 : vector<8x16xf32> to vector<8x1x16xf32>
    %75 = vector.broadcast %73 : vector<8x16x1xf32> to vector<8x16x16xf32>
    %76 = vector.broadcast %74 : vector<8x1x16xf32> to vector<8x16x16xf32>
    %77 = arith.mulf %75, %76 : vector<8x16x16xf32>
    %cst_37 = arith.constant -1.000000e+09 : f32
    %78 = vector.shape_cast %72 : vector<8x1x16xi1> to vector<8x1x16xi1>
    %79 = vector.broadcast %78 : vector<8x1x16xi1> to vector<8x16x16xi1>
    %80 = vector.broadcast %cst_37 : f32 to vector<8x16x16xf32>
    %81 = arith.select %79, %77, %80 : vector<8x16x16xi1>, vector<8x16x16xf32>
    %cst_38 = arith.constant dense<0xFF800000> : vector<8x16xf32>
    %82 = vector.multi_reduction <maximumf>, %81, %cst_38 [2] : vector<8x16x16xf32> to vector<8x16xf32>
    %83 = arith.maximumf %28, %82 : vector<8x16xf32>
    %84 = arith.subf %28, %83 : vector<8x16xf32>
    %85 = math.exp %84 : vector<8x16xf32>
    %86 = vector.shape_cast %83 : vector<8x16xf32> to vector<8x16x1xf32>
    %87 = vector.broadcast %86 : vector<8x16x1xf32> to vector<8x16x16xf32>
    %88 = arith.subf %81, %87 : vector<8x16x16xf32>
    %89 = math.exp %88 : vector<8x16x16xf32>
    %90 = arith.mulf %85, %29 : vector<8x16xf32>
    %cst_39 = arith.constant dense<0.000000e+00> : vector<8x16xf32>
    %91 = vector.multi_reduction <add>, %89, %cst_39 [2] : vector<8x16x16xf32> to vector<8x16xf32>
    %92 = arith.addf %90, %91 : vector<8x16xf32>
    %93 = arith.mulf %85, %30 : vector<8x16xf32>
    %94 = vector.shape_cast %1 : vector<8x16xf32> to vector<8x1x16xf32>
    %95 = vector.broadcast %94 : vector<8x1x16xf32> to vector<8x16x16xf32>
    %96 = arith.mulf %89, %95 : vector<8x16x16xf32>
    %cst_40 = arith.constant dense<0.000000e+00> : vector<8x16xf32>
    %97 = vector.multi_reduction <add>, %96, %cst_40 [2] : vector<8x16x16xf32> to vector<8x16xf32>
    %98 = arith.addf %93, %97 : vector<8x16xf32>
    %99 = arith.mulf %85, %31 : vector<8x16xf32>
    %100 = vector.shape_cast %2 : vector<8x16xf32> to vector<8x1x16xf32>
    %101 = vector.broadcast %100 : vector<8x1x16xf32> to vector<8x16x16xf32>
    %102 = arith.mulf %89, %101 : vector<8x16x16xf32>
    %cst_41 = arith.constant dense<0.000000e+00> : vector<8x16xf32>
    %103 = vector.multi_reduction <add>, %102, %cst_41 [2] : vector<8x16x16xf32> to vector<8x16xf32>
    %104 = arith.addf %99, %103 : vector<8x16xf32>
    %105 = tpu.reciprocal %58 {approx = true} : vector<8x16xf32> -> vector<8x16xf32>
    %106 = arith.mulf %58, %105 : vector<8x16xf32>
    %cst_42 = arith.constant 2.000000e+00 : f32
    %107 = vector.broadcast %cst_42 : f32 to vector<8x16xf32>
    %108 = arith.subf %107, %106 : vector<8x16xf32>
    %109 = arith.mulf %105, %108 : vector<8x16xf32>
    %110 = arith.mulf %64, %109 : vector<8x16xf32>
    %111 = tpu.reciprocal %92 {approx = true} : vector<8x16xf32> -> vector<8x16xf32>
    %112 = arith.mulf %92, %111 : vector<8x16xf32>
    %cst_43 = arith.constant 2.000000e+00 : f32
    %113 = vector.broadcast %cst_43 : f32 to vector<8x16xf32>
    %114 = arith.subf %113, %112 : vector<8x16xf32>
    %115 = arith.mulf %111, %114 : vector<8x16xf32>
    %116 = arith.mulf %98, %115 : vector<8x16xf32>
    %117 = tpu.reciprocal %92 {approx = true} : vector<8x16xf32> -> vector<8x16xf32>
    %118 = arith.mulf %92, %117 : vector<8x16xf32>
    %cst_44 = arith.constant 2.000000e+00 : f32
    %119 = vector.broadcast %cst_44 : f32 to vector<8x16xf32>
    %120 = arith.subf %119, %118 : vector<8x16xf32>
    %121 = arith.mulf %117, %120 : vector<8x16xf32>
    %122 = arith.mulf %104, %121 : vector<8x16xf32>
    %c0_45 = arith.constant 0 : index
    %c0_46 = arith.constant 0 : index
    %123 = vector.load %arg15[%c0_45, %c0_46] : memref<16x256xf32, #tpu.memory_space<vmem>>, vector<16x256xf32>
    %cst_47 = arith.constant dense<0.000000e+00> : vector<8x256xf32>
    %124 = tpu.matmul %110, %123, %cst_47 {dimension_numbers = #tpu.dot_dimension_numbers<[1], [0], [0], [1], [0, 0, 1, 1], [], []>} : vector<8x16xf32>, vector<16x256xf32>, vector<8x256xf32> -> vector<8x256xf32>
    %c0_48 = arith.constant 0 : index
    %c0_49 = arith.constant 0 : index
    %125 = vector.load %arg16[%c0_48, %c0_49] : memref<1x256xf32, #tpu.memory_space<vmem>>, vector<1x256xf32>
    %126 = vector.broadcast %125 : vector<1x256xf32> to vector<8x256xf32>
    %127 = arith.addf %124, %126 : vector<8x256xf32>
    %c0_50 = arith.constant 0 : index
    %c0_51 = arith.constant 0 : index
    %128 = vector.load %arg17[%c0_50, %c0_51] : memref<256x128xf32, #tpu.memory_space<vmem>>, vector<256x128xf32>
    %cst_52 = arith.constant dense<0.000000e+00> : vector<8x128xf32>
    %129 = tpu.matmul %127, %128, %cst_52 {dimension_numbers = #tpu.dot_dimension_numbers<[1], [0], [0], [1], [0, 0, 1, 1], [], []>} : vector<8x256xf32>, vector<256x128xf32>, vector<8x128xf32> -> vector<8x128xf32>
    %c0_53 = arith.constant 0 : index
    %c0_54 = arith.constant 0 : index
    %130 = vector.load %arg18[%c0_53, %c0_54] : memref<1x128xf32, #tpu.memory_space<vmem>>, vector<1x128xf32>
    %131 = vector.broadcast %130 : vector<1x128xf32> to vector<8x128xf32>
    %132 = arith.addf %129, %131 : vector<8x128xf32>
    %133 = math.tanh %132 : vector<8x128xf32>
    %c0_55 = arith.constant 0 : index
    %c0_56 = arith.constant 0 : index
    %134 = vector.load %arg19[%c0_55, %c0_56] : memref<128x128xf32, #tpu.memory_space<vmem>>, vector<128x128xf32>
    %cst_57 = arith.constant dense<0.000000e+00> : vector<8x128xf32>
    %135 = tpu.matmul %133, %134, %cst_57 {dimension_numbers = #tpu.dot_dimension_numbers<[1], [0], [0], [1], [0, 0, 1, 1], [], []>} : vector<8x128xf32>, vector<128x128xf32>, vector<8x128xf32> -> vector<8x128xf32>
    %c0_58 = arith.constant 0 : index
    %c0_59 = arith.constant 0 : index
    %136 = vector.load %arg20[%c0_58, %c0_59] : memref<1x128xf32, #tpu.memory_space<vmem>>, vector<1x128xf32>
    %137 = vector.broadcast %136 : vector<1x128xf32> to vector<8x128xf32>
    %138 = arith.addf %135, %137 : vector<8x128xf32>
    %139 = math.tanh %138 : vector<8x128xf32>
    %c0_60 = arith.constant 0 : index
    %c0_61 = arith.constant 0 : index
    %140 = vector.load %arg21[%c0_60, %c0_61] : memref<128x16xf32, #tpu.memory_space<vmem>>, vector<128x16xf32>
    %cst_62 = arith.constant dense<0.000000e+00> : vector<8x16xf32>
    %141 = tpu.matmul %139, %140, %cst_62 {dimension_numbers = #tpu.dot_dimension_numbers<[1], [0], [0], [1], [0, 0, 1, 1], [], []>} : vector<8x128xf32>, vector<128x16xf32>, vector<8x16xf32> -> vector<8x16xf32>
    %c0_63 = arith.constant 0 : index
    %c0_64 = arith.constant 0 : index
    %142 = vector.load %arg22[%c0_63, %c0_64] : memref<1x16xf32, #tpu.memory_space<vmem>>, vector<1x16xf32>
    %143 = vector.broadcast %142 : vector<1x16xf32> to vector<8x16xf32>
    %144 = arith.addf %141, %143 : vector<8x16xf32>
    %c0_65 = arith.constant 0 : index
    %c0_66 = arith.constant 0 : index
    %145 = vector.load %arg23[%c0_65, %c0_66] : memref<2x256xf32, #tpu.memory_space<vmem>>, vector<2x256xf32>
    %146 = vector.shape_cast %116 : vector<8x16xf32> to vector<8x16x1xf32>
    %147 = vector.extract_strided_slice %145 {offsets = [0, 0], sizes = [1, 256], strides = [1, 1]} : vector<2x256xf32> to vector<1x256xf32>
    %148 = vector.shape_cast %147 : vector<1x256xf32> to vector<1x1x256xf32>
    %149 = vector.broadcast %146 : vector<8x16x1xf32> to vector<8x16x256xf32>
    %150 = vector.broadcast %148 : vector<1x1x256xf32> to vector<8x16x256xf32>
    %151 = arith.mulf %149, %150 : vector<8x16x256xf32>
    %152 = vector.shape_cast %122 : vector<8x16xf32> to vector<8x16x1xf32>
    %153 = vector.extract_strided_slice %145 {offsets = [1, 0], sizes = [1, 256], strides = [1, 1]} : vector<2x256xf32> to vector<1x256xf32>
    %154 = vector.shape_cast %153 : vector<1x256xf32> to vector<1x1x256xf32>
    %155 = vector.broadcast %152 : vector<8x16x1xf32> to vector<8x16x256xf32>
    %156 = vector.broadcast %154 : vector<1x1x256xf32> to vector<8x16x256xf32>
    %157 = arith.mulf %155, %156 : vector<8x16x256xf32>
    %158 = arith.addf %151, %157 : vector<8x16x256xf32>
    %c0_67 = arith.constant 0 : index
    %c0_68 = arith.constant 0 : index
    %159 = vector.load %arg24[%c0_67, %c0_68] : memref<1x256xf32, #tpu.memory_space<vmem>>, vector<1x256xf32>
    %160 = vector.shape_cast %159 : vector<1x256xf32> to vector<1x1x256xf32>
    %161 = vector.broadcast %160 : vector<1x1x256xf32> to vector<8x16x256xf32>
    %162 = arith.addf %158, %161 : vector<8x16x256xf32>
    %163 = vector.shape_cast %162 : vector<8x16x256xf32> to vector<128x256xf32>
    %c0_69 = arith.constant 0 : index
    %c0_70 = arith.constant 0 : index
    %164 = vector.load %arg25[%c0_69, %c0_70] : memref<256x128xf32, #tpu.memory_space<vmem>>, vector<256x128xf32>
    %cst_71 = arith.constant dense<0.000000e+00> : vector<128x128xf32>
    %165 = tpu.matmul %163, %164, %cst_71 {dimension_numbers = #tpu.dot_dimension_numbers<[1], [0], [0], [1], [0, 0, 1, 1], [], []>} : vector<128x256xf32>, vector<256x128xf32>, vector<128x128xf32> -> vector<128x128xf32>
    %c0_72 = arith.constant 0 : index
    %c0_73 = arith.constant 0 : index
    %166 = vector.load %arg26[%c0_72, %c0_73] : memref<1x128xf32, #tpu.memory_space<vmem>>, vector<1x128xf32>
    %167 = vector.broadcast %166 : vector<1x128xf32> to vector<128x128xf32>
    %168 = arith.addf %165, %167 : vector<128x128xf32>
    %169 = math.tanh %168 : vector<128x128xf32>
    %c0_74 = arith.constant 0 : index
    %c0_75 = arith.constant 0 : index
    %170 = vector.load %arg27[%c0_74, %c0_75] : memref<128x128xf32, #tpu.memory_space<vmem>>, vector<128x128xf32>
    %cst_76 = arith.constant dense<0.000000e+00> : vector<128x128xf32>
    %171 = tpu.matmul %169, %170, %cst_76 {dimension_numbers = #tpu.dot_dimension_numbers<[1], [0], [0], [1], [0, 0, 1, 1], [], []>} : vector<128x128xf32>, vector<128x128xf32>, vector<128x128xf32> -> vector<128x128xf32>
    %c0_77 = arith.constant 0 : index
    %c0_78 = arith.constant 0 : index
    %172 = vector.load %arg28[%c0_77, %c0_78] : memref<1x128xf32, #tpu.memory_space<vmem>>, vector<1x128xf32>
    %173 = vector.broadcast %172 : vector<1x128xf32> to vector<128x128xf32>
    %174 = arith.addf %171, %173 : vector<128x128xf32>
    %175 = math.tanh %174 : vector<128x128xf32>
    %176 = vector.shape_cast %175 : vector<128x128xf32> to vector<8x16x128xf32>
    %c0_79 = arith.constant 0 : index
    %c0_80 = arith.constant 0 : index
    %177 = vector.load %arg29[%c0_79, %c0_80] : memref<1x128xf32, #tpu.memory_space<vmem>>, vector<1x128xf32>
    %178 = vector.shape_cast %177 : vector<1x128xf32> to vector<1x1x128xf32>
    %179 = vector.broadcast %178 : vector<1x1x128xf32> to vector<8x16x128xf32>
    %180 = arith.mulf %176, %179 : vector<8x16x128xf32>
    %cst_81 = arith.constant dense<0.000000e+00> : vector<8x16xf32>
    %181 = vector.multi_reduction <add>, %180, %cst_81 [2] : vector<8x16x128xf32> to vector<8x16xf32>
    %c0_82 = arith.constant 0 : index
    %c0_83 = arith.constant 0 : index
    %182 = memref.load %arg14[%c0_82, %c0_83] : memref<1x1xf32, #tpu.memory_space<smem>>
    %183 = vector.broadcast %182 : f32 to vector<8x16xf32>
    %184 = arith.addf %181, %183 : vector<8x16xf32>
    %c0_84 = arith.constant 0 : index
    %c0_85 = arith.constant 0 : index
    %185 = vector.load %arg1[%c0_84, %c0_85] : memref<8x2xf32, #tpu.memory_space<vmem>>, vector<8x2xf32>
    %c0_86 = arith.constant 0 : index
    %c0_87 = arith.constant 0 : index
    %186 = vector.load %arg30[%c0_86, %c0_87] : memref<2x256xf32, #tpu.memory_space<vmem>>, vector<2x256xf32>
    %187 = vector.extract_strided_slice %185 {offsets = [0, 0], sizes = [8, 1], strides = [1, 1]} : vector<8x2xf32> to vector<8x1xf32>
    %188 = vector.extract_strided_slice %186 {offsets = [0, 0], sizes = [1, 256], strides = [1, 1]} : vector<2x256xf32> to vector<1x256xf32>
    %189 = vector.broadcast %187 : vector<8x1xf32> to vector<8x256xf32>
    %190 = vector.broadcast %188 : vector<1x256xf32> to vector<8x256xf32>
    %191 = arith.mulf %189, %190 : vector<8x256xf32>
    %192 = vector.extract_strided_slice %185 {offsets = [0, 1], sizes = [8, 1], strides = [1, 1]} : vector<8x2xf32> to vector<8x1xf32>
    %193 = vector.extract_strided_slice %186 {offsets = [1, 0], sizes = [1, 256], strides = [1, 1]} : vector<2x256xf32> to vector<1x256xf32>
    %194 = vector.broadcast %192 : vector<8x1xf32> to vector<8x256xf32>
    %195 = vector.broadcast %193 : vector<1x256xf32> to vector<8x256xf32>
    %196 = arith.mulf %194, %195 : vector<8x256xf32>
    %197 = arith.addf %191, %196 : vector<8x256xf32>
    %c0_88 = arith.constant 0 : index
    %c0_89 = arith.constant 0 : index
    %198 = vector.load %arg31[%c0_88, %c0_89] : memref<1x256xf32, #tpu.memory_space<vmem>>, vector<1x256xf32>
    %199 = vector.broadcast %198 : vector<1x256xf32> to vector<8x256xf32>
    %200 = arith.addf %197, %199 : vector<8x256xf32>
    %c0_90 = arith.constant 0 : index
    %c0_91 = arith.constant 0 : index
    %201 = vector.load %arg32[%c0_90, %c0_91] : memref<256x128xf32, #tpu.memory_space<vmem>>, vector<256x128xf32>
    %cst_92 = arith.constant dense<0.000000e+00> : vector<8x128xf32>
    %202 = tpu.matmul %200, %201, %cst_92 {dimension_numbers = #tpu.dot_dimension_numbers<[1], [0], [0], [1], [0, 0, 1, 1], [], []>} : vector<8x256xf32>, vector<256x128xf32>, vector<8x128xf32> -> vector<8x128xf32>
    %c0_93 = arith.constant 0 : index
    %c0_94 = arith.constant 0 : index
    %203 = vector.load %arg33[%c0_93, %c0_94] : memref<1x128xf32, #tpu.memory_space<vmem>>, vector<1x128xf32>
    %204 = vector.broadcast %203 : vector<1x128xf32> to vector<8x128xf32>
    %205 = arith.addf %202, %204 : vector<8x128xf32>
    %206 = math.tanh %205 : vector<8x128xf32>
    %c0_95 = arith.constant 0 : index
    %c0_96 = arith.constant 0 : index
    %207 = vector.load %arg34[%c0_95, %c0_96] : memref<128x128xf32, #tpu.memory_space<vmem>>, vector<128x128xf32>
    %cst_97 = arith.constant dense<0.000000e+00> : vector<8x128xf32>
    %208 = tpu.matmul %206, %207, %cst_97 {dimension_numbers = #tpu.dot_dimension_numbers<[1], [0], [0], [1], [0, 0, 1, 1], [], []>} : vector<8x128xf32>, vector<128x128xf32>, vector<8x128xf32> -> vector<8x128xf32>
    %c0_98 = arith.constant 0 : index
    %c0_99 = arith.constant 0 : index
    %209 = vector.load %arg35[%c0_98, %c0_99] : memref<1x128xf32, #tpu.memory_space<vmem>>, vector<1x128xf32>
    %210 = vector.broadcast %209 : vector<1x128xf32> to vector<8x128xf32>
    %211 = arith.addf %208, %210 : vector<8x128xf32>
    %212 = math.tanh %211 : vector<8x128xf32>
    %c0_100 = arith.constant 0 : index
    %c0_101 = arith.constant 0 : index
    %213 = vector.load %arg36[%c0_100, %c0_101] : memref<128x16xf32, #tpu.memory_space<vmem>>, vector<128x16xf32>
    %cst_102 = arith.constant dense<0.000000e+00> : vector<8x16xf32>
    %214 = tpu.matmul %212, %213, %cst_102 {dimension_numbers = #tpu.dot_dimension_numbers<[1], [0], [0], [1], [0, 0, 1, 1], [], []>} : vector<8x128xf32>, vector<128x16xf32>, vector<8x16xf32> -> vector<8x16xf32>
    %c0_103 = arith.constant 0 : index
    %c0_104 = arith.constant 0 : index
    %215 = vector.load %arg37[%c0_103, %c0_104] : memref<1x16xf32, #tpu.memory_space<vmem>>, vector<1x16xf32>
    %216 = vector.broadcast %215 : vector<1x16xf32> to vector<8x16xf32>
    %217 = arith.addf %214, %216 : vector<8x16xf32>
    %218 = arith.mulf %144, %184 : vector<8x16xf32>
    %219 = arith.mulf %218, %217 : vector<8x16xf32>
    %cst_105 = arith.constant dense<0.000000e+00> : vector<8xf32>
    %220 = vector.multi_reduction <add>, %219, %cst_105 [1] : vector<8x16xf32> to vector<8xf32>
    %c0_106 = arith.constant 0 : index
    %c0_107 = arith.constant 0 : index
    %c0_108 = arith.constant 0 : index
    %221 = vector.load %arg38[%c0_106, %c0_107, %c0_108] : memref<1x1x8xf32, #tpu.memory_space<vmem>>, vector<1x1x8xf32>
    %222 = vector.shape_cast %221 : vector<1x1x8xf32> to vector<8xf32>
    %223 = vector.shape_cast %220 : vector<8xf32> to vector<1x1x8xf32>
    tpu.vector_store %arg38[%c0_106, %c0_107, %c0_108], %223 {strides = array<i32>} : memref<1x1x8xf32, #tpu.memory_space<vmem>>, vector<1x1x8xf32>,
    return
  }
  func.func @transform_0(%arg0: i32) -> (i32, i32) {
    %c0_i32 = arith.constant 0 : i32
    %c0_i32_0 = arith.constant 0 : i32
    return %arg0, %c0_i32 : i32, i32
  }
  func.func @transform_1(%arg0: i32) -> (i32, i32) {
    %c0_i32 = arith.constant 0 : i32
    %c0_i32_0 = arith.constant 0 : i32
    return %arg0, %c0_i32 : i32, i32
  }
  func.func @transform_2(%arg0: i32) -> (i32, i32) {
    %c0_i32 = arith.constant 0 : i32
    %c0_i32_0 = arith.constant 0 : i32
    return %arg0, %c0_i32 : i32, i32
  }
  func.func @transform_3(%arg0: i32) -> (i32, i32) {
    %c0_i32 = arith.constant 0 : i32
    %c0_i32_0 = arith.constant 0 : i32
    return %arg0, %c0_i32 : i32, i32
  }
  func.func @transform_4(%arg0: i32) -> (i32, i32) {
    %c0_i32 = arith.constant 0 : i32
    %c0_i32_0 = arith.constant 0 : i32
    return %arg0, %c0_i32 : i32, i32
  }
  func.func @transform_5(%arg0: i32) -> (i32, i32) {
    %c0_i32 = arith.constant 0 : i32
    %c0_i32_0 = arith.constant 0 : i32
    %c0_i32_1 = arith.constant 0 : i32
    return %c0_i32, %c0_i32_0 : i32, i32
  }
  func.func @transform_6(%arg0: i32) -> (i32, i32) {
    %c0_i32 = arith.constant 0 : i32
    %c0_i32_0 = arith.constant 0 : i32
    %c0_i32_1 = arith.constant 0 : i32
    return %c0_i32, %c0_i32_0 : i32, i32
  }
  func.func @transform_7(%arg0: i32) -> (i32, i32) {
    %c0_i32 = arith.constant 0 : i32
    %c0_i32_0 = arith.constant 0 : i32
    %c0_i32_1 = arith.constant 0 : i32
    return %c0_i32, %c0_i32_0 : i32, i32
  }
  func.func @transform_8(%arg0: i32) -> (i32, i32) {
    %c0_i32 = arith.constant 0 : i32
    %c0_i32_0 = arith.constant 0 : i32
    %c0_i32_1 = arith.constant 0 : i32
    return %c0_i32, %c0_i32_0 : i32, i32
  }
  func.func @transform_9(%arg0: i32) -> (i32, i32) {
    %c0_i32 = arith.constant 0 : i32
    %c0_i32_0 = arith.constant 0 : i32
    %c0_i32_1 = arith.constant 0 : i32
    return %c0_i32, %c0_i32_0 : i32, i32
  }
  func.func @transform_10(%arg0: i32) -> (i32, i32) {
    %c0_i32 = arith.constant 0 : i32
    %c0_i32_0 = arith.constant 0 : i32
    %c0_i32_1 = arith.constant 0 : i32
    return %c0_i32, %c0_i32_0 : i32, i32
  }
  func.func @transform_11(%arg0: i32) -> (i32, i32) {
    %c0_i32 = arith.constant 0 : i32
    %c0_i32_0 = arith.constant 0 : i32
    %c0_i32_1 = arith.constant 0 : i32
    return %c0_i32, %c0_i32_0 : i32, i32
  }
  func.func @transform_12(%arg0: i32) -> (i32, i32) {
    %c0_i32 = arith.constant 0 : i32
    %c0_i32_0 = arith.constant 0 : i32
    %c0_i32_1 = arith.constant 0 : i32
    return %c0_i32, %c0_i32_0 : i32, i32
  }
  func.func @transform_13(%arg0: i32) -> (i32, i32) {
    %c0_i32 = arith.constant 0 : i32
    %c0_i32_0 = arith.constant 0 : i32
    %c0_i32_1 = arith.constant 0 : i32
    return %c0_i32, %c0_i32_0 : i32, i32
  }
  func.func @transform_14(%arg0: i32) -> (i32, i32) {
    %c0_i32 = arith.constant 0 : i32
    %c0_i32_0 = arith.constant 0 : i32
    %c0_i32_1 = arith.constant 0 : i32
    return %c0_i32, %c0_i32_0 : i32, i32
  }
  func.func @transform_15(%arg0: i32) -> (i32, i32) {
    %c0_i32 = arith.constant 0 : i32
    %c0_i32_0 = arith.constant 0 : i32
    %c0_i32_1 = arith.constant 0 : i32
    return %c0_i32, %c0_i32_0 : i32, i32
  }
  func.func @transform_16(%arg0: i32) -> (i32, i32) {
    %c0_i32 = arith.constant 0 : i32
    %c0_i32_0 = arith.constant 0 : i32
    %c0_i32_1 = arith.constant 0 : i32
    return %c0_i32, %c0_i32_0 : i32, i32
  }
  func.func @transform_17(%arg0: i32) -> (i32, i32) {
    %c0_i32 = arith.constant 0 : i32
    %c0_i32_0 = arith.constant 0 : i32
    %c0_i32_1 = arith.constant 0 : i32
    return %c0_i32, %c0_i32_0 : i32, i32
  }
  func.func @transform_18(%arg0: i32) -> (i32, i32) {
    %c0_i32 = arith.constant 0 : i32
    %c0_i32_0 = arith.constant 0 : i32
    %c0_i32_1 = arith.constant 0 : i32
    return %c0_i32, %c0_i32_0 : i32, i32
  }
  func.func @transform_19(%arg0: i32) -> (i32, i32) {
    %c0_i32 = arith.constant 0 : i32
    %c0_i32_0 = arith.constant 0 : i32
    %c0_i32_1 = arith.constant 0 : i32
    return %c0_i32, %c0_i32_0 : i32, i32
  }
  func.func @transform_20(%arg0: i32) -> (i32, i32) {
    %c0_i32 = arith.constant 0 : i32
    %c0_i32_0 = arith.constant 0 : i32
    %c0_i32_1 = arith.constant 0 : i32
    return %c0_i32, %c0_i32_0 : i32, i32
  }
  func.func @transform_21(%arg0: i32) -> (i32, i32) {
    %c0_i32 = arith.constant 0 : i32
    %c0_i32_0 = arith.constant 0 : i32
    %c0_i32_1 = arith.constant 0 : i32
    return %c0_i32, %c0_i32_0 : i32, i32
  }
  func.func @transform_22(%arg0: i32) -> (i32, i32) {
    %c0_i32 = arith.constant 0 : i32
    %c0_i32_0 = arith.constant 0 : i32
    %c0_i32_1 = arith.constant 0 : i32
    return %c0_i32, %c0_i32_0 : i32, i32
  }
  func.func @transform_23(%arg0: i32) -> (i32, i32) {
    %c0_i32 = arith.constant 0 : i32
    %c0_i32_0 = arith.constant 0 : i32
    %c0_i32_1 = arith.constant 0 : i32
    return %c0_i32, %c0_i32_0 : i32, i32
  }
  func.func @transform_24(%arg0: i32) -> (i32, i32) {
    %c0_i32 = arith.constant 0 : i32
    %c0_i32_0 = arith.constant 0 : i32
    %c0_i32_1 = arith.constant 0 : i32
    return %c0_i32, %c0_i32_0 : i32, i32
  }
  func.func @transform_25(%arg0: i32) -> (i32, i32) {
    %c0_i32 = arith.constant 0 : i32
    %c0_i32_0 = arith.constant 0 : i32
    %c0_i32_1 = arith.constant 0 : i32
    return %c0_i32, %c0_i32_0 : i32, i32
  }
  func.func @transform_26(%arg0: i32) -> (i32, i32) {
    %c0_i32 = arith.constant 0 : i32
    %c0_i32_0 = arith.constant 0 : i32
    %c0_i32_1 = arith.constant 0 : i32
    return %c0_i32, %c0_i32_0 : i32, i32
  }
  func.func @transform_27(%arg0: i32) -> (i32, i32) {
    %c0_i32 = arith.constant 0 : i32
    %c0_i32_0 = arith.constant 0 : i32
    %c0_i32_1 = arith.constant 0 : i32
    return %c0_i32, %c0_i32_0 : i32, i32
  }
  func.func @transform_28(%arg0: i32) -> (i32, i32) {
    %c0_i32 = arith.constant 0 : i32
    %c0_i32_0 = arith.constant 0 : i32
    %c0_i32_1 = arith.constant 0 : i32
    return %c0_i32, %c0_i32_0 : i32, i32
  }
  func.func @transform_29(%arg0: i32) -> (i32, i32) {
    %c0_i32 = arith.constant 0 : i32
    %c0_i32_0 = arith.constant 0 : i32
    %c0_i32_1 = arith.constant 0 : i32
    return %c0_i32, %c0_i32_0 : i32, i32
  }
  func.func @transform_30(%arg0: i32) -> (i32, i32) {
    %c0_i32 = arith.constant 0 : i32
    %c0_i32_0 = arith.constant 0 : i32
    %c0_i32_1 = arith.constant 0 : i32
    return %c0_i32, %c0_i32_0 : i32, i32
  }
  func.func @transform_31(%arg0: i32) -> (i32, i32) {
    %c0_i32 = arith.constant 0 : i32
    %c0_i32_0 = arith.constant 0 : i32
    %c0_i32_1 = arith.constant 0 : i32
    return %c0_i32, %c0_i32_0 : i32, i32
  }
  func.func @transform_32(%arg0: i32) -> (i32, i32) {
    %c0_i32 = arith.constant 0 : i32
    %c0_i32_0 = arith.constant 0 : i32
    %c0_i32_1 = arith.constant 0 : i32
    return %c0_i32, %c0_i32_0 : i32, i32
  }
  func.func @transform_33(%arg0: i32) -> (i32, i32) {
    %c0_i32 = arith.constant 0 : i32
    %c0_i32_0 = arith.constant 0 : i32
    %c0_i32_1 = arith.constant 0 : i32
    return %c0_i32, %c0_i32_0 : i32, i32
  }
  func.func @transform_34(%arg0: i32) -> (i32, i32) {
    %c0_i32 = arith.constant 0 : i32
    %c0_i32_0 = arith.constant 0 : i32
    %c0_i32_1 = arith.constant 0 : i32
    return %c0_i32, %c0_i32_0 : i32, i32
  }
  func.func @transform_35(%arg0: i32) -> (i32, i32) {
    %c0_i32 = arith.constant 0 : i32
    %c0_i32_0 = arith.constant 0 : i32
    %c0_i32_1 = arith.constant 0 : i32
    return %c0_i32, %c0_i32_0 : i32, i32
  }
  func.func @transform_36(%arg0: i32) -> (i32, i32) {
    %c0_i32 = arith.constant 0 : i32
    %c0_i32_0 = arith.constant 0 : i32
    %c0_i32_1 = arith.constant 0 : i32
    return %c0_i32, %c0_i32_0 : i32, i32
  }
  func.func @transform_37(%arg0: i32) -> (i32, i32, i32) {
    %c0_i32 = arith.constant 0 : i32
    %c0_i32_0 = arith.constant 0 : i32
    %c0_i32_1 = arith.constant 0 : i32
    return %arg0, %c0_i32, %c0_i32_0 : i32, i32, i32
  }
}

</mosaic_0001>

<llo_original>
// kernel: tpu_custom_call.1
$region0: #{tpu_custom_call.1}
  #allocation0 [shape = 'u32[]', space=smem, size = 0x4, offset = 0x4, fixed_abs, tag = 'smem constant byte address 0x4 - core index']
  #allocation1 [shape = 'u32[72,128]{1,0:T(1,128)}', space=vmem, size = 0x9000, scoped, tag = 'internal scratch']
  #allocation2 [shape = 'f32[1,1]{1,0:T(1,128)S(6)}', space=smem, size = 0x200, scoped, tag = 'scoped memory for tpu_custom_call.1']
  #allocation3 [shape = 'f32[1,1]{1,0:T(1,128)S(6)}', space=smem, size = 0x200, scoped, tag = 'scoped memory for tpu_custom_call.1']
  #allocation4 [shape = 'f32[1,1]{1,0:T(1,128)S(6)}', space=smem, size = 0x200, scoped, tag = 'scoped memory for tpu_custom_call.1']
  #allocation5 [shape = 'f32[1,1]{1,0:T(1,128)S(6)}', space=smem, size = 0x200, scoped, tag = 'scoped memory for tpu_custom_call.1']
  #allocation6 [shape = 'f32[1,1]{1,0:T(1,128)S(6)}', space=smem, size = 0x200, scoped, tag = 'scoped memory for tpu_custom_call.1']
  #allocation7 [shape = 'f32[1,1]{1,0:T(1,128)S(6)}', space=smem, size = 0x200, scoped, tag = 'scoped memory for tpu_custom_call.1']
  #allocation8 [shape = 'f32[1,1]{1,0:T(1,128)S(6)}', space=smem, size = 0x200, scoped, tag = 'scoped memory for tpu_custom_call.1']
  %s0 = inlined_call_operand.smem [shape: u32[38], index: -1, kind: input, shape index: {}]
  %s1 = sld [smem:[%s0]]
  %s2 = scalar_lea.smem %s0, 1
  %s3 = sld [smem:[%s2]]
  %s4 = scalar_lea.smem %s0, 2
  %s5 = sld [smem:[%s4]]
  %s6 = scalar_lea.smem %s0, 3
  %s7 = sld [smem:[%s6]]
  %s8 = scalar_lea.smem %s0, 4
  %s9 = sld [smem:[%s8]]
  %s10 = scalar_lea.smem %s0, 5
  %s11 = sld [smem:[%s10]]
  %s12 = scalar_lea.smem %s0, 6
  %s13 = sld [smem:[%s12]]
  %s14 = scalar_lea.smem %s0, 7
  %s15 = sld [smem:[%s14]]
  %s16 = scalar_lea.smem %s0, 8
  %s17 = sld [smem:[%s16]]
  %s18 = scalar_lea.smem %s0, 9
  %s19 = sld [smem:[%s18]]
  %s20 = scalar_lea.smem %s0, 10
  %s21 = sld [smem:[%s20]]
  %s22 = scalar_lea.smem %s0, 11
  %s23 = sld [smem:[%s22]]
  %s24 = scalar_lea.smem %s0, 12
  %s25 = sld [smem:[%s24]]
  %s26 = scalar_lea.smem %s0, 13
  %s27 = sld [smem:[%s26]]
  %s28 = scalar_lea.smem %s0, 14
  %s29 = sld [smem:[%s28]]
  %s30 = scalar_lea.smem %s0, 15
  %s31 = sld [smem:[%s30]]
  %s32 = scalar_lea.smem %s0, 16
  %s33 = sld [smem:[%s32]]
  %s34 = scalar_lea.smem %s0, 17
  %s35 = sld [smem:[%s34]]
  %s36 = scalar_lea.smem %s0, 18
  %s37 = sld [smem:[%s36]]
  %s38 = scalar_lea.smem %s0, 19
  %s39 = sld [smem:[%s38]]
  %s40 = scalar_lea.smem %s0, 20
  %s41 = sld [smem:[%s40]]
  %s42 = scalar_lea.smem %s0, 21
  %s43 = sld [smem:[%s42]]
  %s44 = scalar_lea.smem %s0, 22
  %s45 = sld [smem:[%s44]]
  %s46 = scalar_lea.smem %s0, 23
  %s47 = sld [smem:[%s46]]
  %s48 = scalar_lea.smem %s0, 24
  %s49 = sld [smem:[%s48]]
  %s50 = scalar_lea.smem %s0, 25
  %s51 = sld [smem:[%s50]]
  %s52 = scalar_lea.smem %s0, 26
  %s53 = sld [smem:[%s52]]
  %s54 = scalar_lea.smem %s0, 27
  %s55 = sld [smem:[%s54]]
  %s56 = scalar_lea.smem %s0, 28
  %s57 = sld [smem:[%s56]]
  %s58 = scalar_lea.smem %s0, 29
  %s59 = sld [smem:[%s58]]
  %s60 = scalar_lea.smem %s0, 30
  %s61 = sld [smem:[%s60]]
  %s62 = scalar_lea.smem %s0, 31
  %s63 = sld [smem:[%s62]]
  %s64 = scalar_lea.smem %s0, 32
  %s65 = sld [smem:[%s64]]
  %s66 = scalar_lea.smem %s0, 33
  %s67 = sld [smem:[%s66]]
  %s68 = scalar_lea.smem %s0, 34
  %s69 = sld [smem:[%s68]]
  %s70 = scalar_lea.smem %s0, 35
  %s71 = sld [smem:[%s70]]
  %s72 = scalar_lea.smem %s0, 36
  %s73 = sld [smem:[%s72]]
  %s74 = scalar_lea.smem %s0, 37
  %s75 = sld [smem:[%s74]]
  %s76 = sld [smem:[#allocation0]]
  $region234: #{tpu_custom_call.1} parent=0
    _
  %s78 = ssub.s32 1, %s76
  %s79 = scalar_select 0, %s78, %s76
  %80 = sst [smem:[#allocation2]] %s11
  %81 = sst [smem:[#allocation3]] %s13
  %82 = sst [smem:[#allocation4]] %s15
  %83 = sst [smem:[#allocation5]] %s17
  %84 = sst [smem:[#allocation6]] %s21
  %85 = sst [smem:[#allocation7]] %s25
  %86 = sst [smem:[#allocation8]] %s27
  $region1: #{tpu_custom_call.1} parent=0
    #allocation9 [shape = 'u8[4096]{0}', space=vmem, size = 0x1000, scoped, tag = 'input window, operand 1, single buffered']
    #allocation10 [shape = 's32[1]{0}', space=sflag, size = 0x4, scoped, tag = 'scoped memory for tpu_custom_call.1']
    #allocation11 [shape = 's32[1]{0}', space=sflag, size = 0x4, scoped, tag = 'scoped memory for tpu_custom_call.1']
    #allocation12 [shape = 's32[1]{0}', space=sflag, size = 0x4, scoped, tag = 'scoped memory for tpu_custom_call.1']
    #allocation13 [shape = 's32[1]{0}', space=sflag, size = 0x4, scoped, tag = 'scoped memory for tpu_custom_call.1']
    #allocation14 [shape = 'u8[4096]{0}', space=vmem, size = 0x1000, scoped, tag = 'input window, operand 2, single buffered']
    #allocation15 [shape = 's32[1]{0}', space=sflag, size = 0x4, scoped, tag = 'scoped memory for tpu_custom_call.1']
    #allocation16 [shape = 'u8[4096]{0}', space=vmem, size = 0x1000, scoped, tag = 'input window, operand 3, single buffered']
    #allocation17 [shape = 'u8[4096]{0}', space=vmem, size = 0x1000, scoped, tag = 'input window, operand 4, single buffered']
    #allocation18 [shape = 's32[1]{0}', space=sflag, size = 0x4, scoped, tag = 'scoped memory for tpu_custom_call.1']
    #allocation19 [shape = 'u8[512]{0}', space=smem, size = 0x200, scoped, tag = 'input window, operand 9, single buffered']
    #allocation20 [shape = 'u8[512]{0}', space=smem, size = 0x200, scoped, tag = 'input window, operand 11, single buffered']
    #allocation21 [shape = 'u8[1024]{0}', space=vmem, size = 0x400, scoped, tag = 'input window, operand 15, single buffered']
    #allocation22 [shape = 'u8[512]{0}', space=vmem, size = 0x400, scoped, tag = 'input window, operand 17, single buffered']
    #allocation23 [shape = 's32[1]{0}', space=sflag, size = 0x4, scoped, tag = 'scoped memory for tpu_custom_call.1']
    #allocation24 [shape = 'u8[65536]{0}', space=vmem, size = 0x10000, scoped, tag = 'input window, operand 18, single buffered']
    #allocation25 [shape = 'u8[512]{0}', space=vmem, size = 0x400, scoped, tag = 'input window, operand 19, single buffered']
    #allocation26 [shape = 's32[1]{0}', space=sflag, size = 0x4, scoped, tag = 'scoped memory for tpu_custom_call.1']
    #allocation27 [shape = 'u8[512]{0}', space=vmem, size = 0x400, scoped, tag = 'input window, operand 21, single buffered']
    #allocation28 [shape = 'u8[1024]{0}', space=vmem, size = 0x400, scoped, tag = 'input window, operand 23, single buffered']
    #allocation29 [shape = 's32[1]{0}', space=sflag, size = 0x4, scoped, tag = 'scoped memory for tpu_custom_call.1']
    #allocation30 [shape = 'u8[131072]{0}', space=vmem, size = 0x20000, scoped, tag = 'input window, operand 24, single buffered']
    #allocation31 [shape = 'u8[512]{0}', space=vmem, size = 0x400, scoped, tag = 'input window, operand 25, single buffered']
    #allocation32 [shape = 's32[1]{0}', space=sflag, size = 0x4, scoped, tag = 'scoped memory for tpu_custom_call.1']
    #allocation33 [shape = 'u8[65536]{0}', space=vmem, size = 0x10000, scoped, tag = 'input window, operand 26, single buffered']
    #allocation34 [shape = 'u8[512]{0}', space=vmem, size = 0x400, scoped, tag = 'input window, operand 27, single buffered']
    #allocation35 [shape = 's32[1]{0}', space=sflag, size = 0x4, scoped, tag = 'scoped memory for tpu_custom_call.1']
    #allocation36 [shape = 'u8[512]{0}', space=vmem, size = 0x400, scoped, tag = 'input window, operand 28, single buffered']
    #allocation37 [shape = 'u8[131072]{0}', space=vmem, size = 0x20000, scoped, tag = 'input window, operand 31, single buffered']
    #allocation38 [shape = 's32[1]{0}', space=sflag, size = 0x4, scoped, tag = 'scoped memory for tpu_custom_call.1']
    #allocation39 [shape = 'u8[65536]{0}', space=vmem, size = 0x10000, scoped, tag = 'input window, operand 33, single buffered']
    #allocation40 [shape = 'u8[512]{0}', space=vmem, size = 0x400, scoped, tag = 'output window, operand 0, single buffered']
    %87 = vsyncpa [#allocation10], 0
    %88 = vsyncpa [#allocation15], 0
    %89 = vsyncpa [#allocation18], 0
    %90 = vsyncpa [#allocation13], 0
    %91 = vsyncpa [#allocation12], 0
    %92 = vsyncpa [#allocation23], 0
    %93 = vsyncpa [#allocation26], 0
    %94 = vsyncpa [#allocation29], 0
    %95 = vsyncpa [#allocation32], 0
    %96 = vsyncpa [#allocation35], 0
    %97 = vsyncpa [#allocation38], 0
    %98 = vsyncpa [#allocation11], 0
    // Predicated region
    $region2: #{tpu_custom_call.1} parent=1 // pred_check
      _
    $region3: #{tpu_custom_call.1} parent=1 // pred_check_branch
      %100 = sbr.rel (0) target = $region5
    $region4: #{tpu_custom_call.1} parent=1 // pred_region
      _
    $region5: #{tpu_custom_call.1} parent=1 // pred_fallthru
      _
    // Predicated region
    $region6: #{tpu_custom_call.1} parent=1 // pred_check
      _
    $region7: #{tpu_custom_call.1} parent=1 // pred_check_branch
      %102 = sbr.rel (0) target = $region9
    $region8: #{tpu_custom_call.1} parent=1 // pred_region
      %104 = vsyncadd [#allocation10], 0
      %s106 = sshll.u32 %s3, 4
      %s107 = int_to_ptr.hbm [resolvable:$true] %s106
      %s108 = sshll.u32 [#allocation9], 4
      %s109 = int_to_ptr.vmem [resolvable:$true] %s108
      %111 = dma.hbm_to_vmem [thread:$0]  %s107, 128, %s109, [#allocation10]
    $region9: #{tpu_custom_call.1} parent=1 // pred_fallthru
      _
    // Predicated region
    $region10: #{tpu_custom_call.1} parent=1 // pred_check
      _
    $region11: #{tpu_custom_call.1} parent=1 // pred_check_branch
      %113 = sbr.rel (0) target = $region13
    $region12: #{tpu_custom_call.1} parent=1 // pred_region
      %115 = vsyncadd [#allocation15], 0
      %s117 = sshll.u32 %s5, 4
      %s118 = int_to_ptr.hbm [resolvable:$true] %s117
      %s119 = sshll.u32 [#allocation14], 4
      %s120 = int_to_ptr.vmem [resolvable:$true] %s119
      %122 = dma.hbm_to_vmem [thread:$0]  %s118, 128, %s120, [#allocation15]
    $region13: #{tpu_custom_call.1} parent=1 // pred_fallthru
      _
    // Predicated region
    $region14: #{tpu_custom_call.1} parent=1 // pred_check
      _
    $region15: #{tpu_custom_call.1} parent=1 // pred_check_branch
      %124 = sbr.rel (0) target = $region17
    $region16: #{tpu_custom_call.1} parent=1 // pred_region
      %126 = vsyncadd [#allocation15], 0
      %s128 = sshll.u32 %s7, 4
      %s129 = int_to_ptr.hbm [resolvable:$true] %s128
      %s130 = sshll.u32 [#allocation16], 4
      %s131 = int_to_ptr.vmem [resolvable:$true] %s130
      %133 = dma.hbm_to_vmem [thread:$0]  %s129, 128, %s131, [#allocation15]
    $region17: #{tpu_custom_call.1} parent=1 // pred_fallthru
      _
    // Predicated region
    $region18: #{tpu_custom_call.1} parent=1 // pred_check
      _
    $region19: #{tpu_custom_call.1} parent=1 // pred_check_branch
      %135 = sbr.rel (0) target = $region21
    $region20: #{tpu_custom_call.1} parent=1 // pred_region
      %137 = vsyncadd [#allocation18], 0
      %s139 = sshll.u32 %s9, 4
      %s140 = int_to_ptr.hbm [resolvable:$true] %s139
      %s141 = sshll.u32 [#allocation17], 4
      %s142 = int_to_ptr.vmem [resolvable:$true] %s141
      %144 = dma.hbm_to_vmem [thread:$0]  %s140, 128, %s142, [#allocation18]
    $region21: #{tpu_custom_call.1} parent=1 // pred_fallthru
      _
    // Predicated region
    $region22: #{tpu_custom_call.1} parent=1 // pred_check
      _
    $region23: #{tpu_custom_call.1} parent=1 // pred_check_branch
      %146 = sbr.rel (0) target = $region25
    $region24: #{tpu_custom_call.1} parent=1 // pred_region
      _
    $region25: #{tpu_custom_call.1} parent=1 // pred_fallthru
      _
    // Predicated region
    $region26: #{tpu_custom_call.1} parent=1 // pred_check
      _
    $region27: #{tpu_custom_call.1} parent=1 // pred_check_branch
      %148 = sbr.rel (0) target = $region29
    $region28: #{tpu_custom_call.1} parent=1 // pred_region
      _
    $region29: #{tpu_custom_call.1} parent=1 // pred_fallthru
      _
    // Predicated region
    $region30: #{tpu_custom_call.1} parent=1 // pred_check
      _
    $region31: #{tpu_custom_call.1} parent=1 // pred_check_branch
      %150 = sbr.rel (0) target = $region33
    $region32: #{tpu_custom_call.1} parent=1 // pred_region
      _
    $region33: #{tpu_custom_call.1} parent=1 // pred_fallthru
      _
    // Predicated region
    $region34: #{tpu_custom_call.1} parent=1 // pred_check
      _
    $region35: #{tpu_custom_call.1} parent=1 // pred_check_branch
      %152 = sbr.rel (0) target = $region37
    $region36: #{tpu_custom_call.1} parent=1 // pred_region
      _
    $region37: #{tpu_custom_call.1} parent=1 // pred_fallthru
      _
    // Predicated region
    $region38: #{tpu_custom_call.1} parent=1 // pred_check
      _
    $region39: #{tpu_custom_call.1} parent=1 // pred_check_branch
      %154 = sbr.rel (0) target = $region41
    $region40: #{tpu_custom_call.1} parent=1 // pred_region
      %156 = vsyncadd [#allocation13], 0
      %s158 = sshll.u32 %s19, 4
      %s159 = int_to_ptr.vmem [resolvable:$true] %s158
      %161 = dma.vmem_to_smem %s159, 16, [#allocation19], [#allocation13]
    $region41: #{tpu_custom_call.1} parent=1 // pred_fallthru
      _
    // Predicated region
    $region42: #{tpu_custom_call.1} parent=1 // pred_check
      _
    $region43: #{tpu_custom_call.1} parent=1 // pred_check_branch
      %163 = sbr.rel (0) target = $region45
    $region44: #{tpu_custom_call.1} parent=1 // pred_region
      _
    $region45: #{tpu_custom_call.1} parent=1 // pred_fallthru
      _
    // Predicated region
    $region46: #{tpu_custom_call.1} parent=1 // pred_check
      _
    $region47: #{tpu_custom_call.1} parent=1 // pred_check_branch
      %165 = sbr.rel (0) target = $region49
    $region48: #{tpu_custom_call.1} parent=1 // pred_region
      %167 = vsyncadd [#allocation12], 0
      %s169 = sshll.u32 %s23, 4
      %s170 = int_to_ptr.hbm [resolvable:$true] %s169
      %172 = dma.hbm_to_smem %s170, 16, [#allocation20], [#allocation12]
    $region49: #{tpu_custom_call.1} parent=1 // pred_fallthru
      _
    // Predicated region
    $region50: #{tpu_custom_call.1} parent=1 // pred_check
      _
    $region51: #{tpu_custom_call.1} parent=1 // pred_check_branch
      %174 = sbr.rel (0) target = $region53
    $region52: #{tpu_custom_call.1} parent=1 // pred_region
      _
    $region53: #{tpu_custom_call.1} parent=1 // pred_fallthru
      _
    // Predicated region
    $region54: #{tpu_custom_call.1} parent=1 // pred_check
      _
    $region55: #{tpu_custom_call.1} parent=1 // pred_check_branch
      %176 = sbr.rel (0) target = $region57
    $region56: #{tpu_custom_call.1} parent=1 // pred_region
      _
    $region57: #{tpu_custom_call.1} parent=1 // pred_fallthru
      _
    // Predicated region
    $region58: #{tpu_custom_call.1} parent=1 // pred_check
      _
    $region59: #{tpu_custom_call.1} parent=1 // pred_check_branch
      %178 = sbr.rel (0) target = $region61
    $region60: #{tpu_custom_call.1} parent=1 // pred_region
      _
    $region61: #{tpu_custom_call.1} parent=1 // pred_fallthru
      _
    // Predicated region
    $region62: #{tpu_custom_call.1} parent=1 // pred_check
      _
    $region63: #{tpu_custom_call.1} parent=1 // pred_check_branch
      %180 = sbr.rel (0) target = $region65
    $region64: #{tpu_custom_call.1} parent=1 // pred_region
      %182 = vsyncadd [#allocation18], 0
      %s184 = sshll.u32 %s31, 4
      %s185 = int_to_ptr.hbm [resolvable:$true] %s184
      %s186 = sshll.u32 [#allocation21], 4
      %s187 = int_to_ptr.vmem [resolvable:$true] %s186
      %189 = dma.hbm_to_vmem [thread:$0]  %s185, 32, %s187, [#allocation18]
    $region65: #{tpu_custom_call.1} parent=1 // pred_fallthru
      _
    // Predicated region
    $region66: #{tpu_custom_call.1} parent=1 // pred_check
      _
    $region67: #{tpu_custom_call.1} parent=1 // pred_check_branch
      %191 = sbr.rel (0) target = $region69
    $region68: #{tpu_custom_call.1} parent=1 // pred_region
      _
    $region69: #{tpu_custom_call.1} parent=1 // pred_fallthru
      _
    // Predicated region
    $region70: #{tpu_custom_call.1} parent=1 // pred_check
      _
    $region71: #{tpu_custom_call.1} parent=1 // pred_check_branch
      %193 = sbr.rel (0) target = $region73
    $region72: #{tpu_custom_call.1} parent=1 // pred_region
      %195 = vsyncadd [#allocation23], 0
      %s197 = sshll.u32 %s35, 4
      %s198 = int_to_ptr.hbm [resolvable:$true] %s197
      %s199 = sshll.u32 [#allocation22], 4
      %s200 = int_to_ptr.vmem [resolvable:$true] %s199
      %202 = dma.hbm_to_vmem [thread:$0]  %s198, 16, %s200, [#allocation23]
    $region73: #{tpu_custom_call.1} parent=1 // pred_fallthru
      _
    // Predicated region
    $region74: #{tpu_custom_call.1} parent=1 // pred_check
      _
    $region75: #{tpu_custom_call.1} parent=1 // pred_check_branch
      %204 = sbr.rel (0) target = $region77
    $region76: #{tpu_custom_call.1} parent=1 // pred_region
      %206 = vsyncadd [#allocation23], 0
      %s207 = sshll.u32 %s37, 4
      %s208 = int_to_ptr.hbm [resolvable:$true] %s207
      %s209 = sshll.u32 [#allocation24], 4
      %s210 = int_to_ptr.vmem [resolvable:$true] %s209
      %215 = dma.hbm_to_vmem [thread:$0]  %s208, 2048, %s210, [#allocation23], 128, 128, 8
    $region77: #{tpu_custom_call.1} parent=1 // pred_fallthru
      _
    // Predicated region
    $region78: #{tpu_custom_call.1} parent=1 // pred_check
      _
    $region79: #{tpu_custom_call.1} parent=1 // pred_check_branch
      %217 = sbr.rel (0) target = $region81
    $region80: #{tpu_custom_call.1} parent=1 // pred_region
      %219 = vsyncadd [#allocation26], 0
      %s221 = sshll.u32 %s39, 4
      %s222 = int_to_ptr.hbm [resolvable:$true] %s221
      %s223 = sshll.u32 [#allocation25], 4
      %s224 = int_to_ptr.vmem [resolvable:$true] %s223
      %226 = dma.hbm_to_vmem [thread:$0]  %s222, 16, %s224, [#allocation26]
    $region81: #{tpu_custom_call.1} parent=1 // pred_fallthru
      _
    // Predicated region
    $region82: #{tpu_custom_call.1} parent=1 // pred_check
      _
    $region83: #{tpu_custom_call.1} parent=1 // pred_check_branch
      %228 = sbr.rel (0) target = $region85
    $region84: #{tpu_custom_call.1} parent=1 // pred_region
      _
    $region85: #{tpu_custom_call.1} parent=1 // pred_fallthru
      _
    // Predicated region
    $region86: #{tpu_custom_call.1} parent=1 // pred_check
      _
    $region87: #{tpu_custom_call.1} parent=1 // pred_check_branch
      %230 = sbr.rel (0) target = $region89
    $region88: #{tpu_custom_call.1} parent=1 // pred_region
      %232 = vsyncadd [#allocation26], 0
      %s234 = sshll.u32 %s43, 4
      %s235 = int_to_ptr.hbm [resolvable:$true] %s234
      %s236 = sshll.u32 [#allocation27], 4
      %s237 = int_to_ptr.vmem [resolvable:$true] %s236
      %239 = dma.hbm_to_vmem [thread:$0]  %s235, 16, %s237, [#allocation26]
    $region89: #{tpu_custom_call.1} parent=1 // pred_fallthru
      _
    // Predicated region
    $region90: #{tpu_custom_call.1} parent=1 // pred_check
      _
    $region91: #{tpu_custom_call.1} parent=1 // pred_check_branch
      %241 = sbr.rel (0) target = $region93
    $region92: #{tpu_custom_call.1} parent=1 // pred_region
      _
    $region93: #{tpu_custom_call.1} parent=1 // pred_fallthru
      _
    // Predicated region
    $region94: #{tpu_custom_call.1} parent=1 // pred_check
      _
    $region95: #{tpu_custom_call.1} parent=1 // pred_check_branch
      %243 = sbr.rel (0) target = $region97
    $region96: #{tpu_custom_call.1} parent=1 // pred_region
      %245 = vsyncadd [#allocation29], 0
      %s247 = sshll.u32 %s47, 4
      %s248 = int_to_ptr.hbm [resolvable:$true] %s247
      %s249 = sshll.u32 [#allocation28], 4
      %s250 = int_to_ptr.vmem [resolvable:$true] %s249
      %252 = dma.hbm_to_vmem [thread:$0]  %s248, 32, %s250, [#allocation29]
    $region97: #{tpu_custom_call.1} parent=1 // pred_fallthru
      _
    // Predicated region
    $region98: #{tpu_custom_call.1} parent=1 // pred_check
      _
    $region99: #{tpu_custom_call.1} parent=1 // pred_check_branch
      %254 = sbr.rel (0) target = $region101
    $region100: #{tpu_custom_call.1} parent=1 // pred_region
      %256 = vsyncadd [#allocation29], 0
      %s257 = sshll.u32 %s49, 4
      %s258 = int_to_ptr.hbm [resolvable:$true] %s257
      %s259 = sshll.u32 [#allocation30], 4
      %s260 = int_to_ptr.vmem [resolvable:$true] %s259
      %265 = dma.hbm_to_vmem [thread:$0]  %s258, 4096, %s260, [#allocation29], 128, 128, 8
    $region101: #{tpu_custom_call.1} parent=1 // pred_fallthru
      _
    // Predicated region
    $region102: #{tpu_custom_call.1} parent=1 // pred_check
      _
    $region103: #{tpu_custom_call.1} parent=1 // pred_check_branch
      %267 = sbr.rel (0) target = $region105
    $region104: #{tpu_custom_call.1} parent=1 // pred_region
      %269 = vsyncadd [#allocation32], 0
      %s271 = sshll.u32 %s51, 4
      %s272 = int_to_ptr.hbm [resolvable:$true] %s271
      %s273 = sshll.u32 [#allocation31], 4
      %s274 = int_to_ptr.vmem [resolvable:$true] %s273
      %276 = dma.hbm_to_vmem [thread:$0]  %s272, 16, %s274, [#allocation32]
    $region105: #{tpu_custom_call.1} parent=1 // pred_fallthru
      _
    // Predicated region
    $region106: #{tpu_custom_call.1} parent=1 // pred_check
      _
    $region107: #{tpu_custom_call.1} parent=1 // pred_check_branch
      %278 = sbr.rel (0) target = $region109
    $region108: #{tpu_custom_call.1} parent=1 // pred_region
      %280 = vsyncadd [#allocation32], 0
      %s281 = sshll.u32 %s53, 4
      %s282 = int_to_ptr.hbm [resolvable:$true] %s281
      %s283 = sshll.u32 [#allocation33], 4
      %s284 = int_to_ptr.vmem [resolvable:$true] %s283
      %289 = dma.hbm_to_vmem [thread:$0]  %s282, 2048, %s284, [#allocation32], 128, 128, 8
    $region109: #{tpu_custom_call.1} parent=1 // pred_fallthru
      _
    // Predicated region
    $region110: #{tpu_custom_call.1} parent=1 // pred_check
      _
    $region111: #{tpu_custom_call.1} parent=1 // pred_check_branch
      %291 = sbr.rel (0) target = $region113
    $region112: #{tpu_custom_call.1} parent=1 // pred_region
      %293 = vsyncadd [#allocation35], 0
      %s295 = sshll.u32 %s55, 4
      %s296 = int_to_ptr.hbm [resolvable:$true] %s295
      %s297 = sshll.u32 [#allocation34], 4
      %s298 = int_to_ptr.vmem [resolvable:$true] %s297
      %300 = dma.hbm_to_vmem [thread:$0]  %s296, 16, %s298, [#allocation35]
    $region113: #{tpu_custom_call.1} parent=1 // pred_fallthru
      _
    // Predicated region
    $region114: #{tpu_custom_call.1} parent=1 // pred_check
      _
    $region115: #{tpu_custom_call.1} parent=1 // pred_check_branch
      %302 = sbr.rel (0) target = $region117
    $region116: #{tpu_custom_call.1} parent=1 // pred_region
      %304 = vsyncadd [#allocation35], 0
      %s306 = sshll.u32 %s57, 4
      %s307 = int_to_ptr.hbm [resolvable:$true] %s306
      %s308 = sshll.u32 [#allocation36], 4
      %s309 = int_to_ptr.vmem [resolvable:$true] %s308
      %311 = dma.hbm_to_vmem [thread:$0]  %s307, 16, %s309, [#allocation35]
    $region117: #{tpu_custom_call.1} parent=1 // pred_fallthru
      _
    // Predicated region
    $region118: #{tpu_custom_call.1} parent=1 // pred_check
      _
    $region119: #{tpu_custom_call.1} parent=1 // pred_check_branch
      %313 = sbr.rel (0) target = $region121
    $region120: #{tpu_custom_call.1} parent=1 // pred_region
      _
    $region121: #{tpu_custom_call.1} parent=1 // pred_fallthru
      _
    // Predicated region
    $region122: #{tpu_custom_call.1} parent=1 // pred_check
      _
    $region123: #{tpu_custom_call.1} parent=1 // pred_check_branch
      %315 = sbr.rel (0) target = $region125
    $region124: #{tpu_custom_call.1} parent=1 // pred_region
      _
    $region125: #{tpu_custom_call.1} parent=1 // pred_fallthru
      _
    // Predicated region
    $region126: #{tpu_custom_call.1} parent=1 // pred_check
      _
    $region127: #{tpu_custom_call.1} parent=1 // pred_check_branch
      %317 = sbr.rel (0) target = $region129
    $region128: #{tpu_custom_call.1} parent=1 // pred_region
      %319 = vsyncadd [#allocation38], 0
      %s320 = sshll.u32 %s63, 4
      %s321 = int_to_ptr.hbm [resolvable:$true] %s320
      %s322 = sshll.u32 [#allocation37], 4
      %s323 = int_to_ptr.vmem [resolvable:$true] %s322
      %328 = dma.hbm_to_vmem [thread:$0]  %s321, 4096, %s323, [#allocation38], 128, 128, 8
    $region129: #{tpu_custom_call.1} parent=1 // pred_fallthru
      _
    // Predicated region
    $region130: #{tpu_custom_call.1} parent=1 // pred_check
      _
    $region131: #{tpu_custom_call.1} parent=1 // pred_check_branch
      %330 = sbr.rel (0) target = $region133
    $region132: #{tpu_custom_call.1} parent=1 // pred_region
      _
    $region133: #{tpu_custom_call.1} parent=1 // pred_fallthru
      _
    // Predicated region
    $region134: #{tpu_custom_call.1} parent=1 // pred_check
      _
    $region135: #{tpu_custom_call.1} parent=1 // pred_check_branch
      %332 = sbr.rel (0) target = $region137
    $region136: #{tpu_custom_call.1} parent=1 // pred_region
      %334 = vsyncadd [#allocation38], 0
      %s335 = sshll.u32 %s67, 4
      %s336 = int_to_ptr.hbm [resolvable:$true] %s335
      %s337 = sshll.u32 [#allocation39], 4
      %s338 = int_to_ptr.vmem [resolvable:$true] %s337
      %343 = dma.hbm_to_vmem [thread:$0]  %s336, 2048, %s338, [#allocation38], 128, 128, 8
    $region137: #{tpu_custom_call.1} parent=1 // pred_fallthru
      _
    // Predicated region
    $region138: #{tpu_custom_call.1} parent=1 // pred_check
      _
    $region139: #{tpu_custom_call.1} parent=1 // pred_check_branch
      %345 = sbr.rel (0) target = $region141
    $region140: #{tpu_custom_call.1} parent=1 // pred_region
      _
    $region141: #{tpu_custom_call.1} parent=1 // pred_fallthru
      _
    // Predicated region
    $region142: #{tpu_custom_call.1} parent=1 // pred_check
      _
    $region143: #{tpu_custom_call.1} parent=1 // pred_check_branch
      %347 = sbr.rel (0) target = $region145
    $region144: #{tpu_custom_call.1} parent=1 // pred_region
      _
    $region145: #{tpu_custom_call.1} parent=1 // pred_fallthru
      _
    // Predicated region
    $region146: #{tpu_custom_call.1} parent=1 // pred_check
      _
    $region147: #{tpu_custom_call.1} parent=1 // pred_check_branch
      %349 = sbr.rel (0) target = $region149
    $region148: #{tpu_custom_call.1} parent=1 // pred_region
      _
    $region149: #{tpu_custom_call.1} parent=1 // pred_fallthru
      _
    // Predicated region
    $region150: #{tpu_custom_call.1} parent=1 // pred_check
      _
    $region151: #{tpu_custom_call.1} parent=1 // pred_check_branch
      %351 = sbr.rel (0) target = $region153
    $region152: #{tpu_custom_call.1} parent=1 // pred_region
      %353 = dma.done [#allocation10], 128
    $region153: #{tpu_custom_call.1} parent=1 // pred_fallthru
      _
    // Predicated region
    $region154: #{tpu_custom_call.1} parent=1 // pred_check
      _
    $region155: #{tpu_custom_call.1} parent=1 // pred_check_branch
      %355 = sbr.rel (0) target = $region157
    $region156: #{tpu_custom_call.1} parent=1 // pred_region
      %357 = dma.done [#allocation15], 128
    $region157: #{tpu_custom_call.1} parent=1 // pred_fallthru
      _
    // Predicated region
    $region158: #{tpu_custom_call.1} parent=1 // pred_check
      _
    $region159: #{tpu_custom_call.1} parent=1 // pred_check_branch
      %359 = sbr.rel (0) target = $region161
    $region160: #{tpu_custom_call.1} parent=1 // pred_region
      %361 = dma.done [#allocation15], 128
    $region161: #{tpu_custom_call.1} parent=1 // pred_fallthru
      _
    // Predicated region
    $region162: #{tpu_custom_call.1} parent=1 // pred_check
      _
    $region163: #{tpu_custom_call.1} parent=1 // pred_check_branch
      %363 = sbr.rel (0) target = $region165
    $region164: #{tpu_custom_call.1} parent=1 // pred_region
      %365 = dma.done [#allocation18], 128
    $region165: #{tpu_custom_call.1} parent=1 // pred_fallthru
      _
    // Predicated region
    $region166: #{tpu_custom_call.1} parent=1 // pred_check
      _
    $region167: #{tpu_custom_call.1} parent=1 // pred_check_branch
      %367 = sbr.rel (0) target = $region169
    $region168: #{tpu_custom_call.1} parent=1 // pred_region
      %369 = dma.done [#allocation13], 16
    $region169: #{tpu_custom_call.1} parent=1 // pred_fallthru
      _
    // Predicated region
    $region170: #{tpu_custom_call.1} parent=1 // pred_check
      _
    $region171: #{tpu_custom_call.1} parent=1 // pred_check_branch
      %371 = sbr.rel (0) target = $region173
    $region172: #{tpu_custom_call.1} parent=1 // pred_region
      %373 = dma.done [#allocation12], 16
    $region173: #{tpu_custom_call.1} parent=1 // pred_fallthru
      _
    // Predicated region
    $region174: #{tpu_custom_call.1} parent=1 // pred_check
      _
    $region175: #{tpu_custom_call.1} parent=1 // pred_check_branch
      %375 = sbr.rel (0) target = $region177
    $region176: #{tpu_custom_call.1} parent=1 // pred_region
      %377 = dma.done [#allocation18], 32
    $region177: #{tpu_custom_call.1} parent=1 // pred_fallthru
      _
    // Predicated region
    $region178: #{tpu_custom_call.1} parent=1 // pred_check
      _
    $region179: #{tpu_custom_call.1} parent=1 // pred_check_branch
      %379 = sbr.rel (0) target = $region181
    $region180: #{tpu_custom_call.1} parent=1 // pred_region
      %381 = dma.done [#allocation23], 16
    $region181: #{tpu_custom_call.1} parent=1 // pred_fallthru
      _
    // Predicated region
    $region182: #{tpu_custom_call.1} parent=1 // pred_check
      _
    $region183: #{tpu_custom_call.1} parent=1 // pred_check_branch
      %383 = sbr.rel (0) target = $region185
    $region184: #{tpu_custom_call.1} parent=1 // pred_region
      %385 = dma.done [#allocation23], 2048
    $region185: #{tpu_custom_call.1} parent=1 // pred_fallthru
      _
    // Predicated region
    $region186: #{tpu_custom_call.1} parent=1 // pred_check
      _
    $region187: #{tpu_custom_call.1} parent=1 // pred_check_branch
      %387 = sbr.rel (0) target = $region189
    $region188: #{tpu_custom_call.1} parent=1 // pred_region
      %389 = dma.done [#allocation26], 16
    $region189: #{tpu_custom_call.1} parent=1 // pred_fallthru
      _
    // Predicated region
    $region190: #{tpu_custom_call.1} parent=1 // pred_check
      _
    $region191: #{tpu_custom_call.1} parent=1 // pred_check_branch
      %391 = sbr.rel (0) target = $region193
    $region192: #{tpu_custom_call.1} parent=1 // pred_region
      %393 = dma.done [#allocation26], 16
    $region193: #{tpu_custom_call.1} parent=1 // pred_fallthru
      _
    // Predicated region
    $region194: #{tpu_custom_call.1} parent=1 // pred_check
      _
    $region195: #{tpu_custom_call.1} parent=1 // pred_check_branch
      %395 = sbr.rel (0) target = $region197
    $region196: #{tpu_custom_call.1} parent=1 // pred_region
      %397 = dma.done [#allocation29], 32
    $region197: #{tpu_custom_call.1} parent=1 // pred_fallthru
      _
    // Predicated region
    $region198: #{tpu_custom_call.1} parent=1 // pred_check
      _
    $region199: #{tpu_custom_call.1} parent=1 // pred_check_branch
      %399 = sbr.rel (0) target = $region201
    $region200: #{tpu_custom_call.1} parent=1 // pred_region
      %401 = dma.done [#allocation29], 4096
    $region201: #{tpu_custom_call.1} parent=1 // pred_fallthru
      _
    // Predicated region
    $region202: #{tpu_custom_call.1} parent=1 // pred_check
      _
    $region203: #{tpu_custom_call.1} parent=1 // pred_check_branch
      %403 = sbr.rel (0) target = $region205
    $region204: #{tpu_custom_call.1} parent=1 // pred_region
      %405 = dma.done [#allocation32], 16
    $region205: #{tpu_custom_call.1} parent=1 // pred_fallthru
      _
    // Predicated region
    $region206: #{tpu_custom_call.1} parent=1 // pred_check
      _
    $region207: #{tpu_custom_call.1} parent=1 // pred_check_branch
      %407 = sbr.rel (0) target = $region209
    $region208: #{tpu_custom_call.1} parent=1 // pred_region
      %409 = dma.done [#allocation32], 2048
    $region209: #{tpu_custom_call.1} parent=1 // pred_fallthru
      _
    // Predicated region
    $region210: #{tpu_custom_call.1} parent=1 // pred_check
      _
    $region211: #{tpu_custom_call.1} parent=1 // pred_check_branch
      %411 = sbr.rel (0) target = $region213
    $region212: #{tpu_custom_call.1} parent=1 // pred_region
      %413 = dma.done [#allocation35], 16
    $region213: #{tpu_custom_call.1} parent=1 // pred_fallthru
      _
    // Predicated region
    $region214: #{tpu_custom_call.1} parent=1 // pred_check
      _
    $region215: #{tpu_custom_call.1} parent=1 // pred_check_branch
      %415 = sbr.rel (0) target = $region217
    $region216: #{tpu_custom_call.1} parent=1 // pred_region
      %417 = dma.done [#allocation35], 16
    $region217: #{tpu_custom_call.1} parent=1 // pred_fallthru
      _
    // Predicated region
    $region218: #{tpu_custom_call.1} parent=1 // pred_check
      _
    $region219: #{tpu_custom_call.1} parent=1 // pred_check_branch
      %419 = sbr.rel (0) target = $region221
    $region220: #{tpu_custom_call.1} parent=1 // pred_region
      %421 = dma.done [#allocation38], 4096
    $region221: #{tpu_custom_call.1} parent=1 // pred_fallthru
      _
    // Predicated region
    $region222: #{tpu_custom_call.1} parent=1 // pred_check
      _
    $region223: #{tpu_custom_call.1} parent=1 // pred_check_branch
      %423 = sbr.rel (0) target = $region225
    $region224: #{tpu_custom_call.1} parent=1 // pred_region
      %425 = dma.done [#allocation38], 2048
    $region225: #{tpu_custom_call.1} parent=1 // pred_fallthru
      _
    %426 = sfence
    %v427 = vld [vmem:[#allocation9] sm:$0xff]
    %v428 = vld [vmem:[#allocation14] sm:$0xff]
    %v429 = vld [vmem:[#allocation16] sm:$0xff]
    %v430 = vld [vmem:[#allocation17] sm:$0xff]
    %s431 = sld [smem:[#allocation2]]
    %s432 = sld [smem:[#allocation3]]
    %s433 = sld [smem:[#allocation4]]
    %s434 = sld [smem:[#allocation5]]
    %s435 = sld [smem:[#allocation19]]
    %s436 = sld [smem:[#allocation19 + $0x1]]
    %s437 = sld [smem:[#allocation6]]
    %s438 = sld [smem:[#allocation20]]
    %s439 = sld [smem:[#allocation20 + $0x1]]
    %s440 = sld [smem:[#allocation7]]
    %v441 = vstv %s431
    %v442 = vmul.f32 %v427, %v441
    %v443 = vstv %s432
    %v444 = vadd.f32 %v442, %v443
    %v445 = vstv %s435
    %v446 = vmul.f32 %v428, %v445
    %v447 = vstv %s436
    %v448 = vmul.f32 %v429, %v447
    %v449 = vadd.f32 %v446, %v448
    %v450 = vstv %s437
    %v451 = vadd.f32 %v449, %v450
    %vm452 = vcmp.gt.f32.partialorder %v430, 0.5
    %v453 = vstv %s433
    %v454 = vmul.f32 %v427, %v453
    %v455 = vstv %s434
    %v456 = vadd.f32 %v454, %v455
    %v457 = vsel %vm452, 1, 0
    %v458 = vrot.slane %v457, 1
    %v459 = vrot.slane %v457, 2
    %v460 = vrot.slane %v457, 3
    %v461 = vrot.slane %v457, 4
    %v462 = vrot.slane %v457, 5
    %v463 = vrot.slane %v457, 6
    %v464 = vrot.slane %v457, 7
    %vm465 = vcmp.ne.s32.totalorder %v458, 0
    %vm466 = vcmp.ne.s32.totalorder %v459, 0
    %vm467 = vcmp.ne.s32.totalorder %v460, 0
    %vm468 = vcmp.ne.s32.totalorder %v461, 0
    %vm469 = vcmp.ne.s32.totalorder %v462, 0
    %vm470 = vcmp.ne.s32.totalorder %v463, 0
    %vm471 = vcmp.ne.s32.totalorder %v464, 0
    %v472 = vperm.slane %v444, 0
    %v473 = vlaneseq
    %v474 = vshrl.u32 %v473, 7
    %476 = vset.pattern.permute.xlu0 %v474
    %477 = vperm.xlu0 %476, %v472
    %v478 = vpop.permute.xlu0 %477
    %v479 = vlaneseq
    %v480 = vshrl.u32 %v479, 7
    %v481 = vadd.s32 %v480, 8
    %482 = vset.pattern.permute.xlu0 %v481
    %483 = vperm.xlu0 %482, %v472
    %v484 = vpop.permute.xlu0 %483
    %v485 = vperm.slane %v444, 1
    %v486 = vlaneseq
    %v487 = vshrl.u32 %v486, 7
    %489 = vset.pattern.permute.xlu0 %v487
    %490 = vperm.xlu0 %489, %v485
    %v491 = vpop.permute.xlu0 %490
    %v492 = vlaneseq
    %v493 = vshrl.u32 %v492, 7
    %v494 = vadd.s32 %v493, 8
    %495 = vset.pattern.permute.xlu0 %v494
    %496 = vperm.xlu0 %495, %v485
    %v497 = vpop.permute.xlu0 %496
    %v498 = vperm.slane %v444, 2
    %v499 = vlaneseq
    %v500 = vshrl.u32 %v499, 7
    %502 = vset.pattern.permute.xlu0 %v500
    %503 = vperm.xlu0 %502, %v498
    %v504 = vpop.permute.xlu0 %503
    %v505 = vlaneseq
    %v506 = vshrl.u32 %v505, 7
    %v507 = vadd.s32 %v506, 8
    %508 = vset.pattern.permute.xlu0 %v507
    %509 = vperm.xlu0 %508, %v498
    %v510 = vpop.permute.xlu0 %509
    %v511 = vperm.slane %v444, 3
    %v512 = vlaneseq
    %v513 = vshrl.u32 %v512, 7
    %515 = vset.pattern.permute.xlu0 %v513
    %516 = vperm.xlu0 %515, %v511
    %v517 = vpop.permute.xlu0 %516
    %v518 = vlaneseq
    %v519 = vshrl.u32 %v518, 7
    %v520 = vadd.s32 %v519, 8
    %521 = vset.pattern.permute.xlu0 %v520
    %522 = vperm.xlu0 %521, %v511
    %v523 = vpop.permute.xlu0 %522
    %v524 = vperm.slane %v444, 4
    %v525 = vlaneseq
    %v526 = vshrl.u32 %v525, 7
    %528 = vset.pattern.permute.xlu0 %v526
    %529 = vperm.xlu0 %528, %v524
    %v530 = vpop.permute.xlu0 %529
    %v531 = vlaneseq
    %v532 = vshrl.u32 %v531, 7
    %v533 = vadd.s32 %v532, 8
    %534 = vset.pattern.permute.xlu0 %v533
    %535 = vperm.xlu0 %534, %v524
    %v536 = vpop.permute.xlu0 %535
    %v537 = vperm.slane %v444, 5
    %v538 = vlaneseq
    %v539 = vshrl.u32 %v538, 7
    %541 = vset.pattern.permute.xlu0 %v539
    %542 = vperm.xlu0 %541, %v537
    %v543 = vpop.permute.xlu0 %542
    %v544 = vlaneseq
    %v545 = vshrl.u32 %v544, 7
    %v546 = vadd.s32 %v545, 8
    %547 = vset.pattern.permute.xlu0 %v546
    %548 = vperm.xlu0 %547, %v537
    %v549 = vpop.permute.xlu0 %548
    %v550 = vperm.slane %v444, 6
    %v551 = vlaneseq
    %v552 = vshrl.u32 %v551, 7
    %554 = vset.pattern.permute.xlu0 %v552
    %555 = vperm.xlu0 %554, %v550
    %v556 = vpop.permute.xlu0 %555
    %v557 = vlaneseq
    %v558 = vshrl.u32 %v557, 7
    %v559 = vadd.s32 %v558, 8
    %560 = vset.pattern.permute.xlu0 %v559
    %561 = vperm.xlu0 %560, %v550
    %v562 = vpop.permute.xlu0 %561
    %v563 = vperm.slane %v444, 7
    %v564 = vlaneseq
    %v565 = vshrl.u32 %v564, 7
    %567 = vset.pattern.permute.xlu0 %v565
    %568 = vperm.xlu0 %567, %v563
    %v569 = vpop.permute.xlu0 %568
    %v570 = vlaneseq
    %v571 = vshrl.u32 %v570, 7
    %v572 = vadd.s32 %v571, 8
    %573 = vset.pattern.permute.xlu0 %v572
    %574 = vperm.xlu0 %573, %v563
    %v575 = vpop.permute.xlu0 %574
    %v577 = vrot.slane %v456, 1
    %v578 = vrot.slane %v456, 2
    %v579 = vrot.slane %v456, 3
    %v580 = vrot.slane %v456, 4
    %v581 = vrot.slane %v456, 5
    %v582 = vrot.slane %v456, 6
    %v583 = vrot.slane %v456, 7
    %v584 = vperm.slane %v456, 0
    %v585 = vperm.slane %v577, 0
    %v586 = vperm.slane %v578, 0
    %v587 = vperm.slane %v579, 0
    %v588 = vperm.slane %v580, 0
    %v589 = vperm.slane %v581, 0
    %v590 = vperm.slane %v582, 0
    %v591 = vperm.slane %v583, 0
    %v600 = vmul.f32 %v478, %v584
    %v601 = vmul.f32 %v484, %v584
    %v602 = vmul.f32 %v491, %v585
    %v603 = vmul.f32 %v497, %v585
    %v604 = vmul.f32 %v504, %v586
    %v605 = vmul.f32 %v510, %v586
    %v606 = vmul.f32 %v517, %v587
    %v607 = vmul.f32 %v523, %v587
    %v608 = vmul.f32 %v530, %v588
    %v609 = vmul.f32 %v536, %v588
    %v610 = vmul.f32 %v543, %v589
    %v611 = vmul.f32 %v549, %v589
    %v612 = vmul.f32 %v556, %v590
    %v613 = vmul.f32 %v562, %v590
    %v614 = vmul.f32 %v569, %v591
    %v615 = vmul.f32 %v575, %v591
    %v616 = vsel %vm465, 1, 0
    %v617 = vsel %vm466, 1, 0
    %v618 = vsel %vm467, 1, 0
    %v619 = vsel %vm468, 1, 0
    %v620 = vsel %vm469, 1, 0
    %v621 = vsel %vm470, 1, 0
    %v622 = vsel %vm471, 1, 0
    %v623 = vperm.slane %v457, 0
    %v624 = vperm.slane %v616, 0
    %v625 = vperm.slane %v617, 0
    %v626 = vperm.slane %v618, 0
    %v627 = vperm.slane %v619, 0
    %v628 = vperm.slane %v620, 0
    %v629 = vperm.slane %v621, 0
    %v630 = vperm.slane %v622, 0
    %vm631 = vcmp.eq.s32.totalorder %v623, 1
    %vm632 = vcmp.eq.s32.totalorder %v624, 1
    %vm633 = vcmp.eq.s32.totalorder %v625, 1
    %vm634 = vcmp.eq.s32.totalorder %v626, 1
    %vm635 = vcmp.eq.s32.totalorder %v627, 1
    %vm636 = vcmp.eq.s32.totalorder %v628, 1
    %vm637 = vcmp.eq.s32.totalorder %v629, 1
    %vm638 = vcmp.eq.s32.totalorder %v630, 1
    %v639 = vsel %vm631, %v600, -1e+09
    %v640 = vsel %vm631, %v601, -1e+09
    %v641 = vsel %vm632, %v602, -1e+09
    %v642 = vsel %vm632, %v603, -1e+09
    %v643 = vsel %vm633, %v604, -1e+09
    %v644 = vsel %vm633, %v605, -1e+09
    %v645 = vsel %vm634, %v606, -1e+09
    %v646 = vsel %vm634, %v607, -1e+09
    %v647 = vsel %vm635, %v608, -1e+09
    %v648 = vsel %vm635, %v609, -1e+09
    %v649 = vsel %vm636, %v610, -1e+09
    %v650 = vsel %vm636, %v611, -1e+09
    %v651 = vsel %vm637, %v612, -1e+09
    %v652 = vsel %vm637, %v613, -1e+09
    %v653 = vsel %vm638, %v614, -1e+09
    %v654 = vsel %vm638, %v615, -1e+09
    %vm655 = vcmask 130048
    %v656 = vsel %vm655, %v639, -inf
    %657 = vmax.xlane.f32.xlu0 %v656
    %v658 = vpop.xlane.xlu0 %657
    %v659 = vsel %vm655, %v640, -inf
    %660 = vmax.xlane.f32.xlu0 %v659
    %v661 = vpop.xlane.xlu0 %660
    %v662 = vsel %vm655, %v641, -inf
    %663 = vmax.xlane.f32.xlu0 %v662
    %v664 = vpop.xlane.xlu0 %663
    %v665 = vsel %vm655, %v642, -inf
    %666 = vmax.xlane.f32.xlu0 %v665
    %v667 = vpop.xlane.xlu0 %666
    %v668 = vsel %vm655, %v643, -inf
    %669 = vmax.xlane.f32.xlu0 %v668
    %v670 = vpop.xlane.xlu0 %669
    %v671 = vsel %vm655, %v644, -inf
    %672 = vmax.xlane.f32.xlu0 %v671
    %v673 = vpop.xlane.xlu0 %672
    %v674 = vsel %vm655, %v645, -inf
    %675 = vmax.xlane.f32.xlu0 %v674
    %v676 = vpop.xlane.xlu0 %675
    %v677 = vsel %vm655, %v646, -inf
    %678 = vmax.xlane.f32.xlu0 %v677
    %v679 = vpop.xlane.xlu0 %678
    %v680 = vsel %vm655, %v647, -inf
    %681 = vmax.xlane.f32.xlu0 %v680
    %v682 = vpop.xlane.xlu0 %681
    %v683 = vsel %vm655, %v648, -inf
    %684 = vmax.xlane.f32.xlu0 %v683
    %v685 = vpop.xlane.xlu0 %684
    %v686 = vsel %vm655, %v649, -inf
    %687 = vmax.xlane.f32.xlu0 %v686
    %v688 = vpop.xlane.xlu0 %687
    %v689 = vsel %vm655, %v650, -inf
    %690 = vmax.xlane.f32.xlu0 %v689
    %v691 = vpop.xlane.xlu0 %690
    %v692 = vsel %vm655, %v651, -inf
    %693 = vmax.xlane.f32.xlu0 %v692
    %v694 = vpop.xlane.xlu0 %693
    %v695 = vsel %vm655, %v652, -inf
    %696 = vmax.xlane.f32.xlu0 %v695
    %v697 = vpop.xlane.xlu0 %696
    %v698 = vsel %vm655, %v653, -inf
    %699 = vmax.xlane.f32.xlu0 %v698
    %v700 = vpop.xlane.xlu0 %699
    %v701 = vsel %vm655, %v654, -inf
    %702 = vmax.xlane.f32.xlu0 %v701
    %v703 = vpop.xlane.xlu0 %702
    %v704 = vsub.f32 -inf, %v658
    %v705 = vsub.f32 -inf, %v661
    %v706 = vsub.f32 -inf, %v664
    %v707 = vsub.f32 -inf, %v667
    %v708 = vsub.f32 -inf, %v670
    %v709 = vsub.f32 -inf, %v673
    %v710 = vsub.f32 -inf, %v676
    %v711 = vsub.f32 -inf, %v679
    %v712 = vsub.f32 -inf, %v682
    %v713 = vsub.f32 -inf, %v685
    %v714 = vsub.f32 -inf, %v688
    %v715 = vsub.f32 -inf, %v691
    %v716 = vsub.f32 -inf, %v694
    %v717 = vsub.f32 -inf, %v697
    %v718 = vsub.f32 -inf, %v700
    %v719 = vsub.f32 -inf, %v703
    %v720 = vmul.f32 %v704, 1.442695
    %v721 = vpow.pop %v720
    %v722 = vmul.f32 %v705, 1.442695
    %v723 = vpow.pop %v722
    %v724 = vmul.f32 %v706, 1.442695
    %v725 = vpow.pop %v724
    %v726 = vmul.f32 %v707, 1.442695
    %v727 = vpow.pop %v726
    %v728 = vmul.f32 %v708, 1.442695
    %v729 = vpow.pop %v728
    %v730 = vmul.f32 %v709, 1.442695
    %v731 = vpow.pop %v730
    %v732 = vmul.f32 %v710, 1.442695
    %v733 = vpow.pop %v732
    %v734 = vmul.f32 %v711, 1.442695
    %v735 = vpow.pop %v734
    %v736 = vmul.f32 %v712, 1.442695
    %v737 = vpow.pop %v736
    %v738 = vmul.f32 %v713, 1.442695
    %v739 = vpow.pop %v738
    %v740 = vmul.f32 %v714, 1.442695
    %v741 = vpow.pop %v740
    %v742 = vmul.f32 %v715, 1.442695
    %v743 = vpow.pop %v742
    %v744 = vmul.f32 %v716, 1.442695
    %v745 = vpow.pop %v744
    %v746 = vmul.f32 %v717, 1.442695
    %v747 = vpow.pop %v746
    %v748 = vmul.f32 %v718, 1.442695
    %v749 = vpow.pop %v748
    %v750 = vmul.f32 %v719, 1.442695
    %v751 = vpow.pop %v750
    %v752 = vsub.f32 %v639, %v658
    %v753 = vsub.f32 %v640, %v661
    %v754 = vsub.f32 %v641, %v664
    %v755 = vsub.f32 %v642, %v667
    %v756 = vsub.f32 %v643, %v670
    %v757 = vsub.f32 %v644, %v673
    %v758 = vsub.f32 %v645, %v676
    %v759 = vsub.f32 %v646, %v679
    %v760 = vsub.f32 %v647, %v682
    %v761 = vsub.f32 %v648, %v685
    %v762 = vsub.f32 %v649, %v688
    %v763 = vsub.f32 %v650, %v691
    %v764 = vsub.f32 %v651, %v694
    %v765 = vsub.f32 %v652, %v697
    %v766 = vsub.f32 %v653, %v700
    %v767 = vsub.f32 %v654, %v703
    %v768 = vmul.f32 %v752, 1.442695
    %v769 = vpow.pop %v768
    %v770 = vmul.f32 %v753, 1.442695
    %v771 = vpow.pop %v770
    %v772 = vmul.f32 %v754, 1.442695
    %v773 = vpow.pop %v772
    %v774 = vmul.f32 %v755, 1.442695
    %v775 = vpow.pop %v774
    %v776 = vmul.f32 %v756, 1.442695
    %v777 = vpow.pop %v776
    %v778 = vmul.f32 %v757, 1.442695
    %v779 = vpow.pop %v778
    %v780 = vmul.f32 %v758, 1.442695
    %v781 = vpow.pop %v780
    %v782 = vmul.f32 %v759, 1.442695
    %v783 = vpow.pop %v782
    %v784 = vmul.f32 %v760, 1.442695
    %v785 = vpow.pop %v784
    %v786 = vmul.f32 %v761, 1.442695
    %v787 = vpow.pop %v786
    %v788 = vmul.f32 %v762, 1.442695
    %v789 = vpow.pop %v788
    %v790 = vmul.f32 %v763, 1.442695
    %v791 = vpow.pop %v790
    %v792 = vmul.f32 %v764, 1.442695
    %v793 = vpow.pop %v792
    %v794 = vmul.f32 %v765, 1.442695
    %v795 = vpow.pop %v794
    %v796 = vmul.f32 %v766, 1.442695
    %v797 = vpow.pop %v796
    %v798 = vmul.f32 %v767, 1.442695
    %v799 = vpow.pop %v798
    %v800 = vmul.f32 %v721, 0.0
    %v801 = vmul.f32 %v723, 0.0
    %v802 = vmul.f32 %v725, 0.0
    %v803 = vmul.f32 %v727, 0.0
    %v804 = vmul.f32 %v729, 0.0
    %v805 = vmul.f32 %v731, 0.0
    %v806 = vmul.f32 %v733, 0.0
    %v807 = vmul.f32 %v735, 0.0
    %v808 = vmul.f32 %v737, 0.0
    %v809 = vmul.f32 %v739, 0.0
    %v810 = vmul.f32 %v741, 0.0
    %v811 = vmul.f32 %v743, 0.0
    %v812 = vmul.f32 %v745, 0.0
    %v813 = vmul.f32 %v747, 0.0
    %v814 = vmul.f32 %v749, 0.0
    %v815 = vmul.f32 %v751, 0.0
    %v816 = vsel %vm655, %v769, 0.0
    %817 = vadd.xlane.f32.xlu0 %v816
    %v818 = vpop.xlane.xlu0 %817
    %v819 = vsel %vm655, %v771, 0.0
    %820 = vadd.xlane.f32.xlu0 %v819
    %v821 = vpop.xlane.xlu0 %820
    %v822 = vsel %vm655, %v773, 0.0
    %823 = vadd.xlane.f32.xlu0 %v822
    %v824 = vpop.xlane.xlu0 %823
    %v825 = vsel %vm655, %v775, 0.0
    %826 = vadd.xlane.f32.xlu0 %v825
    %v827 = vpop.xlane.xlu0 %826
    %v828 = vsel %vm655, %v777, 0.0
    %829 = vadd.xlane.f32.xlu0 %v828
    %v830 = vpop.xlane.xlu0 %829
    %v831 = vsel %vm655, %v779, 0.0
    %832 = vadd.xlane.f32.xlu0 %v831
    %v833 = vpop.xlane.xlu0 %832
    %v834 = vsel %vm655, %v781, 0.0
    %835 = vadd.xlane.f32.xlu0 %v834
    %v836 = vpop.xlane.xlu0 %835
    %v837 = vsel %vm655, %v783, 0.0
    %838 = vadd.xlane.f32.xlu0 %v837
    %v839 = vpop.xlane.xlu0 %838
    %v840 = vsel %vm655, %v785, 0.0
    %841 = vadd.xlane.f32.xlu0 %v840
    %v842 = vpop.xlane.xlu0 %841
    %v843 = vsel %vm655, %v787, 0.0
    %844 = vadd.xlane.f32.xlu0 %v843
    %v845 = vpop.xlane.xlu0 %844
    %v846 = vsel %vm655, %v789, 0.0
    %847 = vadd.xlane.f32.xlu0 %v846
    %v848 = vpop.xlane.xlu0 %847
    %v849 = vsel %vm655, %v791, 0.0
    %850 = vadd.xlane.f32.xlu0 %v849
    %v851 = vpop.xlane.xlu0 %850
    %v852 = vsel %vm655, %v793, 0.0
    %853 = vadd.xlane.f32.xlu0 %v852
    %v854 = vpop.xlane.xlu0 %853
    %v855 = vsel %vm655, %v795, 0.0
    %856 = vadd.xlane.f32.xlu0 %v855
    %v857 = vpop.xlane.xlu0 %856
    %v858 = vsel %vm655, %v797, 0.0
    %859 = vadd.xlane.f32.xlu0 %v858
    %v860 = vpop.xlane.xlu0 %859
    %v861 = vsel %vm655, %v799, 0.0
    %862 = vadd.xlane.f32.xlu0 %v861
    %v863 = vpop.xlane.xlu0 %862
    %v864 = vadd.f32 %v800, %v818
    %v865 = vadd.f32 %v801, %v821
    %v866 = vadd.f32 %v802, %v824
    %v867 = vadd.f32 %v803, %v827
    %v868 = vadd.f32 %v804, %v830
    %v869 = vadd.f32 %v805, %v833
    %v870 = vadd.f32 %v806, %v836
    %v871 = vadd.f32 %v807, %v839
    %v872 = vadd.f32 %v808, %v842
    %v873 = vadd.f32 %v809, %v845
    %v874 = vadd.f32 %v810, %v848
    %v875 = vadd.f32 %v811, %v851
    %v876 = vadd.f32 %v812, %v854
    %v877 = vadd.f32 %v813, %v857
    %v878 = vadd.f32 %v814, %v860
    %v879 = vadd.f32 %v815, %v863
    %v881 = vrot.slane %v427, 1
    %v882 = vrot.slane %v427, 2
    %v883 = vrot.slane %v427, 3
    %v884 = vrot.slane %v427, 4
    %v885 = vrot.slane %v427, 5
    %v886 = vrot.slane %v427, 6
    %v887 = vrot.slane %v427, 7
    %v888 = vperm.slane %v427, 0
    %v889 = vperm.slane %v881, 0
    %v890 = vperm.slane %v882, 0
    %v891 = vperm.slane %v883, 0
    %v892 = vperm.slane %v884, 0
    %v893 = vperm.slane %v885, 0
    %v894 = vperm.slane %v886, 0
    %v895 = vperm.slane %v887, 0
    %v904 = vmul.f32 %v769, %v888
    %v905 = vmul.f32 %v771, %v888
    %v906 = vmul.f32 %v773, %v889
    %v907 = vmul.f32 %v775, %v889
    %v908 = vmul.f32 %v777, %v890
    %v909 = vmul.f32 %v779, %v890
    %v910 = vmul.f32 %v781, %v891
    %v911 = vmul.f32 %v783, %v891
    %v912 = vmul.f32 %v785, %v892
    %v913 = vmul.f32 %v787, %v892
    %v914 = vmul.f32 %v789, %v893
    %v915 = vmul.f32 %v791, %v893
    %v916 = vmul.f32 %v793, %v894
    %v917 = vmul.f32 %v795, %v894
    %v918 = vmul.f32 %v797, %v895
    %v919 = vmul.f32 %v799, %v895
    %v920 = vsel %vm655, %v904, 0.0
    %921 = vadd.xlane.f32.xlu0 %v920
    %v922 = vpop.xlane.xlu0 %921
    %v923 = vsel %vm655, %v905, 0.0
    %924 = vadd.xlane.f32.xlu0 %v923
    %v925 = vpop.xlane.xlu0 %924
    %v926 = vsel %vm655, %v906, 0.0
    %927 = vadd.xlane.f32.xlu0 %v926
    %v928 = vpop.xlane.xlu0 %927
    %v929 = vsel %vm655, %v907, 0.0
    %930 = vadd.xlane.f32.xlu0 %v929
    %v931 = vpop.xlane.xlu0 %930
    %v932 = vsel %vm655, %v908, 0.0
    %933 = vadd.xlane.f32.xlu0 %v932
    %v934 = vpop.xlane.xlu0 %933
    %v935 = vsel %vm655, %v909, 0.0
    %936 = vadd.xlane.f32.xlu0 %v935
    %v937 = vpop.xlane.xlu0 %936
    %v938 = vsel %vm655, %v910, 0.0
    %939 = vadd.xlane.f32.xlu0 %v938
    %v940 = vpop.xlane.xlu0 %939
    %v941 = vsel %vm655, %v911, 0.0
    %942 = vadd.xlane.f32.xlu0 %v941
    %v943 = vpop.xlane.xlu0 %942
    %v944 = vsel %vm655, %v912, 0.0
    %945 = vadd.xlane.f32.xlu0 %v944
    %v946 = vpop.xlane.xlu0 %945
    %v947 = vsel %vm655, %v913, 0.0
    %948 = vadd.xlane.f32.xlu0 %v947
    %v949 = vpop.xlane.xlu0 %948
    %v950 = vsel %vm655, %v914, 0.0
    %951 = vadd.xlane.f32.xlu0 %v950
    %v952 = vpop.xlane.xlu0 %951
    %v953 = vsel %vm655, %v915, 0.0
    %954 = vadd.xlane.f32.xlu0 %v953
    %v955 = vpop.xlane.xlu0 %954
    %v956 = vsel %vm655, %v916, 0.0
    %957 = vadd.xlane.f32.xlu0 %v956
    %v958 = vpop.xlane.xlu0 %957
    %v959 = vsel %vm655, %v917, 0.0
    %960 = vadd.xlane.f32.xlu0 %v959
    %v961 = vpop.xlane.xlu0 %960
    %v962 = vsel %vm655, %v918, 0.0
    %963 = vadd.xlane.f32.xlu0 %v962
    %v964 = vpop.xlane.xlu0 %963
    %v965 = vsel %vm655, %v919, 0.0
    %966 = vadd.xlane.f32.xlu0 %v965
    %v967 = vpop.xlane.xlu0 %966
    %v968 = vadd.f32 %v800, %v922
    %v969 = vadd.f32 %v801, %v925
    %v970 = vadd.f32 %v802, %v928
    %v971 = vadd.f32 %v803, %v931
    %v972 = vadd.f32 %v804, %v934
    %v973 = vadd.f32 %v805, %v937
    %v974 = vadd.f32 %v806, %v940
    %v975 = vadd.f32 %v807, %v943
    %v976 = vadd.f32 %v808, %v946
    %v977 = vadd.f32 %v809, %v949
    %v978 = vadd.f32 %v810, %v952
    %v979 = vadd.f32 %v811, %v955
    %v980 = vadd.f32 %v812, %v958
    %v981 = vadd.f32 %v813, %v961
    %v982 = vadd.f32 %v814, %v964
    %v983 = vadd.f32 %v815, %v967
    %v984 = vstv %s438
    %v985 = vmul.f32 %v428, %v984
    %v986 = vstv %s439
    %v987 = vmul.f32 %v429, %v986
    %v988 = vadd.f32 %v985, %v987
    %v989 = vstv %s440
    %v990 = vadd.f32 %v988, %v989
    %v991 = vperm.slane %v451, 0
    %v992 = vlaneseq
    %v993 = vshrl.u32 %v992, 7
    %995 = vset.pattern.permute.xlu0 %v993
    %996 = vperm.xlu0 %995, %v991
    %v997 = vpop.permute.xlu0 %996
    %v998 = vlaneseq
    %v999 = vshrl.u32 %v998, 7
    %v1000 = vadd.s32 %v999, 8
    %1001 = vset.pattern.permute.xlu0 %v1000
    %1002 = vperm.xlu0 %1001, %v991
    %v1003 = vpop.permute.xlu0 %1002
    %v1004 = vperm.slane %v451, 1
    %v1005 = vlaneseq
    %v1006 = vshrl.u32 %v1005, 7
    %1008 = vset.pattern.permute.xlu0 %v1006
    %1009 = vperm.xlu0 %1008, %v1004
    %v1010 = vpop.permute.xlu0 %1009
    %v1011 = vlaneseq
    %v1012 = vshrl.u32 %v1011, 7
    %v1013 = vadd.s32 %v1012, 8
    %1014 = vset.pattern.permute.xlu0 %v1013
    %1015 = vperm.xlu0 %1014, %v1004
    %v1016 = vpop.permute.xlu0 %1015
    %v1017 = vperm.slane %v451, 2
    %v1018 = vlaneseq
    %v1019 = vshrl.u32 %v1018, 7
    %1021 = vset.pattern.permute.xlu0 %v1019
    %1022 = vperm.xlu0 %1021, %v1017
    %v1023 = vpop.permute.xlu0 %1022
    %v1024 = vlaneseq
    %v1025 = vshrl.u32 %v1024, 7
    %v1026 = vadd.s32 %v1025, 8
    %1027 = vset.pattern.permute.xlu0 %v1026
    %1028 = vperm.xlu0 %1027, %v1017
    %v1029 = vpop.permute.xlu0 %1028
    %v1030 = vperm.slane %v451, 3
    %v1031 = vlaneseq
    %v1032 = vshrl.u32 %v1031, 7
    %1034 = vset.pattern.permute.xlu0 %v1032
    %1035 = vperm.xlu0 %1034, %v1030
    %v1036 = vpop.permute.xlu0 %1035
    %v1037 = vlaneseq
    %v1038 = vshrl.u32 %v1037, 7
    %v1039 = vadd.s32 %v1038, 8
    %1040 = vset.pattern.permute.xlu0 %v1039
    %1041 = vperm.xlu0 %1040, %v1030
    %v1042 = vpop.permute.xlu0 %1041
    %v1043 = vperm.slane %v451, 4
    %v1044 = vlaneseq
    %v1045 = vshrl.u32 %v1044, 7
    %1047 = vset.pattern.permute.xlu0 %v1045
    %1048 = vperm.xlu0 %1047, %v1043
    %v1049 = vpop.permute.xlu0 %1048
    %v1050 = vlaneseq
    %v1051 = vshrl.u32 %v1050, 7
    %v1052 = vadd.s32 %v1051, 8
    %1053 = vset.pattern.permute.xlu0 %v1052
    %1054 = vperm.xlu0 %1053, %v1043
    %v1055 = vpop.permute.xlu0 %1054
    %v1056 = vperm.slane %v451, 5
    %v1057 = vlaneseq
    %v1058 = vshrl.u32 %v1057, 7
    %1060 = vset.pattern.permute.xlu0 %v1058
    %1061 = vperm.xlu0 %1060, %v1056
    %v1062 = vpop.permute.xlu0 %1061
    %v1063 = vlaneseq
    %v1064 = vshrl.u32 %v1063, 7
    %v1065 = vadd.s32 %v1064, 8
    %1066 = vset.pattern.permute.xlu0 %v1065
    %1067 = vperm.xlu0 %1066, %v1056
    %v1068 = vpop.permute.xlu0 %1067
    %v1069 = vperm.slane %v451, 6
    %v1070 = vlaneseq
    %v1071 = vshrl.u32 %v1070, 7
    %1073 = vset.pattern.permute.xlu0 %v1071
    %1074 = vperm.xlu0 %1073, %v1069
    %v1075 = vpop.permute.xlu0 %1074
    %v1076 = vlaneseq
    %v1077 = vshrl.u32 %v1076, 7
    %v1078 = vadd.s32 %v1077, 8
    %1079 = vset.pattern.permute.xlu0 %v1078
    %1080 = vperm.xlu0 %1079, %v1069
    %v1081 = vpop.permute.xlu0 %1080
    %v1082 = vperm.slane %v451, 7
    %v1083 = vlaneseq
    %v1084 = vshrl.u32 %v1083, 7
    %1086 = vset.pattern.permute.xlu0 %v1084
    %1087 = vperm.xlu0 %1086, %v1082
    %v1088 = vpop.permute.xlu0 %1087
    %v1089 = vlaneseq
    %v1090 = vshrl.u32 %v1089, 7
    %v1091 = vadd.s32 %v1090, 8
    %1092 = vset.pattern.permute.xlu0 %v1091
    %1093 = vperm.xlu0 %1092, %v1082
    %v1094 = vpop.permute.xlu0 %1093
    %v1096 = vrot.slane %v990, 1
    %v1097 = vrot.slane %v990, 2
    %v1098 = vrot.slane %v990, 3
    %v1099 = vrot.slane %v990, 4
    %v1100 = vrot.slane %v990, 5
    %v1101 = vrot.slane %v990, 6
    %v1102 = vrot.slane %v990, 7
    %v1103 = vperm.slane %v990, 0
    %v1104 = vperm.slane %v1096, 0
    %v1105 = vperm.slane %v1097, 0
    %v1106 = vperm.slane %v1098, 0
    %v1107 = vperm.slane %v1099, 0
    %v1108 = vperm.slane %v1100, 0
    %v1109 = vperm.slane %v1101, 0
    %v1110 = vperm.slane %v1102, 0
    %v1119 = vmul.f32 %v997, %v1103
    %v1120 = vmul.f32 %v1003, %v1103
    %v1121 = vmul.f32 %v1010, %v1104
    %v1122 = vmul.f32 %v1016, %v1104
    %v1123 = vmul.f32 %v1023, %v1105
    %v1124 = vmul.f32 %v1029, %v1105
    %v1125 = vmul.f32 %v1036, %v1106
    %v1126 = vmul.f32 %v1042, %v1106
    %v1127 = vmul.f32 %v1049, %v1107
    %v1128 = vmul.f32 %v1055, %v1107
    %v1129 = vmul.f32 %v1062, %v1108
    %v1130 = vmul.f32 %v1068, %v1108
    %v1131 = vmul.f32 %v1075, %v1109
    %v1132 = vmul.f32 %v1081, %v1109
    %v1133 = vmul.f32 %v1088, %v1110
    %v1134 = vmul.f32 %v1094, %v1110
    %v1135 = vsel %vm631, %v1119, -1e+09
    %v1136 = vsel %vm631, %v1120, -1e+09
    %v1137 = vsel %vm632, %v1121, -1e+09
    %v1138 = vsel %vm632, %v1122, -1e+09
    %v1139 = vsel %vm633, %v1123, -1e+09
    %v1140 = vsel %vm633, %v1124, -1e+09
    %v1141 = vsel %vm634, %v1125, -1e+09
    %v1142 = vsel %vm634, %v1126, -1e+09
    %v1143 = vsel %vm635, %v1127, -1e+09
    %v1144 = vsel %vm635, %v1128, -1e+09
    %v1145 = vsel %vm636, %v1129, -1e+09
    %v1146 = vsel %vm636, %v1130, -1e+09
    %v1147 = vsel %vm637, %v1131, -1e+09
    %v1148 = vsel %vm637, %v1132, -1e+09
    %v1149 = vsel %vm638, %v1133, -1e+09
    %v1150 = vsel %vm638, %v1134, -1e+09
    %v1151 = vsel %vm655, %v1135, -inf
    %1152 = vmax.xlane.f32.xlu0 %v1151
    %v1153 = vpop.xlane.xlu0 %1152
    %v1154 = vsel %vm655, %v1136, -inf
    %1155 = vmax.xlane.f32.xlu0 %v1154
    %v1156 = vpop.xlane.xlu0 %1155
    %v1157 = vsel %vm655, %v1137, -inf
    %1158 = vmax.xlane.f32.xlu0 %v1157
    %v1159 = vpop.xlane.xlu0 %1158
    %v1160 = vsel %vm655, %v1138, -inf
    %1161 = vmax.xlane.f32.xlu0 %v1160
    %v1162 = vpop.xlane.xlu0 %1161
    %v1163 = vsel %vm655, %v1139, -inf
    %1164 = vmax.xlane.f32.xlu0 %v1163
    %v1165 = vpop.xlane.xlu0 %1164
    %v1166 = vsel %vm655, %v1140, -inf
    %1167 = vmax.xlane.f32.xlu0 %v1166
    %v1168 = vpop.xlane.xlu0 %1167
    %v1169 = vsel %vm655, %v1141, -inf
    %1170 = vmax.xlane.f32.xlu0 %v1169
    %v1171 = vpop.xlane.xlu0 %1170
    %v1172 = vsel %vm655, %v1142, -inf
    %1173 = vmax.xlane.f32.xlu0 %v1172
    %v1174 = vpop.xlane.xlu0 %1173
    %v1175 = vsel %vm655, %v1143, -inf
    %1176 = vmax.xlane.f32.xlu0 %v1175
    %v1177 = vpop.xlane.xlu0 %1176
    %v1178 = vsel %vm655, %v1144, -inf
    %1179 = vmax.xlane.f32.xlu0 %v1178
    %v1180 = vpop.xlane.xlu0 %1179
    %v1181 = vsel %vm655, %v1145, -inf
    %1182 = vmax.xlane.f32.xlu0 %v1181
    %v1183 = vpop.xlane.xlu0 %1182
    %v1184 = vsel %vm655, %v1146, -inf
    %1185 = vmax.xlane.f32.xlu0 %v1184
    %v1186 = vpop.xlane.xlu0 %1185
    %v1187 = vsel %vm655, %v1147, -inf
    %1188 = vmax.xlane.f32.xlu0 %v1187
    %v1189 = vpop.xlane.xlu0 %1188
    %v1190 = vsel %vm655, %v1148, -inf
    %1191 = vmax.xlane.f32.xlu0 %v1190
    %v1192 = vpop.xlane.xlu0 %1191
    %v1193 = vsel %vm655, %v1149, -inf
    %1194 = vmax.xlane.f32.xlu0 %v1193
    %v1195 = vpop.xlane.xlu0 %1194
    %v1196 = vsel %vm655, %v1150, -inf
    %1197 = vmax.xlane.f32.xlu0 %v1196
    %v1198 = vpop.xlane.xlu0 %1197
    %v1199 = vsub.f32 -inf, %v1153
    %v1200 = vsub.f32 -inf, %v1156
    %v1201 = vsub.f32 -inf, %v1159
    %v1202 = vsub.f32 -inf, %v1162
    %v1203 = vsub.f32 -inf, %v1165
    %v1204 = vsub.f32 -inf, %v1168
    %v1205 = vsub.f32 -inf, %v1171
    %v1206 = vsub.f32 -inf, %v1174
    %v1207 = vsub.f32 -inf, %v1177
    %v1208 = vsub.f32 -inf, %v1180
    %v1209 = vsub.f32 -inf, %v1183
    %v1210 = vsub.f32 -inf, %v1186
    %v1211 = vsub.f32 -inf, %v1189
    %v1212 = vsub.f32 -inf, %v1192
    %v1213 = vsub.f32 -inf, %v1195
    %v1214 = vsub.f32 -inf, %v1198
    %v1215 = vmul.f32 %v1199, 1.442695
    %v1216 = vpow.pop %v1215
    %v1217 = vmul.f32 %v1200, 1.442695
    %v1218 = vpow.pop %v1217
    %v1219 = vmul.f32 %v1201, 1.442695
    %v1220 = vpow.pop %v1219
    %v1221 = vmul.f32 %v1202, 1.442695
    %v1222 = vpow.pop %v1221
    %v1223 = vmul.f32 %v1203, 1.442695
    %v1224 = vpow.pop %v1223
    %v1225 = vmul.f32 %v1204, 1.442695
    %v1226 = vpow.pop %v1225
    %v1227 = vmul.f32 %v1205, 1.442695
    %v1228 = vpow.pop %v1227
    %v1229 = vmul.f32 %v1206, 1.442695
    %v1230 = vpow.pop %v1229
    %v1231 = vmul.f32 %v1207, 1.442695
    %v1232 = vpow.pop %v1231
    %v1233 = vmul.f32 %v1208, 1.442695
    %v1234 = vpow.pop %v1233
    %v1235 = vmul.f32 %v1209, 1.442695
    %v1236 = vpow.pop %v1235
    %v1237 = vmul.f32 %v1210, 1.442695
    %v1238 = vpow.pop %v1237
    %v1239 = vmul.f32 %v1211, 1.442695
    %v1240 = vpow.pop %v1239
    %v1241 = vmul.f32 %v1212, 1.442695
    %v1242 = vpow.pop %v1241
    %v1243 = vmul.f32 %v1213, 1.442695
    %v1244 = vpow.pop %v1243
    %v1245 = vmul.f32 %v1214, 1.442695
    %v1246 = vpow.pop %v1245
    %v1247 = vsub.f32 %v1135, %v1153
    %v1248 = vsub.f32 %v1136, %v1156
    %v1249 = vsub.f32 %v1137, %v1159
    %v1250 = vsub.f32 %v1138, %v1162
    %v1251 = vsub.f32 %v1139, %v1165
    %v1252 = vsub.f32 %v1140, %v1168
    %v1253 = vsub.f32 %v1141, %v1171
    %v1254 = vsub.f32 %v1142, %v1174
    %v1255 = vsub.f32 %v1143, %v1177
    %v1256 = vsub.f32 %v1144, %v1180
    %v1257 = vsub.f32 %v1145, %v1183
    %v1258 = vsub.f32 %v1146, %v1186
    %v1259 = vsub.f32 %v1147, %v1189
    %v1260 = vsub.f32 %v1148, %v1192
    %v1261 = vsub.f32 %v1149, %v1195
    %v1262 = vsub.f32 %v1150, %v1198
    %v1263 = vmul.f32 %v1247, 1.442695
    %v1264 = vpow.pop %v1263
    %v1265 = vmul.f32 %v1248, 1.442695
    %v1266 = vpow.pop %v1265
    %v1267 = vmul.f32 %v1249, 1.442695
    %v1268 = vpow.pop %v1267
    %v1269 = vmul.f32 %v1250, 1.442695
    %v1270 = vpow.pop %v1269
    %v1271 = vmul.f32 %v1251, 1.442695
    %v1272 = vpow.pop %v1271
    %v1273 = vmul.f32 %v1252, 1.442695
    %v1274 = vpow.pop %v1273
    %v1275 = vmul.f32 %v1253, 1.442695
    %v1276 = vpow.pop %v1275
    %v1277 = vmul.f32 %v1254, 1.442695
    %v1278 = vpow.pop %v1277
    %v1279 = vmul.f32 %v1255, 1.442695
    %v1280 = vpow.pop %v1279
    %v1281 = vmul.f32 %v1256, 1.442695
    %v1282 = vpow.pop %v1281
    %v1283 = vmul.f32 %v1257, 1.442695
    %v1284 = vpow.pop %v1283
    %v1285 = vmul.f32 %v1258, 1.442695
    %v1286 = vpow.pop %v1285
    %v1287 = vmul.f32 %v1259, 1.442695
    %v1288 = vpow.pop %v1287
    %v1289 = vmul.f32 %v1260, 1.442695
    %v1290 = vpow.pop %v1289
    %v1291 = vmul.f32 %v1261, 1.442695
    %v1292 = vpow.pop %v1291
    %v1293 = vmul.f32 %v1262, 1.442695
    %v1294 = vpow.pop %v1293
    %v1295 = vmul.f32 %v1216, 0.0
    %v1296 = vmul.f32 %v1218, 0.0
    %v1297 = vmul.f32 %v1220, 0.0
    %v1298 = vmul.f32 %v1222, 0.0
    %v1299 = vmul.f32 %v1224, 0.0
    %v1300 = vmul.f32 %v1226, 0.0
    %v1301 = vmul.f32 %v1228, 0.0
    %v1302 = vmul.f32 %v1230, 0.0
    %v1303 = vmul.f32 %v1232, 0.0
    %v1304 = vmul.f32 %v1234, 0.0
    %v1305 = vmul.f32 %v1236, 0.0
    %v1306 = vmul.f32 %v1238, 0.0
    %v1307 = vmul.f32 %v1240, 0.0
    %v1308 = vmul.f32 %v1242, 0.0
    %v1309 = vmul.f32 %v1244, 0.0
    %v1310 = vmul.f32 %v1246, 0.0
    %v1311 = vsel %vm655, %v1264, 0.0
    %1312 = vadd.xlane.f32.xlu0 %v1311
    %v1313 = vpop.xlane.xlu0 %1312
    %v1314 = vsel %vm655, %v1266, 0.0
    %1315 = vadd.xlane.f32.xlu0 %v1314
    %v1316 = vpop.xlane.xlu0 %1315
    %v1317 = vsel %vm655, %v1268, 0.0
    %1318 = vadd.xlane.f32.xlu0 %v1317
    %v1319 = vpop.xlane.xlu0 %1318
    %v1320 = vsel %vm655, %v1270, 0.0
    %1321 = vadd.xlane.f32.xlu0 %v1320
    %v1322 = vpop.xlane.xlu0 %1321
    %v1323 = vsel %vm655, %v1272, 0.0
    %1324 = vadd.xlane.f32.xlu0 %v1323
    %v1325 = vpop.xlane.xlu0 %1324
    %v1326 = vsel %vm655, %v1274, 0.0
    %1327 = vadd.xlane.f32.xlu0 %v1326
    %v1328 = vpop.xlane.xlu0 %1327
    %v1329 = vsel %vm655, %v1276, 0.0
    %1330 = vadd.xlane.f32.xlu0 %v1329
    %v1331 = vpop.xlane.xlu0 %1330
    %v1332 = vsel %vm655, %v1278, 0.0
    %1333 = vadd.xlane.f32.xlu0 %v1332
    %v1334 = vpop.xlane.xlu0 %1333
    %v1335 = vsel %vm655, %v1280, 0.0
    %1336 = vadd.xlane.f32.xlu0 %v1335
    %v1337 = vpop.xlane.xlu0 %1336
    %v1338 = vsel %vm655, %v1282, 0.0
    %1339 = vadd.xlane.f32.xlu0 %v1338
    %v1340 = vpop.xlane.xlu0 %1339
    %v1341 = vsel %vm655, %v1284, 0.0
    %1342 = vadd.xlane.f32.xlu0 %v1341
    %v1343 = vpop.xlane.xlu0 %1342
    %v1344 = vsel %vm655, %v1286, 0.0
    %1345 = vadd.xlane.f32.xlu0 %v1344
    %v1346 = vpop.xlane.xlu0 %1345
    %v1347 = vsel %vm655, %v1288, 0.0
    %1348 = vadd.xlane.f32.xlu0 %v1347
    %v1349 = vpop.xlane.xlu0 %1348
    %v1350 = vsel %vm655, %v1290, 0.0
    %1351 = vadd.xlane.f32.xlu0 %v1350
    %v1352 = vpop.xlane.xlu0 %1351
    %v1353 = vsel %vm655, %v1292, 0.0
    %1354 = vadd.xlane.f32.xlu0 %v1353
    %v1355 = vpop.xlane.xlu0 %1354
    %v1356 = vsel %vm655, %v1294, 0.0
    %1357 = vadd.xlane.f32.xlu0 %v1356
    %v1358 = vpop.xlane.xlu0 %1357
    %v1359 = vadd.f32 %v1295, %v1313
    %v1360 = vadd.f32 %v1296, %v1316
    %v1361 = vadd.f32 %v1297, %v1319
    %v1362 = vadd.f32 %v1298, %v1322
    %v1363 = vadd.f32 %v1299, %v1325
    %v1364 = vadd.f32 %v1300, %v1328
    %v1365 = vadd.f32 %v1301, %v1331
    %v1366 = vadd.f32 %v1302, %v1334
    %v1367 = vadd.f32 %v1303, %v1337
    %v1368 = vadd.f32 %v1304, %v1340
    %v1369 = vadd.f32 %v1305, %v1343
    %v1370 = vadd.f32 %v1306, %v1346
    %v1371 = vadd.f32 %v1307, %v1349
    %v1372 = vadd.f32 %v1308, %v1352
    %v1373 = vadd.f32 %v1309, %v1355
    %v1374 = vadd.f32 %v1310, %v1358
    %v1376 = vrot.slane %v428, 1
    %v1377 = vrot.slane %v428, 2
    %v1378 = vrot.slane %v428, 3
    %v1379 = vrot.slane %v428, 4
    %v1380 = vrot.slane %v428, 5
    %v1381 = vrot.slane %v428, 6
    %v1382 = vrot.slane %v428, 7
    %v1383 = vperm.slane %v428, 0
    %v1384 = vperm.slane %v1376, 0
    %v1385 = vperm.slane %v1377, 0
    %v1386 = vperm.slane %v1378, 0
    %v1387 = vperm.slane %v1379, 0
    %v1388 = vperm.slane %v1380, 0
    %v1389 = vperm.slane %v1381, 0
    %v1390 = vperm.slane %v1382, 0
    %v1399 = vmul.f32 %v1264, %v1383
    %v1400 = vmul.f32 %v1266, %v1383
    %v1401 = vmul.f32 %v1268, %v1384
    %v1402 = vmul.f32 %v1270, %v1384
    %v1403 = vmul.f32 %v1272, %v1385
    %v1404 = vmul.f32 %v1274, %v1385
    %v1405 = vmul.f32 %v1276, %v1386
    %v1406 = vmul.f32 %v1278, %v1386
    %v1407 = vmul.f32 %v1280, %v1387
    %v1408 = vmul.f32 %v1282, %v1387
    %v1409 = vmul.f32 %v1284, %v1388
    %v1410 = vmul.f32 %v1286, %v1388
    %v1411 = vmul.f32 %v1288, %v1389
    %v1412 = vmul.f32 %v1290, %v1389
    %v1413 = vmul.f32 %v1292, %v1390
    %v1414 = vmul.f32 %v1294, %v1390
    %v1415 = vsel %vm655, %v1399, 0.0
    %1416 = vadd.xlane.f32.xlu0 %v1415
    %v1417 = vpop.xlane.xlu0 %1416
    %v1418 = vsel %vm655, %v1400, 0.0
    %1419 = vadd.xlane.f32.xlu0 %v1418
    %v1420 = vpop.xlane.xlu0 %1419
    %v1421 = vsel %vm655, %v1401, 0.0
    %1422 = vadd.xlane.f32.xlu0 %v1421
    %v1423 = vpop.xlane.xlu0 %1422
    %v1424 = vsel %vm655, %v1402, 0.0
    %1425 = vadd.xlane.f32.xlu0 %v1424
    %v1426 = vpop.xlane.xlu0 %1425
    %v1427 = vsel %vm655, %v1403, 0.0
    %1428 = vadd.xlane.f32.xlu0 %v1427
    %v1429 = vpop.xlane.xlu0 %1428
    %v1430 = vsel %vm655, %v1404, 0.0
    %1431 = vadd.xlane.f32.xlu0 %v1430
    %v1432 = vpop.xlane.xlu0 %1431
    %v1433 = vsel %vm655, %v1405, 0.0
    %1434 = vadd.xlane.f32.xlu0 %v1433
    %v1435 = vpop.xlane.xlu0 %1434
    %v1436 = vsel %vm655, %v1406, 0.0
    %1437 = vadd.xlane.f32.xlu0 %v1436
    %v1438 = vpop.xlane.xlu0 %1437
    %v1439 = vsel %vm655, %v1407, 0.0
    %1440 = vadd.xlane.f32.xlu0 %v1439
    %v1441 = vpop.xlane.xlu0 %1440
    %v1442 = vsel %vm655, %v1408, 0.0
    %1443 = vadd.xlane.f32.xlu0 %v1442
    %v1444 = vpop.xlane.xlu0 %1443
    %v1445 = vsel %vm655, %v1409, 0.0
    %1446 = vadd.xlane.f32.xlu0 %v1445
    %v1447 = vpop.xlane.xlu0 %1446
    %v1448 = vsel %vm655, %v1410, 0.0
    %1449 = vadd.xlane.f32.xlu0 %v1448
    %v1450 = vpop.xlane.xlu0 %1449
    %v1451 = vsel %vm655, %v1411, 0.0
    %1452 = vadd.xlane.f32.xlu0 %v1451
    %v1453 = vpop.xlane.xlu0 %1452
    %v1454 = vsel %vm655, %v1412, 0.0
    %1455 = vadd.xlane.f32.xlu0 %v1454
    %v1456 = vpop.xlane.xlu0 %1455
    %v1457 = vsel %vm655, %v1413, 0.0
    %1458 = vadd.xlane.f32.xlu0 %v1457
    %v1459 = vpop.xlane.xlu0 %1458
    %v1460 = vsel %vm655, %v1414, 0.0
    %1461 = vadd.xlane.f32.xlu0 %v1460
    %v1462 = vpop.xlane.xlu0 %1461
    %v1463 = vadd.f32 %v1295, %v1417
    %v1464 = vadd.f32 %v1296, %v1420
    %v1465 = vadd.f32 %v1297, %v1423
    %v1466 = vadd.f32 %v1298, %v1426
    %v1467 = vadd.f32 %v1299, %v1429
    %v1468 = vadd.f32 %v1300, %v1432
    %v1469 = vadd.f32 %v1301, %v1435
    %v1470 = vadd.f32 %v1302, %v1438
    %v1471 = vadd.f32 %v1303, %v1441
    %v1472 = vadd.f32 %v1304, %v1444
    %v1473 = vadd.f32 %v1305, %v1447
    %v1474 = vadd.f32 %v1306, %v1450
    %v1475 = vadd.f32 %v1307, %v1453
    %v1476 = vadd.f32 %v1308, %v1456
    %v1477 = vadd.f32 %v1309, %v1459
    %v1478 = vadd.f32 %v1310, %v1462
    %v1480 = vrot.slane %v429, 1
    %v1481 = vrot.slane %v429, 2
    %v1482 = vrot.slane %v429, 3
    %v1483 = vrot.slane %v429, 4
    %v1484 = vrot.slane %v429, 5
    %v1485 = vrot.slane %v429, 6
    %v1486 = vrot.slane %v429, 7
    %v1487 = vperm.slane %v429, 0
    %v1488 = vperm.slane %v1480, 0
    %v1489 = vperm.slane %v1481, 0
    %v1490 = vperm.slane %v1482, 0
    %v1491 = vperm.slane %v1483, 0
    %v1492 = vperm.slane %v1484, 0
    %v1493 = vperm.slane %v1485, 0
    %v1494 = vperm.slane %v1486, 0
    %v1503 = vmul.f32 %v1264, %v1487
    %v1504 = vmul.f32 %v1266, %v1487
    %v1505 = vmul.f32 %v1268, %v1488
    %v1506 = vmul.f32 %v1270, %v1488
    %v1507 = vmul.f32 %v1272, %v1489
    %v1508 = vmul.f32 %v1274, %v1489
    %v1509 = vmul.f32 %v1276, %v1490
    %v1510 = vmul.f32 %v1278, %v1490
    %v1511 = vmul.f32 %v1280, %v1491
    %v1512 = vmul.f32 %v1282, %v1491
    %v1513 = vmul.f32 %v1284, %v1492
    %v1514 = vmul.f32 %v1286, %v1492
    %v1515 = vmul.f32 %v1288, %v1493
    %v1516 = vmul.f32 %v1290, %v1493
    %v1517 = vmul.f32 %v1292, %v1494
    %v1518 = vmul.f32 %v1294, %v1494
    %v1519 = vsel %vm655, %v1503, 0.0
    %1520 = vadd.xlane.f32.xlu0 %v1519
    %v1521 = vpop.xlane.xlu0 %1520
    %v1522 = vsel %vm655, %v1504, 0.0
    %1523 = vadd.xlane.f32.xlu0 %v1522
    %v1524 = vpop.xlane.xlu0 %1523
    %v1525 = vsel %vm655, %v1505, 0.0
    %1526 = vadd.xlane.f32.xlu0 %v1525
    %v1527 = vpop.xlane.xlu0 %1526
    %v1528 = vsel %vm655, %v1506, 0.0
    %1529 = vadd.xlane.f32.xlu0 %v1528
    %v1530 = vpop.xlane.xlu0 %1529
    %v1531 = vsel %vm655, %v1507, 0.0
    %1532 = vadd.xlane.f32.xlu0 %v1531
    %v1533 = vpop.xlane.xlu0 %1532
    %v1534 = vsel %vm655, %v1508, 0.0
    %1535 = vadd.xlane.f32.xlu0 %v1534
    %v1536 = vpop.xlane.xlu0 %1535
    %v1537 = vsel %vm655, %v1509, 0.0
    %1538 = vadd.xlane.f32.xlu0 %v1537
    %v1539 = vpop.xlane.xlu0 %1538
    %v1540 = vsel %vm655, %v1510, 0.0
    %1541 = vadd.xlane.f32.xlu0 %v1540
    %v1542 = vpop.xlane.xlu0 %1541
    %v1543 = vsel %vm655, %v1511, 0.0
    %1544 = vadd.xlane.f32.xlu0 %v1543
    %v1545 = vpop.xlane.xlu0 %1544
    %v1546 = vsel %vm655, %v1512, 0.0
    %1547 = vadd.xlane.f32.xlu0 %v1546
    %v1548 = vpop.xlane.xlu0 %1547
    %v1549 = vsel %vm655, %v1513, 0.0
    %1550 = vadd.xlane.f32.xlu0 %v1549
    %v1551 = vpop.xlane.xlu0 %1550
    %v1552 = vsel %vm655, %v1514, 0.0
    %1553 = vadd.xlane.f32.xlu0 %v1552
    %v1554 = vpop.xlane.xlu0 %1553
    %v1555 = vsel %vm655, %v1515, 0.0
    %1556 = vadd.xlane.f32.xlu0 %v1555
    %v1557 = vpop.xlane.xlu0 %1556
    %v1558 = vsel %vm655, %v1516, 0.0
    %1559 = vadd.xlane.f32.xlu0 %v1558
    %v1560 = vpop.xlane.xlu0 %1559
    %v1561 = vsel %vm655, %v1517, 0.0
    %1562 = vadd.xlane.f32.xlu0 %v1561
    %v1563 = vpop.xlane.xlu0 %1562
    %v1564 = vsel %vm655, %v1518, 0.0
    %1565 = vadd.xlane.f32.xlu0 %v1564
    %v1566 = vpop.xlane.xlu0 %1565
    %v1567 = vadd.f32 %v1295, %v1521
    %v1568 = vadd.f32 %v1296, %v1524
    %v1569 = vadd.f32 %v1297, %v1527
    %v1570 = vadd.f32 %v1298, %v1530
    %v1571 = vadd.f32 %v1299, %v1533
    %v1572 = vadd.f32 %v1300, %v1536
    %v1573 = vadd.f32 %v1301, %v1539
    %v1574 = vadd.f32 %v1302, %v1542
    %v1575 = vadd.f32 %v1303, %v1545
    %v1576 = vadd.f32 %v1304, %v1548
    %v1577 = vadd.f32 %v1305, %v1551
    %v1578 = vadd.f32 %v1306, %v1554
    %v1579 = vadd.f32 %v1307, %v1557
    %v1580 = vadd.f32 %v1308, %v1560
    %v1581 = vadd.f32 %v1309, %v1563
    %v1582 = vadd.f32 %v1310, %v1566
    %v1583 = vrcp.pop %v864
    %v1584 = vrcp.pop %v865
    %v1585 = vrcp.pop %v866
    %v1586 = vrcp.pop %v867
    %v1587 = vrcp.pop %v868
    %v1588 = vrcp.pop %v869
    %v1589 = vrcp.pop %v870
    %v1590 = vrcp.pop %v871
    %v1591 = vrcp.pop %v872
    %v1592 = vrcp.pop %v873
    %v1593 = vrcp.pop %v874
    %v1594 = vrcp.pop %v875
    %v1595 = vrcp.pop %v876
    %v1596 = vrcp.pop %v877
    %v1597 = vrcp.pop %v878
    %v1598 = vrcp.pop %v879
    %v1599 = vmul.f32 %v864, %v1583
    %v1600 = vmul.f32 %v865, %v1584
    %v1601 = vmul.f32 %v866, %v1585
    %v1602 = vmul.f32 %v867, %v1586
    %v1603 = vmul.f32 %v868, %v1587
    %v1604 = vmul.f32 %v869, %v1588
    %v1605 = vmul.f32 %v870, %v1589
    %v1606 = vmul.f32 %v871, %v1590
    %v1607 = vmul.f32 %v872, %v1591
    %v1608 = vmul.f32 %v873, %v1592
    %v1609 = vmul.f32 %v874, %v1593
    %v1610 = vmul.f32 %v875, %v1594
    %v1611 = vmul.f32 %v876, %v1595
    %v1612 = vmul.f32 %v877, %v1596
    %v1613 = vmul.f32 %v878, %v1597
    %v1614 = vmul.f32 %v879, %v1598
    %v1615 = vsub.f32 2.0, %v1599
    %v1616 = vsub.f32 2.0, %v1600
    %v1617 = vsub.f32 2.0, %v1601
    %v1618 = vsub.f32 2.0, %v1602
    %v1619 = vsub.f32 2.0, %v1603
    %v1620 = vsub.f32 2.0, %v1604
    %v1621 = vsub.f32 2.0, %v1605
    %v1622 = vsub.f32 2.0, %v1606
    %v1623 = vsub.f32 2.0, %v1607
    %v1624 = vsub.f32 2.0, %v1608
    %v1625 = vsub.f32 2.0, %v1609
    %v1626 = vsub.f32 2.0, %v1610
    %v1627 = vsub.f32 2.0, %v1611
    %v1628 = vsub.f32 2.0, %v1612
    %v1629 = vsub.f32 2.0, %v1613
    %v1630 = vsub.f32 2.0, %v1614
    %v1631 = vmul.f32 %v1583, %v1615
    %v1632 = vmul.f32 %v1584, %v1616
    %v1633 = vmul.f32 %v1585, %v1617
    %v1634 = vmul.f32 %v1586, %v1618
    %v1635 = vmul.f32 %v1587, %v1619
    %v1636 = vmul.f32 %v1588, %v1620
    %v1637 = vmul.f32 %v1589, %v1621
    %v1638 = vmul.f32 %v1590, %v1622
    %v1639 = vmul.f32 %v1591, %v1623
    %v1640 = vmul.f32 %v1592, %v1624
    %v1641 = vmul.f32 %v1593, %v1625
    %v1642 = vmul.f32 %v1594, %v1626
    %v1643 = vmul.f32 %v1595, %v1627
    %v1644 = vmul.f32 %v1596, %v1628
    %v1645 = vmul.f32 %v1597, %v1629
    %v1646 = vmul.f32 %v1598, %v1630
    %v1647 = vmul.f32 %v968, %v1631
    %v1648 = vmul.f32 %v969, %v1632
    %v1649 = vmul.f32 %v970, %v1633
    %v1650 = vmul.f32 %v971, %v1634
    %v1651 = vmul.f32 %v972, %v1635
    %v1652 = vmul.f32 %v973, %v1636
    %v1653 = vmul.f32 %v974, %v1637
    %v1654 = vmul.f32 %v975, %v1638
    %v1655 = vmul.f32 %v976, %v1639
    %v1656 = vmul.f32 %v977, %v1640
    %v1657 = vmul.f32 %v978, %v1641
    %v1658 = vmul.f32 %v979, %v1642
    %v1659 = vmul.f32 %v980, %v1643
    %v1660 = vmul.f32 %v981, %v1644
    %v1661 = vmul.f32 %v982, %v1645
    %v1662 = vmul.f32 %v983, %v1646
    %v1663 = vrcp.pop %v1359
    %v1664 = vrcp.pop %v1360
    %v1665 = vrcp.pop %v1361
    %v1666 = vrcp.pop %v1362
    %v1667 = vrcp.pop %v1363
    %v1668 = vrcp.pop %v1364
    %v1669 = vrcp.pop %v1365
    %v1670 = vrcp.pop %v1366
    %v1671 = vrcp.pop %v1367
    %v1672 = vrcp.pop %v1368
    %v1673 = vrcp.pop %v1369
    %v1674 = vrcp.pop %v1370
    %v1675 = vrcp.pop %v1371
    %v1676 = vrcp.pop %v1372
    %v1677 = vrcp.pop %v1373
    %v1678 = vrcp.pop %v1374
    %v1679 = vmul.f32 %v1359, %v1663
    %v1680 = vmul.f32 %v1360, %v1664
    %v1681 = vmul.f32 %v1361, %v1665
    %v1682 = vmul.f32 %v1362, %v1666
    %v1683 = vmul.f32 %v1363, %v1667
    %v1684 = vmul.f32 %v1364, %v1668
    %v1685 = vmul.f32 %v1365, %v1669
    %v1686 = vmul.f32 %v1366, %v1670
    %v1687 = vmul.f32 %v1367, %v1671
    %v1688 = vmul.f32 %v1368, %v1672
    %v1689 = vmul.f32 %v1369, %v1673
    %v1690 = vmul.f32 %v1370, %v1674
    %v1691 = vmul.f32 %v1371, %v1675
    %v1692 = vmul.f32 %v1372, %v1676
    %v1693 = vmul.f32 %v1373, %v1677
    %v1694 = vmul.f32 %v1374, %v1678
    %v1695 = vsub.f32 2.0, %v1679
    %v1696 = vsub.f32 2.0, %v1680
    %v1697 = vsub.f32 2.0, %v1681
    %v1698 = vsub.f32 2.0, %v1682
    %v1699 = vsub.f32 2.0, %v1683
    %v1700 = vsub.f32 2.0, %v1684
    %v1701 = vsub.f32 2.0, %v1685
    %v1702 = vsub.f32 2.0, %v1686
    %v1703 = vsub.f32 2.0, %v1687
    %v1704 = vsub.f32 2.0, %v1688
    %v1705 = vsub.f32 2.0, %v1689
    %v1706 = vsub.f32 2.0, %v1690
    %v1707 = vsub.f32 2.0, %v1691
    %v1708 = vsub.f32 2.0, %v1692
    %v1709 = vsub.f32 2.0, %v1693
    %v1710 = vsub.f32 2.0, %v1694
    %v1711 = vmul.f32 %v1663, %v1695
    %v1712 = vmul.f32 %v1664, %v1696
    %v1713 = vmul.f32 %v1665, %v1697
    %v1714 = vmul.f32 %v1666, %v1698
    %v1715 = vmul.f32 %v1667, %v1699
    %v1716 = vmul.f32 %v1668, %v1700
    %v1717 = vmul.f32 %v1669, %v1701
    %v1718 = vmul.f32 %v1670, %v1702
    %v1719 = vmul.f32 %v1671, %v1703
    %v1720 = vmul.f32 %v1672, %v1704
    %v1721 = vmul.f32 %v1673, %v1705
    %v1722 = vmul.f32 %v1674, %v1706
    %v1723 = vmul.f32 %v1675, %v1707
    %v1724 = vmul.f32 %v1676, %v1708
    %v1725 = vmul.f32 %v1677, %v1709
    %v1726 = vmul.f32 %v1678, %v1710
    %v1727 = vmul.f32 %v1463, %v1711
    %v1728 = vmul.f32 %v1464, %v1712
    %v1729 = vmul.f32 %v1465, %v1713
    %v1730 = vmul.f32 %v1466, %v1714
    %v1731 = vmul.f32 %v1467, %v1715
    %v1732 = vmul.f32 %v1468, %v1716
    %v1733 = vmul.f32 %v1469, %v1717
    %v1734 = vmul.f32 %v1470, %v1718
    %v1735 = vmul.f32 %v1471, %v1719
    %v1736 = vmul.f32 %v1472, %v1720
    %v1737 = vmul.f32 %v1473, %v1721
    %v1738 = vmul.f32 %v1474, %v1722
    %v1739 = vmul.f32 %v1475, %v1723
    %v1740 = vmul.f32 %v1476, %v1724
    %v1741 = vmul.f32 %v1477, %v1725
    %v1742 = vmul.f32 %v1478, %v1726
    %v1743 = vmul.f32 %v1567, %v1711
    %v1744 = vmul.f32 %v1568, %v1712
    %v1745 = vmul.f32 %v1569, %v1713
    %v1746 = vmul.f32 %v1570, %v1714
    %v1747 = vmul.f32 %v1571, %v1715
    %v1748 = vmul.f32 %v1572, %v1716
    %v1749 = vmul.f32 %v1573, %v1717
    %v1750 = vmul.f32 %v1574, %v1718
    %v1751 = vmul.f32 %v1575, %v1719
    %v1752 = vmul.f32 %v1576, %v1720
    %v1753 = vmul.f32 %v1577, %v1721
    %v1754 = vmul.f32 %v1578, %v1722
    %v1755 = vmul.f32 %v1579, %v1723
    %v1756 = vmul.f32 %v1580, %v1724
    %v1757 = vmul.f32 %v1581, %v1725
    %v1758 = vmul.f32 %v1582, %v1726
    %v1759 = vld [vmem:[%s29] sm:$0xff]
    %v1760 = vld [vmem:[%s29 + $0x8] sm:$0xff]
    %v1761 = vld [vmem:[%s29 + $0x10] sm:$0xff]
    %v1762 = vld [vmem:[%s29 + $0x18] sm:$0xff]
    %v1763 = vld [vmem:[#allocation21] sm:$0x3]
    %v1765 = vperm.slane %v1763, 0
    %v1766 = vperm.slane %v1763, 1
    %v1785 = vlaneseq
    %v1786 = vand.u32 %v1785, 127
    %v1787 = vperm.slane %v1647, %v1786
    %v1788 = vadd.s32 %v1786, 4294967288
    %v1789 = vperm.slane %v1648, %v1788
    %vm1790 = vcmask 130112
    %v1791 = vsel %vm1790, %v1789, %v1787
    %v1792 = vperm.slane %v1649, %v1786
    %v1793 = vperm.slane %v1650, %v1788
    %v1794 = vsel %vm1790, %v1793, %v1792
    %v1795 = vperm.slane %v1651, %v1786
    %v1796 = vperm.slane %v1652, %v1788
    %v1797 = vsel %vm1790, %v1796, %v1795
    %v1798 = vperm.slane %v1653, %v1786
    %v1799 = vperm.slane %v1654, %v1788
    %v1800 = vsel %vm1790, %v1799, %v1798
    %v1801 = vperm.slane %v1655, %v1786
    %v1802 = vperm.slane %v1656, %v1788
    %v1803 = vsel %vm1790, %v1802, %v1801
    %v1804 = vperm.slane %v1657, %v1786
    %v1805 = vperm.slane %v1658, %v1788
    %v1806 = vsel %vm1790, %v1805, %v1804
    %v1807 = vperm.slane %v1659, %v1786
    %v1808 = vperm.slane %v1660, %v1788
    %v1809 = vsel %vm1790, %v1808, %v1807
    %v1810 = vperm.slane %v1661, %v1786
    %v1811 = vperm.slane %v1662, %v1788
    %v1812 = vsel %vm1790, %v1811, %v1810
    %vm1813 = vcmask 1041409
    %v1814 = vsel %vm1813, %v1794, %v1791
    %vm1815 = vcmask 1042434
    %v1816 = vsel %vm1815, %v1797, %v1814
    %vm1817 = vcmask 1043459
    %v1818 = vsel %vm1817, %v1800, %v1816
    %vm1819 = vcmask 1044484
    %v1820 = vsel %vm1819, %v1803, %v1818
    %vm1821 = vcmask 1045509
    %v1822 = vsel %vm1821, %v1806, %v1820
    %vm1823 = vcmask 1046534
    %v1824 = vsel %vm1823, %v1809, %v1822
    %vm1825 = vcmask 1047559
    %v1826 = vsel %vm1825, %v1812, %v1824
    %v1827 = vsel %vm655, %v1826, 0
    %1829 = vmatpush.msra.mxu0 0.0
    %1830 = vmatpush.msra.mxu0 0.0
    %1831 = vmatpush.msra.mxu0 0.0
    %1832 = vmatpush.msra.mxu0 0.0
    %1833 = vmatpush.msra.mxu0 0.0
    %1834 = vmatpush.msra.mxu0 0.0
    %1835 = vmatpush.msra.mxu0 0.0
    %1836 = vmatpush.msra.mxu0 0.0
    %1837 = vmatpush.msra.mxu0 0.0
    %1838 = vmatpush.msra.mxu0 0.0
    %1839 = vmatpush.msra.mxu0 0.0
    %1840 = vmatpush.msra.mxu0 0.0
    %1841 = vmatpush.msra.mxu0 0.0
    %1842 = vmatpush.msra.mxu0 0.0
    %1843 = vmatpush.msra.mxu0 %v1761
    %1844 = vmatpush.msra.mxu0 %v1759
    %1845 = vmatmul.f32.gmra.mxu0 %v1827
    %v1846 = vpop.f32.mrf.mxu0
    %v1847 = vadd.f32 %v1765, %v1846
    %1848 = vdwg.mxu0
    %1849 = vmatpush.msra.mxu0 0.0
    %1850 = vmatpush.msra.mxu0 0.0
    %1851 = vmatpush.msra.mxu0 0.0
    %1852 = vmatpush.msra.mxu0 0.0
    %1853 = vmatpush.msra.mxu0 0.0
    %1854 = vmatpush.msra.mxu0 0.0
    %1855 = vmatpush.msra.mxu0 0.0
    %1856 = vmatpush.msra.mxu0 0.0
    %1857 = vmatpush.msra.mxu0 0.0
    %1858 = vmatpush.msra.mxu0 0.0
    %1859 = vmatpush.msra.mxu0 0.0
    %1860 = vmatpush.msra.mxu0 0.0
    %1861 = vmatpush.msra.mxu0 0.0
    %1862 = vmatpush.msra.mxu0 0.0
    %1863 = vmatpush.msra.mxu0 %v1762
    %1864 = vmatpush.msra.mxu0 %v1760
    %1865 = vmatmul.f32.gmra.mxu0 %v1827
    %v1866 = vpop.f32.mrf.mxu0
    %v1867 = vadd.f32 %v1766, %v1866
    %1868 = vdwg.mxu0
    %v1869 = vld [vmem:[%s33] sm:$0xff]
    %v1870 = vld [vmem:[%s33 + $0x8] sm:$0xff]
    %v1871 = vld [vmem:[%s33 + $0x10] sm:$0xff]
    %v1872 = vld [vmem:[%s33 + $0x18] sm:$0xff]
    %v1873 = vld [vmem:[%s33 + $0x20] sm:$0xff]
    %v1874 = vld [vmem:[%s33 + $0x28] sm:$0xff]
    %v1875 = vld [vmem:[%s33 + $0x30] sm:$0xff]
    %v1876 = vld [vmem:[%s33 + $0x38] sm:$0xff]
    %v1877 = vld [vmem:[%s33 + $0x40] sm:$0xff]
    %v1878 = vld [vmem:[%s33 + $0x48] sm:$0xff]
    %v1879 = vld [vmem:[%s33 + $0x50] sm:$0xff]
    %v1880 = vld [vmem:[%s33 + $0x58] sm:$0xff]
    %v1881 = vld [vmem:[%s33 + $0x60] sm:$0xff]
    %v1882 = vld [vmem:[%s33 + $0x68] sm:$0xff]
    %v1883 = vld [vmem:[%s33 + $0x70] sm:$0xff]
    %v1884 = vld [vmem:[%s33 + $0x78] sm:$0xff]
    %v1885 = vld [vmem:[%s33 + $0x80] sm:$0xff]
    %v1886 = vld [vmem:[%s33 + $0x88] sm:$0xff]
    %v1887 = vld [vmem:[%s33 + $0x90] sm:$0xff]
    %v1888 = vld [vmem:[%s33 + $0x98] sm:$0xff]
    %v1889 = vld [vmem:[%s33 + $0xa0] sm:$0xff]
    %v1890 = vld [vmem:[%s33 + $0xa8] sm:$0xff]
    %v1891 = vld [vmem:[%s33 + $0xb0] sm:$0xff]
    %v1892 = vld [vmem:[%s33 + $0xb8] sm:$0xff]
    %v1893 = vld [vmem:[%s33 + $0xc0] sm:$0xff]
    %v1894 = vld [vmem:[%s33 + $0xc8] sm:$0xff]
    %v1895 = vld [vmem:[%s33 + $0xd0] sm:$0xff]
    %v1896 = vld [vmem:[%s33 + $0xd8] sm:$0xff]
    %v1897 = vld [vmem:[%s33 + $0xe0] sm:$0xff]
    %v1898 = vld [vmem:[%s33 + $0xe8] sm:$0xff]
    %v1899 = vld [vmem:[%s33 + $0xf0] sm:$0xff]
    %v1900 = vld [vmem:[%s33 + $0xf8] sm:$0xff]
    %v1901 = vld [vmem:[#allocation22] sm:$0x1]
    %v1903 = vperm.slane %v1901, 0
    %1905 = vmatpush.msra.mxu0 %v1884
    %1906 = vmatpush.msra.mxu0 %v1883
    %1907 = vmatpush.msra.mxu0 %v1882
    %1908 = vmatpush.msra.mxu0 %v1881
    %1909 = vmatpush.msra.mxu0 %v1880
    %1910 = vmatpush.msra.mxu0 %v1879
    %1911 = vmatpush.msra.mxu0 %v1878
    %1912 = vmatpush.msra.mxu0 %v1877
    %1913 = vmatpush.msra.mxu0 %v1876
    %1914 = vmatpush.msra.mxu0 %v1875
    %1915 = vmatpush.msra.mxu0 %v1874
    %1916 = vmatpush.msra.mxu0 %v1873
    %1917 = vmatpush.msra.mxu0 %v1872
    %1918 = vmatpush.msra.mxu0 %v1871
    %1919 = vmatpush.msra.mxu0 %v1870
    %1920 = vmatpush.msra.mxu0 %v1869
    %1921 = vmatmul.f32.gmra.mxu0 %v1847
    %v1922 = vpop.f32.mrf.mxu0
    %v1923 = vadd.f32 %v1903, %v1922
    %1924 = vdwg.mxu0
    %1925 = vmatpush.msra.mxu0 %v1900
    %1926 = vmatpush.msra.mxu0 %v1899
    %1927 = vmatpush.msra.mxu0 %v1898
    %1928 = vmatpush.msra.mxu0 %v1897
    %1929 = vmatpush.msra.mxu0 %v1896
    %1930 = vmatpush.msra.mxu0 %v1895
    %1931 = vmatpush.msra.mxu0 %v1894
    %1932 = vmatpush.msra.mxu0 %v1893
    %1933 = vmatpush.msra.mxu0 %v1892
    %1934 = vmatpush.msra.mxu0 %v1891
    %1935 = vmatpush.msra.mxu0 %v1890
    %1936 = vmatpush.msra.mxu0 %v1889
    %1937 = vmatpush.msra.mxu0 %v1888
    %1938 = vmatpush.msra.mxu0 %v1887
    %1939 = vmatpush.msra.mxu0 %v1886
    %1940 = vmatpush.msra.mxu0 %v1885
    %1941 = vmatmul.f32.gmra.mxu0 %v1867
    %v1942 = vpop.f32.mrf.mxu0
    %v1943 = vadd.f32 %v1923, %v1942
    %1944 = vdwg.mxu0
    %v1945 = vtanh.pop %v1943
    %v1946 = vld [vmem:[#allocation24] sm:$0xff]
    %v1947 = vld [vmem:[#allocation24 + $0x8] sm:$0xff]
    %v1948 = vld [vmem:[#allocation24 + $0x10] sm:$0xff]
    %v1949 = vld [vmem:[#allocation24 + $0x18] sm:$0xff]
    %v1950 = vld [vmem:[#allocation24 + $0x20] sm:$0xff]
    %v1951 = vld [vmem:[#allocation24 + $0x28] sm:$0xff]
    %v1952 = vld [vmem:[#allocation24 + $0x30] sm:$0xff]
    %v1953 = vld [vmem:[#allocation24 + $0x38] sm:$0xff]
    %v1954 = vld [vmem:[#allocation24 + $0x40] sm:$0xff]
    %v1955 = vld [vmem:[#allocation24 + $0x48] sm:$0xff]
    %v1956 = vld [vmem:[#allocation24 + $0x50] sm:$0xff]
    %v1957 = vld [vmem:[#allocation24 + $0x58] sm:$0xff]
    %v1958 = vld [vmem:[#allocation24 + $0x60] sm:$0xff]
    %v1959 = vld [vmem:[#allocation24 + $0x68] sm:$0xff]
    %v1960 = vld [vmem:[#allocation24 + $0x70] sm:$0xff]
    %v1961 = vld [vmem:[#allocation24 + $0x78] sm:$0xff]
    %v1962 = vld [vmem:[#allocation25] sm:$0x1]
    %v1964 = vperm.slane %v1962, 0
    %1966 = vmatpush.msra.mxu0 %v1961
    %1967 = vmatpush.msra.mxu0 %v1960
    %1968 = vmatpush.msra.mxu0 %v1959
    %1969 = vmatpush.msra.mxu0 %v1958
    %1970 = vmatpush.msra.mxu0 %v1957
    %1971 = vmatpush.msra.mxu0 %v1956
    %1972 = vmatpush.msra.mxu0 %v1955
    %1973 = vmatpush.msra.mxu0 %v1954
    %1974 = vmatpush.msra.mxu0 %v1953
    %1975 = vmatpush.msra.mxu0 %v1952
    %1976 = vmatpush.msra.mxu0 %v1951
    %1977 = vmatpush.msra.mxu0 %v1950
    %1978 = vmatpush.msra.mxu0 %v1949
    %1979 = vmatpush.msra.mxu0 %v1948
    %1980 = vmatpush.msra.mxu0 %v1947
    %1981 = vmatpush.msra.mxu0 %v1946
    %1982 = vmatmul.f32.gmra.mxu0 %v1945
    %v1983 = vpop.f32.mrf.mxu0
    %v1984 = vadd.f32 %v1964, %v1983
    %1985 = vdwg.mxu0
    %v1986 = vtanh.pop %v1984
    %v1987 = vld [vmem:[%s41] sm:$0xff]
    %v1988 = vld [vmem:[%s41 + $0x8] sm:$0xff]
    %v1989 = vld [vmem:[%s41 + $0x10] sm:$0xff]
    %v1990 = vld [vmem:[%s41 + $0x18] sm:$0xff]
    %v1991 = vld [vmem:[%s41 + $0x20] sm:$0xff]
    %v1992 = vld [vmem:[%s41 + $0x28] sm:$0xff]
    %v1993 = vld [vmem:[%s41 + $0x30] sm:$0xff]
    %v1994 = vld [vmem:[%s41 + $0x38] sm:$0xff]
    %v1995 = vld [vmem:[%s41 + $0x40] sm:$0xff]
    %v1996 = vld [vmem:[%s41 + $0x48] sm:$0xff]
    %v1997 = vld [vmem:[%s41 + $0x50] sm:$0xff]
    %v1998 = vld [vmem:[%s41 + $0x58] sm:$0xff]
    %v1999 = vld [vmem:[%s41 + $0x60] sm:$0xff]
    %v2000 = vld [vmem:[%s41 + $0x68] sm:$0xff]
    %v2001 = vld [vmem:[%s41 + $0x70] sm:$0xff]
    %v2002 = vld [vmem:[%s41 + $0x78] sm:$0xff]
    %v2003 = vld [vmem:[#allocation27] sm:$0x1]
    %v2005 = vperm.slane %v2003, 0
    %2007 = vmatpush.msra.mxu0 %v2002
    %2008 = vmatpush.msra.mxu0 %v2001
    %2009 = vmatpush.msra.mxu0 %v2000
    %2010 = vmatpush.msra.mxu0 %v1999
    %2011 = vmatpush.msra.mxu0 %v1998
    %2012 = vmatpush.msra.mxu0 %v1997
    %2013 = vmatpush.msra.mxu0 %v1996
    %2014 = vmatpush.msra.mxu0 %v1995
    %2015 = vmatpush.msra.mxu0 %v1994
    %2016 = vmatpush.msra.mxu0 %v1993
    %2017 = vmatpush.msra.mxu0 %v1992
    %2018 = vmatpush.msra.mxu0 %v1991
    %2019 = vmatpush.msra.mxu0 %v1990
    %2020 = vmatpush.msra.mxu0 %v1989
    %2021 = vmatpush.msra.mxu0 %v1988
    %2022 = vmatpush.msra.mxu0 %v1987
    %2023 = vmatmul.f32.gmra.mxu0 %v1986
    %v2024 = vpop.f32.mrf.mxu0
    %v2025 = vadd.f32 %v2005, %v2024
    %2026 = vdwg.mxu0
    %v2027 = vld [vmem:[%s45] sm:$0xf]
    %v2029 = vperm.slane %v2027, 0
    %v2030 = vperm.slane %v2027, 2
    %v2033 = vperm.slane %v2029, 0
    %v2034 = vperm.slane %v2030, 0
    %v2035 = vmul.f32 %v1727, %v2033
    %v2036 = vmul.f32 %v1727, %v2034
    %v2037 = vmul.f32 %v1728, %v2033
    %v2038 = vmul.f32 %v1728, %v2034
    %v2039 = vmul.f32 %v1729, %v2033
    %v2040 = vmul.f32 %v1729, %v2034
    %v2041 = vmul.f32 %v1730, %v2033
    %v2042 = vmul.f32 %v1730, %v2034
    %v2043 = vmul.f32 %v1731, %v2033
    %v2044 = vmul.f32 %v1731, %v2034
    %v2045 = vmul.f32 %v1732, %v2033
    %v2046 = vmul.f32 %v1732, %v2034
    %v2047 = vmul.f32 %v1733, %v2033
    %v2048 = vmul.f32 %v1733, %v2034
    %v2049 = vmul.f32 %v1734, %v2033
    %v2050 = vmul.f32 %v1734, %v2034
    %v2051 = vmul.f32 %v1735, %v2033
    %v2052 = vmul.f32 %v1735, %v2034
    %v2053 = vmul.f32 %v1736, %v2033
    %v2054 = vmul.f32 %v1736, %v2034
    %v2055 = vmul.f32 %v1737, %v2033
    %v2056 = vmul.f32 %v1737, %v2034
    %v2057 = vmul.f32 %v1738, %v2033
    %v2058 = vmul.f32 %v1738, %v2034
    %v2059 = vmul.f32 %v1739, %v2033
    %v2060 = vmul.f32 %v1739, %v2034
    %v2061 = vmul.f32 %v1740, %v2033
    %v2062 = vmul.f32 %v1740, %v2034
    %v2063 = vmul.f32 %v1741, %v2033
    %v2064 = vmul.f32 %v1741, %v2034
    %v2065 = vmul.f32 %v1742, %v2033
    %v2066 = vmul.f32 %v1742, %v2034
    %v2067 = vperm.slane %v2027, 1
    %v2068 = vperm.slane %v2027, 3
    %v2071 = vperm.slane %v2067, 1
    %v2072 = vperm.slane %v2068, 1
    %v2073 = vmul.f32 %v1743, %v2071
    %v2074 = vmul.f32 %v1743, %v2072
    %v2075 = vmul.f32 %v1744, %v2071
    %v2076 = vmul.f32 %v1744, %v2072
    %v2077 = vmul.f32 %v1745, %v2071
    %v2078 = vmul.f32 %v1745, %v2072
    %v2079 = vmul.f32 %v1746, %v2071
    %v2080 = vmul.f32 %v1746, %v2072
    %v2081 = vmul.f32 %v1747, %v2071
    %v2082 = vmul.f32 %v1747, %v2072
    %v2083 = vmul.f32 %v1748, %v2071
    %v2084 = vmul.f32 %v1748, %v2072
    %v2085 = vmul.f32 %v1749, %v2071
    %v2086 = vmul.f32 %v1749, %v2072
    %v2087 = vmul.f32 %v1750, %v2071
    %v2088 = vmul.f32 %v1750, %v2072
    %v2089 = vmul.f32 %v1751, %v2071
    %v2090 = vmul.f32 %v1751, %v2072
    %v2091 = vmul.f32 %v1752, %v2071
    %v2092 = vmul.f32 %v1752, %v2072
    %v2093 = vmul.f32 %v1753, %v2071
    %v2094 = vmul.f32 %v1753, %v2072
    %v2095 = vmul.f32 %v1754, %v2071
    %v2096 = vmul.f32 %v1754, %v2072
    %v2097 = vmul.f32 %v1755, %v2071
    %v2098 = vmul.f32 %v1755, %v2072
    %v2099 = vmul.f32 %v1756, %v2071
    %v2100 = vmul.f32 %v1756, %v2072
    %v2101 = vmul.f32 %v1757, %v2071
    %v2102 = vmul.f32 %v1757, %v2072
    %v2103 = vmul.f32 %v1758, %v2071
    %v2104 = vmul.f32 %v1758, %v2072
    %v2105 = vadd.f32 %v2035, %v2073
    %v2106 = vadd.f32 %v2036, %v2074
    %v2107 = vadd.f32 %v2037, %v2075
    %v2108 = vadd.f32 %v2038, %v2076
    %v2109 = vadd.f32 %v2039, %v2077
    %v2110 = vadd.f32 %v2040, %v2078
    %v2111 = vadd.f32 %v2041, %v2079
    %v2112 = vadd.f32 %v2042, %v2080
    %v2113 = vadd.f32 %v2043, %v2081
    %v2114 = vadd.f32 %v2044, %v2082
    %v2115 = vadd.f32 %v2045, %v2083
    %v2116 = vadd.f32 %v2046, %v2084
    %v2117 = vadd.f32 %v2047, %v2085
    %v2118 = vadd.f32 %v2048, %v2086
    %v2119 = vadd.f32 %v2049, %v2087
    %v2120 = vadd.f32 %v2050, %v2088
    %v2121 = vadd.f32 %v2051, %v2089
    %v2122 = vadd.f32 %v2052, %v2090
    %v2123 = vadd.f32 %v2053, %v2091
    %v2124 = vadd.f32 %v2054, %v2092
    %v2125 = vadd.f32 %v2055, %v2093
    %v2126 = vadd.f32 %v2056, %v2094
    %v2127 = vadd.f32 %v2057, %v2095
    %v2128 = vadd.f32 %v2058, %v2096
    %v2129 = vadd.f32 %v2059, %v2097
    %v2130 = vadd.f32 %v2060, %v2098
    %v2131 = vadd.f32 %v2061, %v2099
    %v2132 = vadd.f32 %v2062, %v2100
    %v2133 = vadd.f32 %v2063, %v2101
    %v2134 = vadd.f32 %v2064, %v2102
    %v2135 = vadd.f32 %v2065, %v2103
    %v2136 = vadd.f32 %v2066, %v2104
    %v2137 = vld [vmem:[#allocation28] sm:$0x3]
    %v2139 = vperm.slane %v2137, 0
    %v2140 = vperm.slane %v2137, 1
    %v2143 = vadd.f32 %v2105, %v2139
    %v2144 = vadd.f32 %v2106, %v2140
    %v2145 = vadd.f32 %v2107, %v2139
    %v2146 = vadd.f32 %v2108, %v2140
    %v2147 = vadd.f32 %v2109, %v2139
    %v2148 = vadd.f32 %v2110, %v2140
    %v2149 = vadd.f32 %v2111, %v2139
    %v2150 = vadd.f32 %v2112, %v2140
    %v2151 = vadd.f32 %v2113, %v2139
    %v2152 = vadd.f32 %v2114, %v2140
    %v2153 = vadd.f32 %v2115, %v2139
    %v2154 = vadd.f32 %v2116, %v2140
    %v2155 = vadd.f32 %v2117, %v2139
    %v2156 = vadd.f32 %v2118, %v2140
    %v2157 = vadd.f32 %v2119, %v2139
    %v2158 = vadd.f32 %v2120, %v2140
    %v2159 = vadd.f32 %v2121, %v2139
    %v2160 = vadd.f32 %v2122, %v2140
    %v2161 = vadd.f32 %v2123, %v2139
    %v2162 = vadd.f32 %v2124, %v2140
    %v2163 = vadd.f32 %v2125, %v2139
    %v2164 = vadd.f32 %v2126, %v2140
    %v2165 = vadd.f32 %v2127, %v2139
    %v2166 = vadd.f32 %v2128, %v2140
    %v2167 = vadd.f32 %v2129, %v2139
    %v2168 = vadd.f32 %v2130, %v2140
    %v2169 = vadd.f32 %v2131, %v2139
    %v2170 = vadd.f32 %v2132, %v2140
    %v2171 = vadd.f32 %v2133, %v2139
    %v2172 = vadd.f32 %v2134, %v2140
    %v2173 = vadd.f32 %v2135, %v2139
    %v2174 = vadd.f32 %v2136, %v2140
    %v2175 = vld [vmem:[#allocation30] sm:$0xff]
    %v2176 = vld [vmem:[#allocation30 + $0x8] sm:$0xff]
    %v2177 = vld [vmem:[#allocation30 + $0x10] sm:$0xff]
    %v2178 = vld [vmem:[#allocation30 + $0x18] sm:$0xff]
    %v2179 = vld [vmem:[#allocation30 + $0x20] sm:$0xff]
    %v2180 = vld [vmem:[#allocation30 + $0x28] sm:$0xff]
    %v2181 = vld [vmem:[#allocation30 + $0x30] sm:$0xff]
    %v2182 = vld [vmem:[#allocation30 + $0x38] sm:$0xff]
    %v2183 = vld [vmem:[#allocation30 + $0x40] sm:$0xff]
    %v2184 = vld [vmem:[#allocation30 + $0x48] sm:$0xff]
    %v2185 = vld [vmem:[#allocation30 + $0x50] sm:$0xff]
    %v2186 = vld [vmem:[#allocation30 + $0x58] sm:$0xff]
    %v2187 = vld [vmem:[#allocation30 + $0x60] sm:$0xff]
    %v2188 = vld [vmem:[#allocation30 + $0x68] sm:$0xff]
    %v2189 = vld [vmem:[#allocation30 + $0x70] sm:$0xff]
    %v2190 = vld [vmem:[#allocation30 + $0x78] sm:$0xff]
    %v2191 = vld [vmem:[#allocation30 + $0x80] sm:$0xff]
    %v2192 = vld [vmem:[#allocation30 + $0x88] sm:$0xff]
    %v2193 = vld [vmem:[#allocation30 + $0x90] sm:$0xff]
    %v2194 = vld [vmem:[#allocation30 + $0x98] sm:$0xff]
    %v2195 = vld [vmem:[#allocation30 + $0xa0] sm:$0xff]
    %v2196 = vld [vmem:[#allocation30 + $0xa8] sm:$0xff]
    %v2197 = vld [vmem:[#allocation30 + $0xb0] sm:$0xff]
    %v2198 = vld [vmem:[#allocation30 + $0xb8] sm:$0xff]
    %v2199 = vld [vmem:[#allocation30 + $0xc0] sm:$0xff]
    %v2200 = vld [vmem:[#allocation30 + $0xc8] sm:$0xff]
    %v2201 = vld [vmem:[#allocation30 + $0xd0] sm:$0xff]
    %v2202 = vld [vmem:[#allocation30 + $0xd8] sm:$0xff]
    %v2203 = vld [vmem:[#allocation30 + $0xe0] sm:$0xff]
    %v2204 = vld [vmem:[#allocation30 + $0xe8] sm:$0xff]
    %v2205 = vld [vmem:[#allocation30 + $0xf0] sm:$0xff]
    %v2206 = vld [vmem:[#allocation30 + $0xf8] sm:$0xff]
    %v2207 = vld [vmem:[#allocation31] sm:$0x1]
    %v2209 = vperm.slane %v2207, 0
    %2211 = vmatpush.msra.mxu0 %v2190
    %2212 = vmatpush.msra.mxu0 %v2189
    %2213 = vmatpush.msra.mxu0 %v2188
    %2214 = vmatpush.msra.mxu0 %v2187
    %2215 = vmatpush.msra.mxu0 %v2186
    %2216 = vmatpush.msra.mxu0 %v2185
    %2217 = vmatpush.msra.mxu0 %v2184
    %2218 = vmatpush.msra.mxu0 %v2183
    %2219 = vmatpush.msra.mxu0 %v2182
    %2220 = vmatpush.msra.mxu0 %v2181
    %2221 = vmatpush.msra.mxu0 %v2180
    %2222 = vmatpush.msra.mxu0 %v2179
    %2223 = vmatpush.msra.mxu0 %v2178
    %2224 = vmatpush.msra.mxu0 %v2177
    %2225 = vmatpush.msra.mxu0 %v2176
    %2226 = vmatpush.msra.mxu0 %v2175
    %2227 = vmatmul.f32.gmra.mxu0 %v2143
    %v2228 = vpop.f32.mrf.mxu0
    %v2229 = vadd.f32 %v2209, %v2228
    %2230 = vmatmul.f32.gmra.mxu0 %v2145
    %v2231 = vpop.f32.mrf.mxu0
    %v2232 = vadd.f32 %v2209, %v2231
    %2233 = vmatmul.f32.gmra.mxu0 %v2147
    %v2234 = vpop.f32.mrf.mxu0
    %v2235 = vadd.f32 %v2209, %v2234
    %2236 = vmatmul.f32.gmra.mxu0 %v2149
    %v2237 = vpop.f32.mrf.mxu0
    %v2238 = vadd.f32 %v2209, %v2237
    %2239 = vmatmul.f32.gmra.mxu0 %v2151
    %v2240 = vpop.f32.mrf.mxu0
    %v2241 = vadd.f32 %v2209, %v2240
    %2242 = vmatmul.f32.gmra.mxu0 %v2153
    %v2243 = vpop.f32.mrf.mxu0
    %v2244 = vadd.f32 %v2209, %v2243
    %2245 = vmatmul.f32.gmra.mxu0 %v2155
    %v2246 = vpop.f32.mrf.mxu0
    %v2247 = vadd.f32 %v2209, %v2246
    %2248 = vmatmul.f32.gmra.mxu0 %v2157
    %v2249 = vpop.f32.mrf.mxu0
    %v2250 = vadd.f32 %v2209, %v2249
    %2251 = vmatmul.f32.gmra.mxu0 %v2159
    %v2252 = vpop.f32.mrf.mxu0
    %v2253 = vadd.f32 %v2209, %v2252
    %2254 = vmatmul.f32.gmra.mxu0 %v2161
    %v2255 = vpop.f32.mrf.mxu0
    %v2256 = vadd.f32 %v2209, %v2255
    %2257 = vmatmul.f32.gmra.mxu0 %v2163
    %v2258 = vpop.f32.mrf.mxu0
    %v2259 = vadd.f32 %v2209, %v2258
    %2260 = vmatmul.f32.gmra.mxu0 %v2165
    %v2261 = vpop.f32.mrf.mxu0
    %v2262 = vadd.f32 %v2209, %v2261
    %2263 = vmatmul.f32.gmra.mxu0 %v2167
    %v2264 = vpop.f32.mrf.mxu0
    %v2265 = vadd.f32 %v2209, %v2264
    %2266 = vmatmul.f32.gmra.mxu0 %v2169
    %v2267 = vpop.f32.mrf.mxu0
    %v2268 = vadd.f32 %v2209, %v2267
    %2269 = vmatmul.f32.gmra.mxu0 %v2171
    %v2270 = vpop.f32.mrf.mxu0
    %v2271 = vadd.f32 %v2209, %v2270
    %2272 = vmatmul.f32.gmra.mxu0 %v2173
    %v2273 = vpop.f32.mrf.mxu0
    %v2274 = vadd.f32 %v2209, %v2273
    %2275 = vdwg.mxu0
    %2276 = vmatpush.msra.mxu0 %v2206
    %2277 = vmatpush.msra.mxu0 %v2205
    %2278 = vmatpush.msra.mxu0 %v2204
    %2279 = vmatpush.msra.mxu0 %v2203
    %2280 = vmatpush.msra.mxu0 %v2202
    %2281 = vmatpush.msra.mxu0 %v2201
    %2282 = vmatpush.msra.mxu0 %v2200
    %2283 = vmatpush.msra.mxu0 %v2199
    %2284 = vmatpush.msra.mxu0 %v2198
    %2285 = vmatpush.msra.mxu0 %v2197
    %2286 = vmatpush.msra.mxu0 %v2196
    %2287 = vmatpush.msra.mxu0 %v2195
    %2288 = vmatpush.msra.mxu0 %v2194
    %2289 = vmatpush.msra.mxu0 %v2193
    %2290 = vmatpush.msra.mxu0 %v2192
    %2291 = vmatpush.msra.mxu0 %v2191
    %2292 = vmatmul.f32.gmra.mxu0 %v2144
    %v2293 = vpop.f32.mrf.mxu0
    %v2294 = vadd.f32 %v2229, %v2293
    %2295 = vmatmul.f32.gmra.mxu0 %v2146
    %v2296 = vpop.f32.mrf.mxu0
    %v2297 = vadd.f32 %v2232, %v2296
    %2298 = vmatmul.f32.gmra.mxu0 %v2148
    %v2299 = vpop.f32.mrf.mxu0
    %v2300 = vadd.f32 %v2235, %v2299
    %2301 = vmatmul.f32.gmra.mxu0 %v2150
    %v2302 = vpop.f32.mrf.mxu0
    %v2303 = vadd.f32 %v2238, %v2302
    %2304 = vmatmul.f32.gmra.mxu0 %v2152
    %v2305 = vpop.f32.mrf.mxu0
    %v2306 = vadd.f32 %v2241, %v2305
    %2307 = vmatmul.f32.gmra.mxu0 %v2154
    %v2308 = vpop.f32.mrf.mxu0
    %v2309 = vadd.f32 %v2244, %v2308
    %2310 = vmatmul.f32.gmra.mxu0 %v2156
    %v2311 = vpop.f32.mrf.mxu0
    %v2312 = vadd.f32 %v2247, %v2311
    %2313 = vmatmul.f32.gmra.mxu0 %v2158
    %v2314 = vpop.f32.mrf.mxu0
    %v2315 = vadd.f32 %v2250, %v2314
    %2316 = vmatmul.f32.gmra.mxu0 %v2160
    %v2317 = vpop.f32.mrf.mxu0
    %v2318 = vadd.f32 %v2253, %v2317
    %2319 = vmatmul.f32.gmra.mxu0 %v2162
    %v2320 = vpop.f32.mrf.mxu0
    %v2321 = vadd.f32 %v2256, %v2320
    %2322 = vmatmul.f32.gmra.mxu0 %v2164
    %v2323 = vpop.f32.mrf.mxu0
    %v2324 = vadd.f32 %v2259, %v2323
    %2325 = vmatmul.f32.gmra.mxu0 %v2166
    %v2326 = vpop.f32.mrf.mxu0
    %v2327 = vadd.f32 %v2262, %v2326
    %2328 = vmatmul.f32.gmra.mxu0 %v2168
    %v2329 = vpop.f32.mrf.mxu0
    %v2330 = vadd.f32 %v2265, %v2329
    %2331 = vmatmul.f32.gmra.mxu0 %v2170
    %v2332 = vpop.f32.mrf.mxu0
    %v2333 = vadd.f32 %v2268, %v2332
    %2334 = vmatmul.f32.gmra.mxu0 %v2172
    %v2335 = vpop.f32.mrf.mxu0
    %v2336 = vadd.f32 %v2271, %v2335
    %2337 = vmatmul.f32.gmra.mxu0 %v2174
    %v2338 = vpop.f32.mrf.mxu0
    %v2339 = vadd.f32 %v2274, %v2338
    %2340 = vdwg.mxu0
    %v2341 = vtanh.pop %v2294
    %v2342 = vtanh.pop %v2297
    %v2343 = vtanh.pop %v2300
    %v2344 = vtanh.pop %v2303
    %v2345 = vtanh.pop %v2306
    %v2346 = vtanh.pop %v2309
    %v2347 = vtanh.pop %v2312
    %v2348 = vtanh.pop %v2315
    %v2349 = vtanh.pop %v2318
    %v2350 = vtanh.pop %v2321
    %v2351 = vtanh.pop %v2324
    %v2352 = vtanh.pop %v2327
    %v2353 = vtanh.pop %v2330
    %v2354 = vtanh.pop %v2333
    %v2355 = vtanh.pop %v2336
    %v2356 = vtanh.pop %v2339
    %v2357 = vld [vmem:[#allocation33] sm:$0xff]
    %v2358 = vld [vmem:[#allocation33 + $0x8] sm:$0xff]
    %v2359 = vld [vmem:[#allocation33 + $0x10] sm:$0xff]
    %v2360 = vld [vmem:[#allocation33 + $0x18] sm:$0xff]
    %v2361 = vld [vmem:[#allocation33 + $0x20] sm:$0xff]
    %v2362 = vld [vmem:[#allocation33 + $0x28] sm:$0xff]
    %v2363 = vld [vmem:[#allocation33 + $0x30] sm:$0xff]
    %v2364 = vld [vmem:[#allocation33 + $0x38] sm:$0xff]
    %v2365 = vld [vmem:[#allocation33 + $0x40] sm:$0xff]
    %v2366 = vld [vmem:[#allocation33 + $0x48] sm:$0xff]
    %v2367 = vld [vmem:[#allocation33 + $0x50] sm:$0xff]
    %v2368 = vld [vmem:[#allocation33 + $0x58] sm:$0xff]
    %v2369 = vld [vmem:[#allocation33 + $0x60] sm:$0xff]
    %v2370 = vld [vmem:[#allocation33 + $0x68] sm:$0xff]
    %v2371 = vld [vmem:[#allocation33 + $0x70] sm:$0xff]
    %v2372 = vld [vmem:[#allocation33 + $0x78] sm:$0xff]
    %v2373 = vld [vmem:[#allocation34] sm:$0x1]
    %v2375 = vperm.slane %v2373, 0
    %2377 = vmatpush.msra.mxu0 %v2372
    %2378 = vmatpush.msra.mxu0 %v2371
    %2379 = vmatpush.msra.mxu0 %v2370
    %2380 = vmatpush.msra.mxu0 %v2369
    %2381 = vmatpush.msra.mxu0 %v2368
    %2382 = vmatpush.msra.mxu0 %v2367
    %2383 = vmatpush.msra.mxu0 %v2366
    %2384 = vmatpush.msra.mxu0 %v2365
    %2385 = vmatpush.msra.mxu0 %v2364
    %2386 = vmatpush.msra.mxu0 %v2363
    %2387 = vmatpush.msra.mxu0 %v2362
    %2388 = vmatpush.msra.mxu0 %v2361
    %2389 = vmatpush.msra.mxu0 %v2360
    %2390 = vmatpush.msra.mxu0 %v2359
    %2391 = vmatpush.msra.mxu0 %v2358
    %2392 = vmatpush.msra.mxu0 %v2357
    %2393 = vmatmul.f32.gmra.mxu0 %v2341
    %v2394 = vpop.f32.mrf.mxu0
    %v2395 = vadd.f32 %v2375, %v2394
    %2396 = vmatmul.f32.gmra.mxu0 %v2342
    %v2397 = vpop.f32.mrf.mxu0
    %v2398 = vadd.f32 %v2375, %v2397
    %2399 = vmatmul.f32.gmra.mxu0 %v2343
    %v2400 = vpop.f32.mrf.mxu0
    %v2401 = vadd.f32 %v2375, %v2400
    %2402 = vmatmul.f32.gmra.mxu0 %v2344
    %v2403 = vpop.f32.mrf.mxu0
    %v2404 = vadd.f32 %v2375, %v2403
    %2405 = vmatmul.f32.gmra.mxu0 %v2345
    %v2406 = vpop.f32.mrf.mxu0
    %v2407 = vadd.f32 %v2375, %v2406
    %2408 = vmatmul.f32.gmra.mxu0 %v2346
    %v2409 = vpop.f32.mrf.mxu0
    %v2410 = vadd.f32 %v2375, %v2409
    %2411 = vmatmul.f32.gmra.mxu0 %v2347
    %v2412 = vpop.f32.mrf.mxu0
    %v2413 = vadd.f32 %v2375, %v2412
    %2414 = vmatmul.f32.gmra.mxu0 %v2348
    %v2415 = vpop.f32.mrf.mxu0
    %v2416 = vadd.f32 %v2375, %v2415
    %2417 = vmatmul.f32.gmra.mxu0 %v2349
    %v2418 = vpop.f32.mrf.mxu0
    %v2419 = vadd.f32 %v2375, %v2418
    %2420 = vmatmul.f32.gmra.mxu0 %v2350
    %v2421 = vpop.f32.mrf.mxu0
    %v2422 = vadd.f32 %v2375, %v2421
    %2423 = vmatmul.f32.gmra.mxu0 %v2351
    %v2424 = vpop.f32.mrf.mxu0
    %v2425 = vadd.f32 %v2375, %v2424
    %2426 = vmatmul.f32.gmra.mxu0 %v2352
    %v2427 = vpop.f32.mrf.mxu0
    %v2428 = vadd.f32 %v2375, %v2427
    %2429 = vmatmul.f32.gmra.mxu0 %v2353
    %v2430 = vpop.f32.mrf.mxu0
    %v2431 = vadd.f32 %v2375, %v2430
    %2432 = vmatmul.f32.gmra.mxu0 %v2354
    %v2433 = vpop.f32.mrf.mxu0
    %v2434 = vadd.f32 %v2375, %v2433
    %2435 = vmatmul.f32.gmra.mxu0 %v2355
    %v2436 = vpop.f32.mrf.mxu0
    %v2437 = vadd.f32 %v2375, %v2436
    %2438 = vmatmul.f32.gmra.mxu0 %v2356
    %v2439 = vpop.f32.mrf.mxu0
    %v2440 = vadd.f32 %v2375, %v2439
    %2441 = vdwg.mxu0
    %v2442 = vtanh.pop %v2395
    %v2443 = vtanh.pop %v2398
    %v2444 = vtanh.pop %v2401
    %v2445 = vtanh.pop %v2404
    %v2446 = vtanh.pop %v2407
    %v2447 = vtanh.pop %v2410
    %v2448 = vtanh.pop %v2413
    %v2449 = vtanh.pop %v2416
    %v2450 = vtanh.pop %v2419
    %v2451 = vtanh.pop %v2422
    %v2452 = vtanh.pop %v2425
    %v2453 = vtanh.pop %v2428
    %v2454 = vtanh.pop %v2431
    %v2455 = vtanh.pop %v2434
    %v2456 = vtanh.pop %v2437
    %v2457 = vtanh.pop %v2440
    %v2458 = vld [vmem:[#allocation36] sm:$0x1]
    %v2460 = vperm.slane %v2458, 0
    %v2462 = vmul.f32 %v2442, %v2460
    %v2463 = vmul.f32 %v2443, %v2460
    %v2464 = vmul.f32 %v2444, %v2460
    %v2465 = vmul.f32 %v2445, %v2460
    %v2466 = vmul.f32 %v2446, %v2460
    %v2467 = vmul.f32 %v2447, %v2460
    %v2468 = vmul.f32 %v2448, %v2460
    %v2469 = vmul.f32 %v2449, %v2460
    %v2470 = vmul.f32 %v2450, %v2460
    %v2471 = vmul.f32 %v2451, %v2460
    %v2472 = vmul.f32 %v2452, %v2460
    %v2473 = vmul.f32 %v2453, %v2460
    %v2474 = vmul.f32 %v2454, %v2460
    %v2475 = vmul.f32 %v2455, %v2460
    %v2476 = vmul.f32 %v2456, %v2460
    %v2477 = vmul.f32 %v2457, %v2460
    %2478 = vadd.xlane.f32.xlu0 %v2462
    %v2479 = vpop.xlane.xlu0 %2478
    %2480 = vadd.xlane.f32.xlu0 %v2463
    %v2481 = vpop.xlane.xlu0 %2480
    %2482 = vadd.xlane.f32.xlu0 %v2464
    %v2483 = vpop.xlane.xlu0 %2482
    %2484 = vadd.xlane.f32.xlu0 %v2465
    %v2485 = vpop.xlane.xlu0 %2484
    %2486 = vadd.xlane.f32.xlu0 %v2466
    %v2487 = vpop.xlane.xlu0 %2486
    %2488 = vadd.xlane.f32.xlu0 %v2467
    %v2489 = vpop.xlane.xlu0 %2488
    %2490 = vadd.xlane.f32.xlu0 %v2468
    %v2491 = vpop.xlane.xlu0 %2490
    %2492 = vadd.xlane.f32.xlu0 %v2469
    %v2493 = vpop.xlane.xlu0 %2492
    %2494 = vadd.xlane.f32.xlu0 %v2470
    %v2495 = vpop.xlane.xlu0 %2494
    %2496 = vadd.xlane.f32.xlu0 %v2471
    %v2497 = vpop.xlane.xlu0 %2496
    %2498 = vadd.xlane.f32.xlu0 %v2472
    %v2499 = vpop.xlane.xlu0 %2498
    %2500 = vadd.xlane.f32.xlu0 %v2473
    %v2501 = vpop.xlane.xlu0 %2500
    %2502 = vadd.xlane.f32.xlu0 %v2474
    %v2503 = vpop.xlane.xlu0 %2502
    %2504 = vadd.xlane.f32.xlu0 %v2475
    %v2505 = vpop.xlane.xlu0 %2504
    %2506 = vadd.xlane.f32.xlu0 %v2476
    %v2507 = vpop.xlane.xlu0 %2506
    %2508 = vadd.xlane.f32.xlu0 %v2477
    %v2509 = vpop.xlane.xlu0 %2508
    %s2510 = sld [smem:[#allocation8]]
    %v2511 = vstv %s2510
    %v2512 = vadd.f32 %v2479, %v2511
    %v2513 = vadd.f32 %v2481, %v2511
    %v2514 = vadd.f32 %v2483, %v2511
    %v2515 = vadd.f32 %v2485, %v2511
    %v2516 = vadd.f32 %v2487, %v2511
    %v2517 = vadd.f32 %v2489, %v2511
    %v2518 = vadd.f32 %v2491, %v2511
    %v2519 = vadd.f32 %v2493, %v2511
    %v2520 = vadd.f32 %v2495, %v2511
    %v2521 = vadd.f32 %v2497, %v2511
    %v2522 = vadd.f32 %v2499, %v2511
    %v2523 = vadd.f32 %v2501, %v2511
    %v2524 = vadd.f32 %v2503, %v2511
    %v2525 = vadd.f32 %v2505, %v2511
    %v2526 = vadd.f32 %v2507, %v2511
    %v2527 = vadd.f32 %v2509, %v2511
    %v2528 = vld [vmem:[%s1] sm:$0xff]
    %v2529 = vld [vmem:[%s59] sm:$0xf]
    %2531 = vset.pattern.permute.xlu0 0
    %2532 = vperm.xlu0 %2531, %v2528
    %v2533 = vpop.permute.xlu0 %2532
    %v2536 = vperm.slane %v2529, 0
    %v2537 = vperm.slane %v2529, 2
    %v2540 = vperm.slane %v2536, 0
    %v2541 = vperm.slane %v2537, 0
    %v2542 = vmul.f32 %v2533, %v2540
    %v2543 = vmul.f32 %v2533, %v2541
    %2544 = vset.pattern.permute.xlu0 1
    %2545 = vperm.xlu0 %2544, %v2528
    %v2546 = vpop.permute.xlu0 %2545
    %v2548 = vperm.slane %v2529, 1
    %v2549 = vperm.slane %v2529, 3
    %v2552 = vperm.slane %v2548, 1
    %v2553 = vperm.slane %v2549, 1
    %v2554 = vmul.f32 %v2546, %v2552
    %v2555 = vmul.f32 %v2546, %v2553
    %v2556 = vadd.f32 %v2542, %v2554
    %v2557 = vadd.f32 %v2543, %v2555
    %v2558 = vld [vmem:[%s61] sm:$0x3]
    %v2560 = vperm.slane %v2558, 0
    %v2561 = vperm.slane %v2558, 1
    %v2564 = vadd.f32 %v2556, %v2560
    %v2565 = vadd.f32 %v2557, %v2561
    %v2566 = vld [vmem:[#allocation37] sm:$0xff]
    %v2567 = vld [vmem:[#allocation37 + $0x8] sm:$0xff]
    %v2568 = vld [vmem:[#allocation37 + $0x10] sm:$0xff]
    %v2569 = vld [vmem:[#allocation37 + $0x18] sm:$0xff]
    %v2570 = vld [vmem:[#allocation37 + $0x20] sm:$0xff]
    %v2571 = vld [vmem:[#allocation37 + $0x28] sm:$0xff]
    %v2572 = vld [vmem:[#allocation37 + $0x30] sm:$0xff]
    %v2573 = vld [vmem:[#allocation37 + $0x38] sm:$0xff]
    %v2574 = vld [vmem:[#allocation37 + $0x40] sm:$0xff]
    %v2575 = vld [vmem:[#allocation37 + $0x48] sm:$0xff]
    %v2576 = vld [vmem:[#allocation37 + $0x50] sm:$0xff]
    %v2577 = vld [vmem:[#allocation37 + $0x58] sm:$0xff]
    %v2578 = vld [vmem:[#allocation37 + $0x60] sm:$0xff]
    %v2579 = vld [vmem:[#allocation37 + $0x68] sm:$0xff]
    %v2580 = vld [vmem:[#allocation37 + $0x70] sm:$0xff]
    %v2581 = vld [vmem:[#allocation37 + $0x78] sm:$0xff]
    %v2582 = vld [vmem:[#allocation37 + $0x80] sm:$0xff]
    %v2583 = vld [vmem:[#allocation37 + $0x88] sm:$0xff]
    %v2584 = vld [vmem:[#allocation37 + $0x90] sm:$0xff]
    %v2585 = vld [vmem:[#allocation37 + $0x98] sm:$0xff]
    %v2586 = vld [vmem:[#allocation37 + $0xa0] sm:$0xff]
    %v2587 = vld [vmem:[#allocation37 + $0xa8] sm:$0xff]
    %v2588 = vld [vmem:[#allocation37 + $0xb0] sm:$0xff]
    %v2589 = vld [vmem:[#allocation37 + $0xb8] sm:$0xff]
    %v2590 = vld [vmem:[#allocation37 + $0xc0] sm:$0xff]
    %v2591 = vld [vmem:[#allocation37 + $0xc8] sm:$0xff]
    %v2592 = vld [vmem:[#allocation37 + $0xd0] sm:$0xff]
    %v2593 = vld [vmem:[#allocation37 + $0xd8] sm:$0xff]
    %v2594 = vld [vmem:[#allocation37 + $0xe0] sm:$0xff]
    %v2595 = vld [vmem:[#allocation37 + $0xe8] sm:$0xff]
    %v2596 = vld [vmem:[#allocation37 + $0xf0] sm:$0xff]
    %v2597 = vld [vmem:[#allocation37 + $0xf8] sm:$0xff]
    %v2598 = vld [vmem:[%s65] sm:$0x1]
    %v2600 = vperm.slane %v2598, 0
    %2602 = vmatpush.msra.mxu0 %v2581
    %2603 = vmatpush.msra.mxu0 %v2580
    %2604 = vmatpush.msra.mxu0 %v2579
    %2605 = vmatpush.msra.mxu0 %v2578
    %2606 = vmatpush.msra.mxu0 %v2577
    %2607 = vmatpush.msra.mxu0 %v2576
    %2608 = vmatpush.msra.mxu0 %v2575
    %2609 = vmatpush.msra.mxu0 %v2574
    %2610 = vmatpush.msra.mxu0 %v2573
    %2611 = vmatpush.msra.mxu0 %v2572
    %2612 = vmatpush.msra.mxu0 %v2571
    %2613 = vmatpush.msra.mxu0 %v2570
    %2614 = vmatpush.msra.mxu0 %v2569
    %2615 = vmatpush.msra.mxu0 %v2568
    %2616 = vmatpush.msra.mxu0 %v2567
    %2617 = vmatpush.msra.mxu0 %v2566
    %2618 = vmatmul.f32.gmra.mxu0 %v2564
    %v2619 = vpop.f32.mrf.mxu0
    %v2620 = vadd.f32 %v2600, %v2619
    %2621 = vdwg.mxu0
    %2622 = vmatpush.msra.mxu0 %v2597
    %2623 = vmatpush.msra.mxu0 %v2596
    %2624 = vmatpush.msra.mxu0 %v2595
    %2625 = vmatpush.msra.mxu0 %v2594
    %2626 = vmatpush.msra.mxu0 %v2593
    %2627 = vmatpush.msra.mxu0 %v2592
    %2628 = vmatpush.msra.mxu0 %v2591
    %2629 = vmatpush.msra.mxu0 %v2590
    %2630 = vmatpush.msra.mxu0 %v2589
    %2631 = vmatpush.msra.mxu0 %v2588
    %2632 = vmatpush.msra.mxu0 %v2587
    %2633 = vmatpush.msra.mxu0 %v2586
    %2634 = vmatpush.msra.mxu0 %v2585
    %2635 = vmatpush.msra.mxu0 %v2584
    %2636 = vmatpush.msra.mxu0 %v2583
    %2637 = vmatpush.msra.mxu0 %v2582
    %2638 = vmatmul.f32.gmra.mxu0 %v2565
    %v2639 = vpop.f32.mrf.mxu0
    %v2640 = vadd.f32 %v2620, %v2639
    %2641 = vdwg.mxu0
    %v2642 = vtanh.pop %v2640
    %v2643 = vld [vmem:[#allocation39] sm:$0xff]
    %v2644 = vld [vmem:[#allocation39 + $0x8] sm:$0xff]
    %v2645 = vld [vmem:[#allocation39 + $0x10] sm:$0xff]
    %v2646 = vld [vmem:[#allocation39 + $0x18] sm:$0xff]
    %v2647 = vld [vmem:[#allocation39 + $0x20] sm:$0xff]
    %v2648 = vld [vmem:[#allocation39 + $0x28] sm:$0xff]
    %v2649 = vld [vmem:[#allocation39 + $0x30] sm:$0xff]
    %v2650 = vld [vmem:[#allocation39 + $0x38] sm:$0xff]
    %v2651 = vld [vmem:[#allocation39 + $0x40] sm:$0xff]
    %v2652 = vld [vmem:[#allocation39 + $0x48] sm:$0xff]
    %v2653 = vld [vmem:[#allocation39 + $0x50] sm:$0xff]
    %v2654 = vld [vmem:[#allocation39 + $0x58] sm:$0xff]
    %v2655 = vld [vmem:[#allocation39 + $0x60] sm:$0xff]
    %v2656 = vld [vmem:[#allocation39 + $0x68] sm:$0xff]
    %v2657 = vld [vmem:[#allocation39 + $0x70] sm:$0xff]
    %v2658 = vld [vmem:[#allocation39 + $0x78] sm:$0xff]
    %v2659 = vld [vmem:[%s69] sm:$0x1]
    %v2661 = vperm.slane %v2659, 0
    %2663 = vmatpush.msra.mxu0 %v2658
    %2664 = vmatpush.msra.mxu0 %v2657
    %2665 = vmatpush.msra.mxu0 %v2656
    %2666 = vmatpush.msra.mxu0 %v2655
    %2667 = vmatpush.msra.mxu0 %v2654
    %2668 = vmatpush.msra.mxu0 %v2653
    %2669 = vmatpush.msra.mxu0 %v2652
    %2670 = vmatpush.msra.mxu0 %v2651
    %2671 = vmatpush.msra.mxu0 %v2650
    %2672 = vmatpush.msra.mxu0 %v2649
    %2673 = vmatpush.msra.mxu0 %v2648
    %2674 = vmatpush.msra.mxu0 %v2647
    %2675 = vmatpush.msra.mxu0 %v2646
    %2676 = vmatpush.msra.mxu0 %v2645
    %2677 = vmatpush.msra.mxu0 %v2644
    %2678 = vmatpush.msra.mxu0 %v2643
    %2679 = vmatmul.f32.gmra.mxu0 %v2642
    %v2680 = vpop.f32.mrf.mxu0
    %v2681 = vadd.f32 %v2661, %v2680
    %2682 = vdwg.mxu0
    %v2683 = vtanh.pop %v2681
    %v2684 = vld [vmem:[%s71] sm:$0xff]
    %v2685 = vld [vmem:[%s71 + $0x8] sm:$0xff]
    %v2686 = vld [vmem:[%s71 + $0x10] sm:$0xff]
    %v2687 = vld [vmem:[%s71 + $0x18] sm:$0xff]
    %v2688 = vld [vmem:[%s71 + $0x20] sm:$0xff]
    %v2689 = vld [vmem:[%s71 + $0x28] sm:$0xff]
    %v2690 = vld [vmem:[%s71 + $0x30] sm:$0xff]
    %v2691 = vld [vmem:[%s71 + $0x38] sm:$0xff]
    %v2692 = vld [vmem:[%s71 + $0x40] sm:$0xff]
    %v2693 = vld [vmem:[%s71 + $0x48] sm:$0xff]
    %v2694 = vld [vmem:[%s71 + $0x50] sm:$0xff]
    %v2695 = vld [vmem:[%s71 + $0x58] sm:$0xff]
    %v2696 = vld [vmem:[%s71 + $0x60] sm:$0xff]
    %v2697 = vld [vmem:[%s71 + $0x68] sm:$0xff]
    %v2698 = vld [vmem:[%s71 + $0x70] sm:$0xff]
    %v2699 = vld [vmem:[%s71 + $0x78] sm:$0xff]
    %v2700 = vld [vmem:[%s73] sm:$0x1]
    %v2702 = vperm.slane %v2700, 0
    %2704 = vmatpush.msra.mxu0 %v2699
    %2705 = vmatpush.msra.mxu0 %v2698
    %2706 = vmatpush.msra.mxu0 %v2697
    %2707 = vmatpush.msra.mxu0 %v2696
    %2708 = vmatpush.msra.mxu0 %v2695
    %2709 = vmatpush.msra.mxu0 %v2694
    %2710 = vmatpush.msra.mxu0 %v2693
    %2711 = vmatpush.msra.mxu0 %v2692
    %2712 = vmatpush.msra.mxu0 %v2691
    %2713 = vmatpush.msra.mxu0 %v2690
    %2714 = vmatpush.msra.mxu0 %v2689
    %2715 = vmatpush.msra.mxu0 %v2688
    %2716 = vmatpush.msra.mxu0 %v2687
    %2717 = vmatpush.msra.mxu0 %v2686
    %2718 = vmatpush.msra.mxu0 %v2685
    %2719 = vmatpush.msra.mxu0 %v2684
    %2720 = vmatmul.f32.gmra.mxu0 %v2683
    %v2721 = vpop.f32.mrf.mxu0
    %v2722 = vadd.f32 %v2702, %v2721
    %2723 = vdwg.mxu0
    %v2740 = vperm.slane %v2512, %v1786
    %v2741 = vperm.slane %v2513, %v1788
    %v2742 = vsel %vm1790, %v2741, %v2740
    %v2743 = vperm.slane %v2514, %v1786
    %v2744 = vperm.slane %v2515, %v1788
    %v2745 = vsel %vm1790, %v2744, %v2743
    %v2746 = vperm.slane %v2516, %v1786
    %v2747 = vperm.slane %v2517, %v1788
    %v2748 = vsel %vm1790, %v2747, %v2746
    %v2749 = vperm.slane %v2518, %v1786
    %v2750 = vperm.slane %v2519, %v1788
    %v2751 = vsel %vm1790, %v2750, %v2749
    %v2752 = vperm.slane %v2520, %v1786
    %v2753 = vperm.slane %v2521, %v1788
    %v2754 = vsel %vm1790, %v2753, %v2752
    %v2755 = vperm.slane %v2522, %v1786
    %v2756 = vperm.slane %v2523, %v1788
    %v2757 = vsel %vm1790, %v2756, %v2755
    %v2758 = vperm.slane %v2524, %v1786
    %v2759 = vperm.slane %v2525, %v1788
    %v2760 = vsel %vm1790, %v2759, %v2758
    %v2761 = vperm.slane %v2526, %v1786
    %v2762 = vperm.slane %v2527, %v1788
    %v2763 = vsel %vm1790, %v2762, %v2761
    %v2764 = vsel %vm1813, %v2745, %v2742
    %v2765 = vsel %vm1815, %v2748, %v2764
    %v2766 = vsel %vm1817, %v2751, %v2765
    %v2767 = vsel %vm1819, %v2754, %v2766
    %v2768 = vsel %vm1821, %v2757, %v2767
    %v2769 = vsel %vm1823, %v2760, %v2768
    %v2770 = vsel %vm1825, %v2763, %v2769
    %v2772 = vmul.f32 %v2025, %v2770
    %v2773 = vmul.f32 %v2772, %v2722
    %v2774 = vsel %vm655, %v2773, 0.0
    %2775 = vadd.xlane.f32.xlu0 %v2774
    %v2776 = vpop.xlane.xlu0 %2775
    %v2778 = vperm.slane %v2776, %v1786
    %vm2780 = vcmask 57344
    %2781 = vst.msk [vmem:[#allocation40] sm:$0x1] %vm2780, %v2778
    // Predicated region
    $region226: #{tpu_custom_call.1} parent=1 // pred_check
      _
    $region227: #{tpu_custom_call.1} parent=1 // pred_check_branch
      %2783 = sbr.rel (0) target = $region229
    $region228: #{tpu_custom_call.1} parent=1 // pred_region
      %2785 = vsyncadd [#allocation11], 0
      %s2787 = sshll.u32 [#allocation40], 4
      %s2788 = int_to_ptr.vmem [resolvable:$true] %s2787
      %s2789 = sshll.u32 %s75, 4
      %s2790 = int_to_ptr.hbm [resolvable:$true] %s2789
      %2792 = dma.vmem_to_hbm [thread:$0]  %s2788, 16, %s2790, [#allocation11]
    $region229: #{tpu_custom_call.1} parent=1 // pred_fallthru
      _
    // Predicated region
    $region230: #{tpu_custom_call.1} parent=1 // pred_check
      _
    $region231: #{tpu_custom_call.1} parent=1 // pred_check_branch
      %2794 = sbr.rel (0) target = $region233
    $region232: #{tpu_custom_call.1} parent=1 // pred_region
      %2796 = dma.done [#allocation11], 16
    $region233: #{tpu_custom_call.1} parent=1 // pred_fallthru
      _
    %2797 = vsyncpa [#allocation10], 1
    %2798 = vsyncpa [#allocation15], 1
    %2799 = vsyncpa [#allocation18], 1
    %2800 = vsyncpa [#allocation23], 1
    %2801 = vsyncpa [#allocation26], 1
    %2802 = vsyncpa [#allocation29], 1
    %2803 = vsyncpa [#allocation32], 1
    %2804 = vsyncpa [#allocation35], 1
    %2805 = vsyncpa [#allocation38], 1
    %2806 = vsyncpa [#allocation11], 1
    %2807 = vsyncpa [#allocation12], 1
    %2808 = vsyncpa [#allocation13], 1

</llo_original>
